<compile_context>
chip_gen: v5e
topology: v5e:2x2
jax: 0.10.0
libtpu: 0.0.40
codegen_flags: <defaults>
</compile_context>

<pallas_src>
import functools

import jax
import jax.numpy as jnp
import numpy as np
from jax import lax
from jax.experimental import pallas as pl
from jax.experimental.pallas import tpu as pltpu

_HIGHEST = jax.lax.Precision.HIGHEST


def _maybe_single_buffered(block_shape, index_map):
    """BlockSpec single-buffered when supported (constant-per-batch operands)."""
    try:
        return pl.BlockSpec(block_shape, index_map, pipeline_mode=pl.Buffered(1))
    except Exception:  # pipeline_mode / Buffered unavailable -> default buffering
        return pl.BlockSpec(block_shape, index_map)


# --------------------------------------------------------------------------
# Phase 1: qkv (K/V once per sample, Q per tile) + per-head attention
#          + per-channel partial sums for GroupNorm statistics.
# --------------------------------------------------------------------------
def _attn_kernel(x_ref, wqkv_ref, a_ref, s1_ref, s2_ref, kv_s, *,
                 heads, head_dim, tq, compute_dtype, precision):
    t = pl.program_id(1)
    C = heads * head_dim

    @pl.when(t == 0)
    def _():
        # K and V for the whole (pooled) sample, once per batch element.
        kv_s[...] = jnp.dot(
            x_ref[0].astype(compute_dtype),
            wqkv_ref[:, C:].astype(compute_dtype),
            preferred_element_type=jnp.float32,
            precision=precision).astype(kv_s.dtype)
        # Zero the (output-resident) GroupNorm partial-sum accumulators.
        s1_ref[...] = jnp.zeros_like(s1_ref)
        s2_ref[...] = jnp.zeros_like(s2_ref)

    # Q rows for this query tile only (balances per-grid-step work).
    qoff = pl.multiple_of(t * tq, tq)
    x_t = x_ref[0, pl.ds(qoff, tq), :]                               # (tq, C)
    q = jnp.dot(x_t.astype(compute_dtype), wqkv_ref[:, :C].astype(compute_dtype),
                preferred_element_type=jnp.float32, precision=precision)

    parts = []
    for h in range(heads):
        r0 = h * head_dim
        q_h = q[:, r0:r0 + head_dim]                                 # (tq, hd)
        k_h = kv_s[:, r0:r0 + head_dim]                              # (hw, hd)
        v_h = kv_s[:, C + r0:C + r0 + head_dim]                      # (hw, hd)
        # scores = q k^T as an RHS-transposed matmul (native MXU form).
        s = lax.dot_general(q_h.astype(compute_dtype), k_h.astype(compute_dtype),
                            (((1,), (1,)), ((), ())),
                            preferred_element_type=jnp.float32,
                            precision=precision)                     # (tq, hw)
        s = s - jnp.max(s, axis=-1, keepdims=True)
        p = jnp.exp(s)
        denom = jnp.sum(p, axis=-1, keepdims=True)                   # (tq, 1)
        o_h = jnp.dot(p.astype(compute_dtype), v_h.astype(compute_dtype),
                      preferred_element_type=jnp.float32,
                      precision=precision)                           # (tq, hd)
        # Softmax normalization folded in AFTER the matmul; EXACT reciprocal
        # on only tq elements (the approx=True version caused the tolerance
        # failure in the previous submission).
        parts.append(o_h * (1.0 / denom))

    # ONE full-width lane-dense store per query tile.
    a_t = parts[0] if heads == 1 else jnp.concatenate(parts, axis=-1)  # (tq, C)
    a_ref[0] = a_t
    # Per-tile partial channel sums for the analytic GroupNorm statistics.
    s1_ref[0] += jnp.sum(a_t, axis=0, keepdims=True)
    s2_ref[0] += jnp.sum(a_t * a_t, axis=0, keepdims=True)


# --------------------------------------------------------------------------
# Phase 2: depthwise ConvTranspose2d(k=r, s=r, groups=C) + GroupNorm +
#          1x1 projection, all folded into ONE (tq, C) x (rr*C, C)^T matmul
#          per query tile plus a bias row.
# --------------------------------------------------------------------------
def _proj_kernel(a_ref, w_ref, b_ref, o_ref, *, compute_dtype, precision):
    out = lax.dot_general(a_ref[0].astype(compute_dtype),
                          w_ref[0].astype(compute_dtype),
                          (((1,), (1,)), ((), ())),
                          preferred_element_type=jnp.float32,
                          precision=precision)                       # (tq, rr*C)
    o_ref[0] = (out + b_ref[0]).astype(o_ref.dtype)


def _pick_tq(hw, max_tq=512):
    """Query-tile size: full HW when small, else a multiple-of-8 divisor."""
    if hw <= 2 * max_tq:
        return hw
    for cand in range(max_tq, 7, -8):
        if hw % cand == 0:
            return cand
    # TODO(synk): pad hw to a multiple of 8 (with key-side masking) instead of
    # falling back to a single full-length query tile for awkward hw values.
    return hw


def _vmem_limit_bytes(working_set_bytes):
    """Per-generation VMEM request with headroom for Mosaic internal scratch."""
    try:
        phys = int(pltpu.get_tpu_info().vmem_capacity_bytes)
    except Exception:
        phys = 64 * 1024 * 1024          # conservative: v7x per-TensorCore VMEM
    cap = (phys * 7) // 8                # never request the whole part
    return int(min(max(2 * working_set_bytes, 16 * 1024 * 1024), cap))


def global_sparse_attention(x, params, *, r, heads,
                            compute_dtype=jnp.float32,
                            precision=_HIGHEST, eps=1e-5):
    """x: (B, C, H0, W0) float32 (NCHW)."""
    B, C, H0, W0 = x.shape
    head_dim = C // heads
    rr = r * r

    # AvgPool2d(kernel_size=1, stride=r) == strided subsampling (no compute).
    xs = x[:, :, ::r, ::r]
    H, W = xs.shape[2], xs.shape[3]
    hw = H * W
    # Spatial-major slab: (B, HW, C)  (spatial on sublanes, channels on lanes).
    xs_t = xs.reshape(B, C, hw).transpose(0, 2, 1).astype(jnp.float32)

    tq = _pick_tq(hw)
    assert hw % tq == 0 and (tq == hw or tq % 8 == 0)
    nq = hw // tq

    # qkv weight -> (C, 3C) with head-contiguous [Q | K | V] column blocks.
    wqkv = params["qkv_w"].astype(jnp.float32)                       # (3C, C)
    wqkv_t = (wqkv.reshape(heads, 3, head_dim, C)
              .transpose(1, 0, 2, 3).reshape(3 * C, C).T)            # (C, 3C)

    lpw = params["lp_w"].reshape(C, rr).T.astype(jnp.float32)        # (rr, C)
    lpb = params["lp_b"].astype(jnp.float32)                         # (C,)
    gnw = params["gn_w"].astype(jnp.float32)                         # (C,)
    gnb = params["gn_b"].astype(jnp.float32)                         # (C,)
    pw = params["proj_w"].astype(jnp.float32)                        # (C, C)

    f32b = 4

    # ------------------ pass 1: attention + partial sums ------------------
    attn_kernel = functools.partial(
        _attn_kernel, heads=heads, head_dim=head_dim, tq=tq,
        compute_dtype=compute_dtype, precision=precision)

    est1 = f32b * (hw * C                  # x slab (single-buffered)
                   + 3 * C * C             # qkv weight
                   + 2 * tq * C            # attention output tile (x2 buffers)
                   + 4 * C                 # s1/s2 accumulators
                   + 2 * hw * C            # K/V scratch
                   + 2 * tq * hw + 2 * tq * C)   # score/prob transients
    cost1 = pl.CostEstimate(
        flops=int(2 * B * (hw * C * 3 * C + 2 * hw * hw * C)),
        transcendentals=int(B * hw * hw),
        bytes_accessed=int(f32b * B * (2 * hw * C + 3 * C * C + 2 * C)))

    a, s1, s2 = pl.pallas_call(
        attn_kernel,
        out_shape=(jax.ShapeDtypeStruct((B, hw, C), jnp.float32),
                   jax.ShapeDtypeStruct((B, 1, C), jnp.float32),
                   jax.ShapeDtypeStruct((B, 1, C), jnp.float32)),
        grid=(B, nq),
        in_specs=[
            _maybe_single_buffered((1, hw, C), lambda b, t: (b, 0, 0)),
            _maybe_single_buffered((C, 3 * C), lambda b, t: (0, 0)),
        ],
        out_specs=(
            pl.BlockSpec((1, tq, C), lambda b, t: (b, t, 0)),
            pl.BlockSpec((1, 1, C), lambda b, t: (b, 0, 0)),
            pl.BlockSpec((1, 1, C), lambda b, t: (b, 0, 0)),
        ),
        scratch_shapes=[pltpu.VMEM((hw, 2 * C), compute_dtype)],
        compiler_params=pltpu.CompilerParams(
            dimension_semantics=("parallel", "arbitrary"),
            vmem_limit_bytes=_vmem_limit_bytes(est1)),
        cost_estimate=cost1,
    )(xs_t, wqkv_t)

    # --------- GroupNorm stats + weight folding (tiny JAX glue) ----------
    # y[b,kk,c,s] = a[b,s,c]*lpw[kk,c] + lpb[c]; GroupNorm(num_groups=1)
    # statistics derived analytically from the per-channel sums of a, a^2.
    # (Cancellation-prone only when mean^2 ~ E[y^2]; fine at these scales.)
    s1 = s1.reshape(B, C)
    s2 = s2.reshape(B, C)
    w1 = jnp.sum(lpw, axis=0)                                        # (C,)
    w2 = jnp.sum(lpw * lpw, axis=0)                                  # (C,)
    n = float(rr * C * hw)
    sum_y = jnp.sum(s1 * w1[None, :], axis=1) + float(rr * hw) * jnp.sum(lpb)
    sum_y2 = (jnp.sum(s2 * w2[None, :], axis=1)
              + 2.0 * jnp.sum(s1 * (w1 * lpb)[None, :], axis=1)
              + float(rr * hw) * jnp.sum(lpb * lpb))
    mean = sum_y / n
    var = sum_y2 / n - mean * mean
    inv = lax.rsqrt(var + eps)                                       # (B,)
    g = inv[:, None] * gnw[None, :]                                  # (B, C)

    # Fold conv-transpose weights + GroupNorm affine into ONE projection
    # weight of shape (rr*C, C) per batch, plus one bias row.
    pw_all = (pw[None, None, :, :] *
              (lpw[None, :, :] * g[:, None, :])[:, :, None, :])      # (B,rr,C,C)
    pw_all = pw_all.reshape(B, rr * C, C)
    bias_row = (lpb[None, :] - mean[:, None]) * g + gnb[None, :]     # (B, C)
    bias_col = jnp.einsum("bc,oc->bo", bias_row, pw, precision=precision)
    bias_flat = jnp.tile(bias_col, (1, rr)).reshape(B, 1, rr * C)    # col=kk*C+o

    # ------------------ pass 2: folded projection epilogue ----------------
    proj_kernel = functools.partial(_proj_kernel, compute_dtype=compute_dtype,
                                    precision=precision)
    est2 = f32b * (2 * tq * C + rr * C * C + rr * C + 3 * tq * rr * C)
    cost2 = pl.CostEstimate(
        flops=int(2 * B * hw * C * rr * C),
        transcendentals=0,
        bytes_accessed=int(f32b * B * (hw * C + rr * C * C + hw * rr * C)))

    out = pl.pallas_call(
        proj_kernel,
        out_shape=jax.ShapeDtypeStruct((B, hw, rr * C), jnp.float32),
        grid=(B, nq),
        in_specs=[
            pl.BlockSpec((1, tq, C), lambda b, t: (b, t, 0)),
            _maybe_single_buffered((1, rr * C, C), lambda b, t: (b, 0, 0)),
            _maybe_single_buffered((1, 1, rr * C), lambda b, t: (b, 0, 0)),
        ],
        out_specs=pl.BlockSpec((1, tq, rr * C), lambda b, t: (b, t, 0)),
        compiler_params=pltpu.CompilerParams(
            dimension_semantics=("parallel", "parallel"),
            vmem_limit_bytes=_vmem_limit_bytes(est2)),
        cost_estimate=cost2,
    )(a, pw_all, bias_flat)

    # Layout glue: (B, HW, rr*C) -> (B, C, H*r, W*r).
    out = out.reshape(B, H, W, r, r, C)                  # (b, i, j, ki, kj, o)
    out = out.transpose(0, 5, 1, 3, 2, 4).reshape(B, C, H * r, W * r)
    return out


def reference(x, params, *, r, heads, precision=_HIGHEST):
    """Pure-JAX reimplementation of the PyTorch forward (for validation)."""
    C = x.shape[1]
    hd = C // heads
    xs = x[:, :, ::r, ::r]                               # AvgPool2d(k=1, stride=r)
    B, C, H, W = xs.shape
    qkv = jnp.einsum("oc,bchw->bohw", params["qkv_w"], xs, precision=precision)
    qkv = qkv.reshape(B, heads, 3 * hd, H * W)
    q, k, v = qkv[:, :, :hd], qkv[:, :, hd:2 * hd], qkv[:, :, 2 * hd:]
    attn = jax.nn.softmax(
        jnp.einsum("bhds,bhdt->bhst", q, k, precision=precision), axis=-1)
    o = jnp.einsum("bhdt,bhst->bhds", v, attn,
                   precision=precision).reshape(B, C, H, W)
    # depthwise transposed conv (kernel=r, stride=r, groups=C) + bias.
    lpw = params["lp_w"]                                 # (C, r, r)
    y = o[:, :, :, None, :, None] * lpw[None, :, None, :, None, :]
    y = y.reshape(B, C, H * r, W * r) + params["lp_b"][None, :, None, None]
    # GroupNorm(num_groups=1)
    mean = y.mean(axis=(1, 2, 3), keepdims=True)
    var = ((y - mean) ** 2).mean(axis=(1, 2, 3), keepdims=True)
    yn = (y - mean) / jnp.sqrt(var + 1e-5)
    yn = yn * params["gn_w"][None, :, None, None] + params["gn_b"][None, :, None, None]
    # 1x1 projection conv
    return jnp.einsum("oc,bchw->bohw", params["proj_w"], yn, precision=precision)


if __name__ == "__main__":
    B, C, H0, W0 = 2, 8, 16, 16
    r, heads = 2, 2

    key = jax.random.PRNGKey(0)
    kx, k1, k2, k3, k4, k5, k6 = jax.random.split(key, 7)

    x = jax.random.normal(kx, (B, C, H0, W0), dtype=jnp.float32)

    params = {
        # Conv2d(C, 3C, 1, bias=False) weight (3C, C, 1, 1) -> (3C, C)
        "qkv_w": 0.2 * jax.random.normal(k1, (3 * C, C), dtype=jnp.float32),
        # ConvTranspose2d(C, C, k=r, s=r, groups=C) weight (C, 1, r, r) -> (C, r, r)
        "lp_w": 0.3 * jax.random.normal(k2, (C, r, r), dtype=jnp.float32),
        "lp_b": 0.1 * jax.random.normal(k3, (C,), dtype=jnp.float32),
        # GroupNorm affine
        "gn_w": 1.0 + 0.1 * jax.random.normal(k4, (C,), dtype=jnp.float32),
        "gn_b": 0.1 * jax.random.normal(k5, (C,), dtype=jnp.float32),
        # Conv2d(C, C, 1, bias=False) weight (C, C, 1, 1) -> (C, C)
        "proj_w": 0.2 * jax.random.normal(k6, (C, C), dtype=jnp.float32),
    }

    out = global_sparse_attention(x, params, r=r, heads=heads)
    out = jax.block_until_ready(out)

    ref = jax.block_until_ready(reference(x, params, r=r, heads=heads))
    np.testing.assert_allclose(np.asarray(out), np.asarray(ref),
                               rtol=2e-3, atol=2e-3)

    assert out.shape == (B, C, (H0 // r) * r, (W0 // r) * r)
    print("KERNEL_OK")
</pallas_src>

<mosaic_0001>
module attributes {stable_mosaic.version = 11 : i64} {
  func.func @_attn_kernel(%arg0: i32, %arg1: i32, %arg2: memref<1x64x8xf32, #tpu.memory_space<vmem>>, %arg3: memref<8x24xf32, #tpu.memory_space<vmem>>, %arg4: memref<1x64x8xf32, #tpu.memory_space<vmem>>, %arg5: memref<1x1x8xf32, #tpu.memory_space<vmem>>, %arg6: memref<1x1x8xf32, #tpu.memory_space<vmem>>, %arg7: memref<64x16xf32, #tpu.memory_space<vmem>>) attributes {dimension_semantics = [#tpu.dimension_semantics<parallel>, #tpu.dimension_semantics<arbitrary>], iteration_bounds = array<i64: 2, 1>, scalar_prefetch = 0 : i64, scratch_operands = 1 : i64, tpu.core_type = #tpu.core_type<tc>, window_params = [{pipeline_mode = #tpu.pipeline_mode<synchronous>, transform_indices = @transform_0, window_bounds = array<i64: 1, 64, 8>}, {pipeline_mode = #tpu.pipeline_mode<synchronous>, transform_indices = @transform_1, window_bounds = array<i64: 8, 24>}, {transform_indices = @transform_2, window_bounds = array<i64: 1, 64, 8>}, {transform_indices = @transform_3, window_bounds = array<i64: 1, 1, 8>}, {transform_indices = @transform_4, window_bounds = array<i64: 1, 1, 8>}]} {
    %c0_i32 = arith.constant 0 : i32
    %0 = arith.cmpi eq, %arg1, %c0_i32 : i32
    %1 = arith.extui %0 : i1 to i32
    %c0_i32_0 = arith.constant 0 : i32
    %2 = arith.cmpi ne, %1, %c0_i32_0 : i32
    scf.if %2 {
      %c0_36 = arith.constant 0 : index
      %c0_37 = arith.constant 0 : index
      %c0_38 = arith.constant 0 : index
      %63 = vector.load %arg2[%c0_36, %c0_37, %c0_38] : memref<1x64x8xf32, #tpu.memory_space<vmem>>, vector<1x64x8xf32>
      %64 = vector.shape_cast %63 : vector<1x64x8xf32> to vector<64x8xf32>
      %c0_39 = arith.constant 0 : index
      %c8_40 = arith.constant 8 : index
      %65 = vector.load %arg3[%c0_39, %c8_40] : memref<8x24xf32, #tpu.memory_space<vmem>>, vector<8x16xf32>
      %cst_41 = arith.constant dense<0.000000e+00> : vector<64x16xf32>
      %66 = tpu.matmul %64, %65, %cst_41 {dimension_numbers = #tpu.dot_dimension_numbers<[1], [0], [0], [1], [0, 0, 1, 1], [], []>, precision = #tpu.contract_precision<fp32>} : vector<64x8xf32>, vector<8x16xf32>, vector<64x16xf32> -> vector<64x16xf32>
      %c0_42 = arith.constant 0 : index
      %c0_43 = arith.constant 0 : index
      %67 = vector.load %arg7[%c0_42, %c0_43] : memref<64x16xf32, #tpu.memory_space<vmem>>, vector<64x16xf32>
      tpu.vector_store %arg7[%c0_42, %c0_43], %66 {strides = array<i32>} : memref<64x16xf32, #tpu.memory_space<vmem>>, vector<64x16xf32>,
      %cst_44 = arith.constant 0.000000e+00 : f32
      %68 = vector.broadcast %cst_44 : f32 to vector<1x1x8xf32>
      %c0_45 = arith.constant 0 : index
      %c0_46 = arith.constant 0 : index
      %c0_47 = arith.constant 0 : index
      %69 = vector.load %arg5[%c0_45, %c0_46, %c0_47] : memref<1x1x8xf32, #tpu.memory_space<vmem>>, vector<1x1x8xf32>
      tpu.vector_store %arg5[%c0_45, %c0_46, %c0_47], %68 {strides = array<i32>} : memref<1x1x8xf32, #tpu.memory_space<vmem>>, vector<1x1x8xf32>,
      %cst_48 = arith.constant 0.000000e+00 : f32
      %70 = vector.broadcast %cst_48 : f32 to vector<1x1x8xf32>
      %c0_49 = arith.constant 0 : index
      %c0_50 = arith.constant 0 : index
      %c0_51 = arith.constant 0 : index
      %71 = vector.load %arg6[%c0_49, %c0_50, %c0_51] : memref<1x1x8xf32, #tpu.memory_space<vmem>>, vector<1x1x8xf32>
      tpu.vector_store %arg6[%c0_49, %c0_50, %c0_51], %70 {strides = array<i32>} : memref<1x1x8xf32, #tpu.memory_space<vmem>>, vector<1x1x8xf32>,
    } else {
    }
    %c64_i32 = arith.constant 64 : i32
    %3 = arith.muli %arg1, %c64_i32 : i32
    %4 = tpu.assume_multiple %3, 64 : i32
    %c0 = arith.constant 0 : index
    %5 = arith.index_cast %4 : i32 to index
    %c0_1 = arith.constant 0 : index
    %6 = vector.load %arg2[%c0, %5, %c0_1] : memref<1x64x8xf32, #tpu.memory_space<vmem>>, vector<1x64x8xf32>
    %7 = vector.shape_cast %6 : vector<1x64x8xf32> to vector<64x8xf32>
    %c0_2 = arith.constant 0 : index
    %c0_3 = arith.constant 0 : index
    %8 = vector.load %arg3[%c0_2, %c0_3] : memref<8x24xf32, #tpu.memory_space<vmem>>, vector<8x8xf32>
    %cst = arith.constant dense<0.000000e+00> : vector<64x8xf32>
    %9 = tpu.matmul %7, %8, %cst {dimension_numbers = #tpu.dot_dimension_numbers<[1], [0], [0], [1], [0, 0, 1, 1], [], []>, precision = #tpu.contract_precision<fp32>} : vector<64x8xf32>, vector<8x8xf32>, vector<64x8xf32> -> vector<64x8xf32>
    %10 = vector.extract_strided_slice %9 {offsets = [0, 0], sizes = [64, 4], strides = [1, 1]} : vector<64x8xf32> to vector<64x4xf32>
    %c0_4 = arith.constant 0 : index
    %c0_5 = arith.constant 0 : index
    %11 = vector.load %arg7[%c0_4, %c0_5] : memref<64x16xf32, #tpu.memory_space<vmem>>, vector<64x4xf32>
    %c0_6 = arith.constant 0 : index
    %c8 = arith.constant 8 : index
    %12 = vector.load %arg7[%c0_6, %c8] : memref<64x16xf32, #tpu.memory_space<vmem>>, vector<64x4xf32>
    %cst_7 = arith.constant dense<0.000000e+00> : vector<64x64xf32>
    %13 = tpu.matmul %10, %11, %cst_7 {dimension_numbers = #tpu.dot_dimension_numbers<[1], [1], [0], [0], [0, 0, 1, 0], [], []>, precision = #tpu.contract_precision<fp32>} : vector<64x4xf32>, vector<64x4xf32>, vector<64x64xf32> -> vector<64x64xf32>
    %cst_8 = arith.constant dense<0xFF800000> : vector<64xf32>
    %14 = vector.multi_reduction <maximumf>, %13, %cst_8 [1] : vector<64x64xf32> to vector<64xf32>
    %15 = vector.shape_cast %14 : vector<64xf32> to vector<64x1xf32>
    %16 = vector.broadcast %15 : vector<64x1xf32> to vector<64x64xf32>
    %17 = arith.subf %13, %16 : vector<64x64xf32>
    %18 = math.exp %17 : vector<64x64xf32>
    %cst_9 = arith.constant dense<0.000000e+00> : vector<64xf32>
    %19 = vector.multi_reduction <add>, %18, %cst_9 [1] : vector<64x64xf32> to vector<64xf32>
    %20 = vector.shape_cast %19 : vector<64xf32> to vector<64x1xf32>
    %cst_10 = arith.constant dense<0.000000e+00> : vector<64x4xf32>
    %21 = tpu.matmul %18, %12, %cst_10 {dimension_numbers = #tpu.dot_dimension_numbers<[1], [0], [0], [1], [0, 0, 1, 1], [], []>, precision = #tpu.contract_precision<fp32>} : vector<64x64xf32>, vector<64x4xf32>, vector<64x4xf32> -> vector<64x4xf32>
    %cst_11 = arith.constant 1.000000e+00 : f32
    %22 = vector.broadcast %cst_11 : f32 to vector<64x1xf32>
    %23 = arith.divf %22, %20 : vector<64x1xf32>
    %24 = vector.broadcast %23 : vector<64x1xf32> to vector<64x4xf32>
    %25 = arith.mulf %21, %24 : vector<64x4xf32>
    %26 = vector.extract_strided_slice %9 {offsets = [0, 4], sizes = [64, 4], strides = [1, 1]} : vector<64x8xf32> to vector<64x4xf32>
    %c0_12 = arith.constant 0 : index
    %c4 = arith.constant 4 : index
    %27 = vector.load %arg7[%c0_12, %c4] : memref<64x16xf32, #tpu.memory_space<vmem>>, vector<64x4xf32>
    %c0_13 = arith.constant 0 : index
    %c12 = arith.constant 12 : index
    %28 = vector.load %arg7[%c0_13, %c12] : memref<64x16xf32, #tpu.memory_space<vmem>>, vector<64x4xf32>
    %cst_14 = arith.constant dense<0.000000e+00> : vector<64x64xf32>
    %29 = tpu.matmul %26, %27, %cst_14 {dimension_numbers = #tpu.dot_dimension_numbers<[1], [1], [0], [0], [0, 0, 1, 0], [], []>, precision = #tpu.contract_precision<fp32>} : vector<64x4xf32>, vector<64x4xf32>, vector<64x64xf32> -> vector<64x64xf32>
    %cst_15 = arith.constant dense<0xFF800000> : vector<64xf32>
    %30 = vector.multi_reduction <maximumf>, %29, %cst_15 [1] : vector<64x64xf32> to vector<64xf32>
    %31 = vector.shape_cast %30 : vector<64xf32> to vector<64x1xf32>
    %32 = vector.broadcast %31 : vector<64x1xf32> to vector<64x64xf32>
    %33 = arith.subf %29, %32 : vector<64x64xf32>
    %34 = math.exp %33 : vector<64x64xf32>
    %cst_16 = arith.constant dense<0.000000e+00> : vector<64xf32>
    %35 = vector.multi_reduction <add>, %34, %cst_16 [1] : vector<64x64xf32> to vector<64xf32>
    %36 = vector.shape_cast %35 : vector<64xf32> to vector<64x1xf32>
    %cst_17 = arith.constant dense<0.000000e+00> : vector<64x4xf32>
    %37 = tpu.matmul %34, %28, %cst_17 {dimension_numbers = #tpu.dot_dimension_numbers<[1], [0], [0], [1], [0, 0, 1, 1], [], []>, precision = #tpu.contract_precision<fp32>} : vector<64x64xf32>, vector<64x4xf32>, vector<64x4xf32> -> vector<64x4xf32>
    %cst_18 = arith.constant 1.000000e+00 : f32
    %38 = vector.broadcast %cst_18 : f32 to vector<64x1xf32>
    %39 = arith.divf %38, %36 : vector<64x1xf32>
    %40 = vector.broadcast %39 : vector<64x1xf32> to vector<64x4xf32>
    %41 = arith.mulf %37, %40 : vector<64x4xf32>
    %42 = tpu.concatenate %25, %41 in 1 : vector<64x4xf32>, vector<64x4xf32> -> vector<64x8xf32>
    %c0_19 = arith.constant 0 : index
    %c0_20 = arith.constant 0 : index
    %c0_21 = arith.constant 0 : index
    %43 = vector.load %arg4[%c0_19, %c0_20, %c0_21] : memref<1x64x8xf32, #tpu.memory_space<vmem>>, vector<1x64x8xf32>
    %44 = vector.shape_cast %43 : vector<1x64x8xf32> to vector<64x8xf32>
    %45 = vector.shape_cast %42 : vector<64x8xf32> to vector<1x64x8xf32>
    tpu.vector_store %arg4[%c0_19, %c0_20, %c0_21], %45 {strides = array<i32>} : memref<1x64x8xf32, #tpu.memory_space<vmem>>, vector<1x64x8xf32>,
    %c0_22 = arith.constant 0 : index
    %c0_23 = arith.constant 0 : index
    %c0_24 = arith.constant 0 : index
    %46 = vector.load %arg5[%c0_22, %c0_23, %c0_24] : memref<1x1x8xf32, #tpu.memory_space<vmem>>, vector<1x1x8xf32>
    %47 = vector.shape_cast %46 : vector<1x1x8xf32> to vector<1x8xf32>
    %cst_25 = arith.constant dense<0.000000e+00> : vector<8xf32>
    %48 = vector.multi_reduction <add>, %42, %cst_25 [0] : vector<64x8xf32> to vector<8xf32>
    %49 = vector.shape_cast %48 : vector<8xf32> to vector<1x8xf32>
    %50 = arith.addf %47, %49 : vector<1x8xf32>
    %c0_26 = arith.constant 0 : index
    %c0_27 = arith.constant 0 : index
    %c0_28 = arith.constant 0 : index
    %51 = vector.load %arg5[%c0_26, %c0_27, %c0_28] : memref<1x1x8xf32, #tpu.memory_space<vmem>>, vector<1x1x8xf32>
    %52 = vector.shape_cast %51 : vector<1x1x8xf32> to vector<1x8xf32>
    %53 = vector.shape_cast %50 : vector<1x8xf32> to vector<1x1x8xf32>
    tpu.vector_store %arg5[%c0_26, %c0_27, %c0_28], %53 {strides = array<i32>} : memref<1x1x8xf32, #tpu.memory_space<vmem>>, vector<1x1x8xf32>,
    %c0_29 = arith.constant 0 : index
    %c0_30 = arith.constant 0 : index
    %c0_31 = arith.constant 0 : index
    %54 = vector.load %arg6[%c0_29, %c0_30, %c0_31] : memref<1x1x8xf32, #tpu.memory_space<vmem>>, vector<1x1x8xf32>
    %55 = vector.shape_cast %54 : vector<1x1x8xf32> to vector<1x8xf32>
    %56 = arith.mulf %42, %42 : vector<64x8xf32>
    %cst_32 = arith.constant dense<0.000000e+00> : vector<8xf32>
    %57 = vector.multi_reduction <add>, %56, %cst_32 [0] : vector<64x8xf32> to vector<8xf32>
    %58 = vector.shape_cast %57 : vector<8xf32> to vector<1x8xf32>
    %59 = arith.addf %55, %58 : vector<1x8xf32>
    %c0_33 = arith.constant 0 : index
    %c0_34 = arith.constant 0 : index
    %c0_35 = arith.constant 0 : index
    %60 = vector.load %arg6[%c0_33, %c0_34, %c0_35] : memref<1x1x8xf32, #tpu.memory_space<vmem>>, vector<1x1x8xf32>
    %61 = vector.shape_cast %60 : vector<1x1x8xf32> to vector<1x8xf32>
    %62 = vector.shape_cast %59 : vector<1x8xf32> to vector<1x1x8xf32>
    tpu.vector_store %arg6[%c0_33, %c0_34, %c0_35], %62 {strides = array<i32>} : memref<1x1x8xf32, #tpu.memory_space<vmem>>, vector<1x1x8xf32>,
    return
  }
  func.func @transform_0(%arg0: i32, %arg1: i32) -> (i32, i32, i32) {
    %c0_i32 = arith.constant 0 : i32
    %c0_i32_0 = arith.constant 0 : i32
    %c0_i32_1 = arith.constant 0 : i32
    return %arg0, %c0_i32, %c0_i32_0 : i32, i32, i32
  }
  func.func @transform_1(%arg0: i32, %arg1: i32) -> (i32, i32) {
    %c0_i32 = arith.constant 0 : i32
    %c0_i32_0 = arith.constant 0 : i32
    %c0_i32_1 = arith.constant 0 : i32
    return %c0_i32, %c0_i32_0 : i32, i32
  }
  func.func @transform_2(%arg0: i32, %arg1: i32) -> (i32, i32, i32) {
    %c0_i32 = arith.constant 0 : i32
    %c0_i32_0 = arith.constant 0 : i32
    return %arg0, %arg1, %c0_i32 : i32, i32, i32
  }
  func.func @transform_3(%arg0: i32, %arg1: i32) -> (i32, i32, i32) {
    %c0_i32 = arith.constant 0 : i32
    %c0_i32_0 = arith.constant 0 : i32
    %c0_i32_1 = arith.constant 0 : i32
    return %arg0, %c0_i32, %c0_i32_0 : i32, i32, i32
  }
  func.func @transform_4(%arg0: i32, %arg1: i32) -> (i32, i32, i32) {
    %c0_i32 = arith.constant 0 : i32
    %c0_i32_0 = arith.constant 0 : i32
    %c0_i32_1 = arith.constant 0 : i32
    return %arg0, %c0_i32, %c0_i32_0 : i32, i32, i32
  }
}

</mosaic_0001>

<llo_original>
// kernel: tpu_custom_call.1
$region0: #{tpu_custom_call.1}
  #allocation0 [shape = 'u32[]', space=smem, size = 0x4, offset = 0x4, fixed_abs, tag = 'smem constant byte address 0x4 - core index']
  #allocation1 [shape = 'u32[72,128]{1,0:T(1,128)}', space=vmem, size = 0x9000, scoped, tag = 'internal scratch']
  #allocation2 [shape = 'f32[64,16]{1,0:T(8,128)}', space=vmem, size = 0x8000, scoped, tag = 'scratch operand']
  %s0 = inlined_call_operand.vmem [shape: f32[2,64,8], index: 0, kind: input, shape index: {}]
  %s1 = inlined_call_operand.vmem [shape: f32[8,24], index: 1, kind: input, shape index: {}]
  %s2 = inlined_call_operand.vmem [shape: f32[2,64,8], index: 2, kind: output, shape index: {0}]
  %s3 = inlined_call_operand.hbm [shape: f32[2,1,8], index: 3, kind: output, shape index: {1}]
  %s4 = inlined_call_operand.hbm [shape: f32[2,1,8], index: 4, kind: output, shape index: {2}]
  %5 = xla_tuple %s2, %s3, %s4
  %s6 = sld [smem:[#allocation0]]
  $region61: #{tpu_custom_call.1} parent=0
    _
  %s8 = ssub.s32 1, %s6
  %s9 = scalar_select 0, %s8, %s6
  $region1: #{tpu_custom_call.1} parent=0
    #allocation3 [shape = 'u8[1024]{0}', space=vmem, size = 0x400, scoped, tag = 'output window, operand 1']
    #allocation4 [shape = 's32[2]{0}', space=sflag, size = 0x8, scoped, tag = 'scoped memory for tpu_custom_call.1']
    #allocation5 [shape = 'u8[1024]{0}', space=vmem, size = 0x400, scoped, tag = 'output window, operand 2']
    #allocation6 [shape = 's32[2]{0}', space=sflag, size = 0x8, scoped, tag = 'scoped memory for tpu_custom_call.1']
    %10 = vsyncpa [#allocation4], 0
    %s11 = scalar_lea.sflag [#allocation4], 1
    %12 = vsyncpa %s11, 0
    %13 = vsyncpa [#allocation6], 0
    %s14 = scalar_lea.sflag [#allocation6], 1
    %15 = vsyncpa %s14, 0
    loop: start=0, step=1, limit=4
    $region2: #{tpu_custom_call.1} parent=1 // loop_pre_header
      _
    $region3: #{tpu_custom_call.1} parent=1 // loop_header
      %s17 = sphi 0, %s21
      %p18 = scmp.ge.s32.totalorder %s17, 4
      %s24 = sphi 0, %s36
      %s25 = sphi 0, %s32
      %s26 = sphi 0, %s24
      %s27 = sphi 0, %s25
      %s28 = sphi 0, %s26
      %s29 = sphi 0, %s27
      %s39 = sphi 0, %s41
      %s42 = sphi 0, %s39
      %s43 = sphi 0, %s42
      %s59 = sphi 0, %s43
      %s63 = sphi 0, %s63
      %s65 = sphi 0, %s63
      %s66 = sphi 0, %s65
      %s80 = sphi 0, %s66
      %s88 = sphi 0, %s90
      %s91 = sphi 0, %s88
      %s92 = sphi 0, %s91
      %s108 = sphi 0, %s92
      %s114 = sphi 0, %s116
      %s117 = sphi 0, %s114
      %s118 = sphi 0, %s117
      %s134 = sphi 0, %s118
      %s140 = sphi 0, %s142
      %s143 = sphi 0, %s140
      %s144 = sphi 0, %s143
      %s160 = sphi 0, %s144
    $region4: #{tpu_custom_call.1} parent=1 // loop_header_branch
      %20 = sbr.rel (%p18) target = $region8
    $region5: #{tpu_custom_call.1} parent=1 // loop_body
      %s22 = ssub.s32 %s17, 1
      %s23 = ssub.s32 %s17, 2
      %s30 = sadd.s32 1, %s25
      %p31 = scmp.ge.s32.totalorder %s30, 1
      %s32 = scalar_select %p31, 0, %s30
      %s33 = sadd.s32 1, %s24
      %s34 = scalar_select %p31, %s33, %s24
      %p35 = scmp.ge.s32.totalorder %s34, 2
      %s36 = scalar_select %p35, 0, %s34
      %s37 = ssub.s32 %s24, %s36
      %p38 = scmp.eq.s32.totalorder %s37, 0
      %s40 = sadd.s32 %s39, 1
      %s41 = scalar_select %p38, %s39, %s40
      %p44 = pneg %p38
      %p45 = scmp.eq.s32.totalorder %s17, 1
      %p46 = por %p44, %p45
      %p47 = scmp.ne.s32.totalorder %s39, %s42
      %p48 = scmp.eq.s32.totalorder %s17, 0
      %p49 = por %p47, %p48
      %p50 = scmp.ne.s32.totalorder %s39, %s42
      %p51 = scmp.eq.s32.totalorder %s22, 1
      %p52 = por %p50, %p51
      %p53 = scmp.ne.s32.totalorder %s42, %s43
      %p54 = scmp.eq.s32.totalorder %s22, 0
      %p55 = por %p53, %p54
      %p56 = scmp.ne.s32.totalorder %s42, %s43
      %p57 = scmp.eq.s32.totalorder %s23, 1
      %p58 = por %p56, %p57
      %p60 = scmp.ne.s32.totalorder %s43, %s59
      %p61 = scmp.eq.s32.totalorder %s23, 0
      %p62 = por %p60, %p61
      %s64 = sadd.s32 %s63, 1
      %p67 = scmp.eq.s32.totalorder %s17, 1
      %p68 = scmp.ne.s32.totalorder %s63, %s65
      %p69 = scmp.eq.s32.totalorder %s17, 0
      %p70 = por %p68, %p69
      %p71 = scmp.ne.s32.totalorder %s63, %s65
      %p72 = scmp.eq.s32.totalorder %s22, 1
      %p73 = por %p71, %p72
      %p74 = scmp.ne.s32.totalorder %s65, %s66
      %p75 = scmp.eq.s32.totalorder %s22, 0
      %p76 = por %p74, %p75
      %p77 = scmp.ne.s32.totalorder %s65, %s66
      %p78 = scmp.eq.s32.totalorder %s23, 1
      %p79 = por %p77, %p78
      %p81 = scmp.ne.s32.totalorder %s66, %s80
      %p82 = scmp.eq.s32.totalorder %s23, 0
      %p83 = por %p81, %p82
      %s84 = ssub.s32 %s24, %s36
      %s85 = ssub.s32 %s25, %s32
      %s86 = sor.u32 %s84, %s85
      %p87 = scmp.eq.s32.totalorder %s86, 0
      %s89 = sadd.s32 %s88, 1
      %s90 = scalar_select %p87, %s88, %s89
      %p93 = pneg %p87
      %p94 = scmp.eq.s32.totalorder %s17, 1
      %p95 = por %p93, %p94
      %p96 = scmp.ne.s32.totalorder %s88, %s91
      %p97 = scmp.eq.s32.totalorder %s17, 0
      %p98 = por %p96, %p97
      %p99 = scmp.ne.s32.totalorder %s88, %s91
      %p100 = scmp.eq.s32.totalorder %s22, 1
      %p101 = por %p99, %p100
      %p102 = scmp.ne.s32.totalorder %s91, %s92
      %p103 = scmp.eq.s32.totalorder %s22, 0
      %p104 = por %p102, %p103
      %p105 = scmp.ne.s32.totalorder %s91, %s92
      %p106 = scmp.eq.s32.totalorder %s23, 1
      %p107 = por %p105, %p106
      %p109 = scmp.ne.s32.totalorder %s92, %s108
      %p110 = scmp.eq.s32.totalorder %s23, 0
      %p111 = por %p109, %p110
      %s112 = ssub.s32 %s24, %s36
      %p113 = scmp.eq.s32.totalorder %s112, 0
      %s115 = sadd.s32 %s114, 1
      %s116 = scalar_select %p113, %s114, %s115
      %p119 = pneg %p113
      %p120 = scmp.eq.s32.totalorder %s17, 1
      %p121 = por %p119, %p120
      %p122 = scmp.ne.s32.totalorder %s114, %s117
      %p123 = scmp.eq.s32.totalorder %s17, 0
      %p124 = por %p122, %p123
      %p125 = scmp.ne.s32.totalorder %s114, %s117
      %p126 = scmp.eq.s32.totalorder %s22, 1
      %p127 = por %p125, %p126
      %p128 = scmp.ne.s32.totalorder %s117, %s118
      %p129 = scmp.eq.s32.totalorder %s22, 0
      %p130 = por %p128, %p129
      %p131 = scmp.ne.s32.totalorder %s117, %s118
      %p132 = scmp.eq.s32.totalorder %s23, 1
      %p133 = por %p131, %p132
      %p135 = scmp.ne.s32.totalorder %s118, %s134
      %p136 = scmp.eq.s32.totalorder %s23, 0
      %p137 = por %p135, %p136
      %s138 = ssub.s32 %s24, %s36
      %p139 = scmp.eq.s32.totalorder %s138, 0
      %s141 = sadd.s32 %s140, 1
      %s142 = scalar_select %p139, %s140, %s141
      %p145 = pneg %p139
      %p146 = scmp.eq.s32.totalorder %s17, 1
      %p147 = por %p145, %p146
      %p148 = scmp.ne.s32.totalorder %s140, %s143
      %p149 = scmp.eq.s32.totalorder %s17, 0
      %p150 = por %p148, %p149
      %p151 = scmp.ne.s32.totalorder %s140, %s143
      %p152 = scmp.eq.s32.totalorder %s22, 1
      %p153 = por %p151, %p152
      %p154 = scmp.ne.s32.totalorder %s143, %s144
      %p155 = scmp.eq.s32.totalorder %s22, 0
      %p156 = por %p154, %p155
      %p157 = scmp.ne.s32.totalorder %s143, %s144
      %p158 = scmp.eq.s32.totalorder %s23, 1
      %p159 = por %p157, %p158
      %p161 = scmp.ne.s32.totalorder %s144, %s160
      %p162 = scmp.eq.s32.totalorder %s23, 0
      %p163 = por %p161, %p162
      %p164 = scmp.le.s32.totalorder 1, %s17
      %p165 = scmp.lt.s32.totalorder %s17, 3
      %p166 = pnand %p164, %p165
      %p167 = pneg %p166
      // Predicated region
      $region9: #{tpu_custom_call.1} parent=5 // pred_check
        _
      $region10: #{tpu_custom_call.1} parent=5 // pred_check_branch
        %169 = sbr.rel (%p166) target = $region12
      $region11: #{tpu_custom_call.1} parent=5 // pred_region
        %s170 = ssub.s32 %s17, 1
        // Predicated region
        $region13: #{tpu_custom_call.1} parent=11 // pred_check
          %p171 = pneg %p55
        $region14: #{tpu_custom_call.1} parent=11 // pred_check_branch
          %173 = sbr.rel (%p171) target = $region16
        $region15: #{tpu_custom_call.1} parent=11 // pred_region
          %p174 = scmp.lt.s32.totalorder %s26, 1
          %s175 = scalar_select %p174, %s26, 1
          %s176 = smul.addr %s175, 8
          %s177 = smul.addr %s176, 8
          %s178 = scalar_lea.vmem %s0, %s177
        $region16: #{tpu_custom_call.1} parent=11 // pred_fallthru
          _
        // Predicated region
        $region17: #{tpu_custom_call.1} parent=11 // pred_check
          %p179 = pneg %p76
        $region18: #{tpu_custom_call.1} parent=11 // pred_check_branch
          %181 = sbr.rel (%p179) target = $region20
        $region19: #{tpu_custom_call.1} parent=11 // pred_region
          _
        $region20: #{tpu_custom_call.1} parent=11 // pred_fallthru
          _
      $region12: #{tpu_custom_call.1} parent=5 // pred_fallthru
        _
      %p182 = scmp.lt.s32.totalorder %s17, 2
      // Predicated region
      $region21: #{tpu_custom_call.1} parent=5 // pred_check
        %p183 = pneg %p182
      $region22: #{tpu_custom_call.1} parent=5 // pred_check_branch
        %185 = sbr.rel (%p183) target = $region24
      $region23: #{tpu_custom_call.1} parent=5 // pred_region
        _
      $region24: #{tpu_custom_call.1} parent=5 // pred_fallthru
        _
      %p186 = scmp.le.s32.totalorder 1, %s17
      %p187 = scmp.lt.s32.totalorder %s17, 3
      %p188 = pnand %p186, %p187
      %p189 = pneg %p188
      // Predicated region
      $region25: #{tpu_custom_call.1} parent=5 // pred_check
        _
      $region26: #{tpu_custom_call.1} parent=5 // pred_check_branch
        %191 = sbr.rel (%p188) target = $region28
      $region27: #{tpu_custom_call.1} parent=5 // pred_region
        %s192 = ssub.s32 %s17, 1
        %p193 = scmp.lt.s32.totalorder %s26, 1
        %s194 = scalar_select %p193, %s26, 1
        %s195 = smul.addr %s194, 8
        %s196 = smul.addr %s195, 8
        %s197 = scalar_lea.vmem %s0, %s196
        %p198 = pneg %p55
        %p199 = pneg %p52
        %p200 = pneg %p76
        %p201 = pneg %p73
        %p202 = pneg %p104
        %p203 = pneg %p101
        %s204 = smul.u32 8, %s27
        %p205 = scmp.lt.s32.totalorder %s26, 1
        %s206 = scalar_select %p205, %s26, 1
        %p207 = scmp.lt.s32.totalorder %s204, 7
        %s208 = scalar_select %p207, %s204, 7
        %s209 = smul.addr %s206, 8
        %s210 = sadd.s32 %s208, %s209
        %s211 = smul.addr %s210, 8
        %s212 = scalar_lea.vmem %s2, %s211
        %p213 = pneg %p130
        %p214 = pneg %p127
        %s215 = sand.u32 %s117, 1
        %s216 = scalar_lea.sflag [#allocation4], %s215
        %s217 = sand.u32 %s117, 1
        %s218 = scalar_lea.vmem [#allocation3], %s217
        %p219 = pneg %p156
        %p220 = pneg %p153
        %s221 = sand.u32 %s143, 1
        %s222 = scalar_lea.sflag [#allocation6], %s221
        %s223 = sand.u32 %s143, 1
        %s224 = scalar_lea.vmem [#allocation5], %s223
        %p225 = scmp.lt.s32.totalorder %s26, 1
        %s226 = scalar_select %p225, %s26, 1
        %s227 = smul.addr %s226, 8
        %s228 = smul.addr %s227, 8
        %s229 = scalar_lea.vmem %s0, %s228
        %s230 = smul.u32 8, %s27
        %p231 = scmp.lt.s32.totalorder %s26, 1
        %s232 = scalar_select %p231, %s26, 1
        %p233 = scmp.lt.s32.totalorder %s230, 7
        %s234 = scalar_select %p233, %s230, 7
        %s235 = smul.addr %s232, 8
        %s236 = sadd.s32 %s234, %s235
        %s237 = smul.addr %s236, 8
        %s238 = scalar_lea.vmem %s2, %s237
        %s239 = smul.u32 8, %s27
        %p240 = scmp.eq.s32.totalorder %s27, 0
        // Predicated region
        $region29: #{tpu_custom_call.1} parent=27 // pred_check
          %p241 = pneg %p240
        $region30: #{tpu_custom_call.1} parent=27 // pred_check_branch
          %243 = sbr.rel (%p241) target = $region32
        $region31: #{tpu_custom_call.1} parent=27 // pred_region
          %v244 = vld [vmem:[%s229] sm:$0xff]
          %v245 = vld [vmem:[%s229 + $0x8] sm:$0xff]
          %v246 = vld [vmem:[%s229 + $0x10] sm:$0xff]
          %v247 = vld [vmem:[%s229 + $0x18] sm:$0xff]
          %v248 = vld [vmem:[%s229 + $0x20] sm:$0xff]
          %v249 = vld [vmem:[%s229 + $0x28] sm:$0xff]
          %v250 = vld [vmem:[%s229 + $0x30] sm:$0xff]
          %v251 = vld [vmem:[%s229 + $0x38] sm:$0xff]
          %v252 = vld [vmem:[%s1] sm:$0xff]
          %254 = vrot.lane.b32.xlu0 %v252, 120
          %v255 = vpop.permute.xlu0 %254
          %vm257 = vcmask 64512
          %v259 = vsel %vm257, %v244, 0
          %v262 = vsel %vm257, %v245, 0
          %v265 = vsel %vm257, %v246, 0
          %v268 = vsel %vm257, %v247, 0
          %v271 = vsel %vm257, %v248, 0
          %v274 = vsel %vm257, %v249, 0
          %v277 = vsel %vm257, %v250, 0
          %v280 = vsel %vm257, %v251, 0
          %282 = vmatpush.msra.mxu0 0.0
          %283 = vmatpush.msra.mxu0 0.0
          %284 = vmatpush.msra.mxu0 0.0
          %285 = vmatpush.msra.mxu0 0.0
          %286 = vmatpush.msra.mxu0 0.0
          %287 = vmatpush.msra.mxu0 0.0
          %288 = vmatpush.msra.mxu0 0.0
          %289 = vmatpush.msra.mxu0 0.0
          %290 = vmatpush.msra.mxu0 0.0
          %291 = vmatpush.msra.mxu0 0.0
          %292 = vmatpush.msra.mxu0 0.0
          %293 = vmatpush.msra.mxu0 0.0
          %294 = vmatpush.msra.mxu0 0.0
          %295 = vmatpush.msra.mxu0 0.0
          %296 = vmatpush.msra.mxu0 0.0
          %v297 = vand.u32 %v255, 4294901760
          %298 = vmatpush.msra.mxu0 %v297
          %v299 = vand.u32 %v259, 4294901760
          %v300 = vsub.f32 %v259, %v299
          %v301 = vand.u32 %v300, 4294901760
          %v302 = vsub.f32 %v300, %v301
          %v303 = vand.u32 %v302, 4294901760
          %304 = vmatmul.f32.gmra.mxu0 %v303
          %v305 = vpop.f32.mrf.mxu0
          %v306 = vadd.f32 0.0, %v305
          %v307 = vand.u32 %v262, 4294901760
          %v308 = vsub.f32 %v262, %v307
          %v309 = vand.u32 %v308, 4294901760
          %v310 = vsub.f32 %v308, %v309
          %v311 = vand.u32 %v310, 4294901760
          %312 = vmatmul.f32.gmra.mxu0 %v311
          %v313 = vpop.f32.mrf.mxu0
          %v314 = vadd.f32 0.0, %v313
          %v315 = vand.u32 %v265, 4294901760
          %v316 = vsub.f32 %v265, %v315
          %v317 = vand.u32 %v316, 4294901760
          %v318 = vsub.f32 %v316, %v317
          %v319 = vand.u32 %v318, 4294901760
          %320 = vmatmul.f32.gmra.mxu0 %v319
          %v321 = vpop.f32.mrf.mxu0
          %v322 = vadd.f32 0.0, %v321
          %v323 = vand.u32 %v268, 4294901760
          %v324 = vsub.f32 %v268, %v323
          %v325 = vand.u32 %v324, 4294901760
          %v326 = vsub.f32 %v324, %v325
          %v327 = vand.u32 %v326, 4294901760
          %328 = vmatmul.f32.gmra.mxu0 %v327
          %v329 = vpop.f32.mrf.mxu0
          %v330 = vadd.f32 0.0, %v329
          %v331 = vand.u32 %v271, 4294901760
          %v332 = vsub.f32 %v271, %v331
          %v333 = vand.u32 %v332, 4294901760
          %v334 = vsub.f32 %v332, %v333
          %v335 = vand.u32 %v334, 4294901760
          %336 = vmatmul.f32.gmra.mxu0 %v335
          %v337 = vpop.f32.mrf.mxu0
          %v338 = vadd.f32 0.0, %v337
          %v339 = vand.u32 %v274, 4294901760
          %v340 = vsub.f32 %v274, %v339
          %v341 = vand.u32 %v340, 4294901760
          %v342 = vsub.f32 %v340, %v341
          %v343 = vand.u32 %v342, 4294901760
          %344 = vmatmul.f32.gmra.mxu0 %v343
          %v345 = vpop.f32.mrf.mxu0
          %v346 = vadd.f32 0.0, %v345
          %v347 = vand.u32 %v277, 4294901760
          %v348 = vsub.f32 %v277, %v347
          %v349 = vand.u32 %v348, 4294901760
          %v350 = vsub.f32 %v348, %v349
          %v351 = vand.u32 %v350, 4294901760
          %352 = vmatmul.f32.gmra.mxu0 %v351
          %v353 = vpop.f32.mrf.mxu0
          %v354 = vadd.f32 0.0, %v353
          %v355 = vand.u32 %v280, 4294901760
          %v356 = vsub.f32 %v280, %v355
          %v357 = vand.u32 %v356, 4294901760
          %v358 = vsub.f32 %v356, %v357
          %v359 = vand.u32 %v358, 4294901760
          %360 = vmatmul.f32.gmra.mxu0 %v359
          %v361 = vpop.f32.mrf.mxu0
          %v362 = vadd.f32 0.0, %v361
          %363 = vdwg.mxu0
          %364 = vmatpush.msra.mxu0 0.0
          %365 = vmatpush.msra.mxu0 0.0
          %366 = vmatpush.msra.mxu0 0.0
          %367 = vmatpush.msra.mxu0 0.0
          %368 = vmatpush.msra.mxu0 0.0
          %369 = vmatpush.msra.mxu0 0.0
          %370 = vmatpush.msra.mxu0 0.0
          %371 = vmatpush.msra.mxu0 0.0
          %372 = vmatpush.msra.mxu0 0.0
          %373 = vmatpush.msra.mxu0 0.0
          %374 = vmatpush.msra.mxu0 0.0
          %375 = vmatpush.msra.mxu0 0.0
          %376 = vmatpush.msra.mxu0 0.0
          %377 = vmatpush.msra.mxu0 0.0
          %378 = vmatpush.msra.mxu0 0.0
          %v379 = vand.u32 %v255, 4294901760
          %v380 = vsub.f32 %v255, %v379
          %v381 = vand.u32 %v380, 4294901760
          %v382 = vsub.f32 %v380, %v381
          %v383 = vand.u32 %v382, 4294901760
          %384 = vmatpush.msra.mxu0 %v383
          %v385 = vand.u32 %v259, 4294901760
          %386 = vmatmul.f32.gmra.mxu0 %v385
          %v387 = vpop.f32.mrf.mxu0
          %v388 = vadd.f32 %v306, %v387
          %v389 = vand.u32 %v262, 4294901760
          %390 = vmatmul.f32.gmra.mxu0 %v389
          %v391 = vpop.f32.mrf.mxu0
          %v392 = vadd.f32 %v314, %v391
          %v393 = vand.u32 %v265, 4294901760
          %394 = vmatmul.f32.gmra.mxu0 %v393
          %v395 = vpop.f32.mrf.mxu0
          %v396 = vadd.f32 %v322, %v395
          %v397 = vand.u32 %v268, 4294901760
          %398 = vmatmul.f32.gmra.mxu0 %v397
          %v399 = vpop.f32.mrf.mxu0
          %v400 = vadd.f32 %v330, %v399
          %v401 = vand.u32 %v271, 4294901760
          %402 = vmatmul.f32.gmra.mxu0 %v401
          %v403 = vpop.f32.mrf.mxu0
          %v404 = vadd.f32 %v338, %v403
          %v405 = vand.u32 %v274, 4294901760
          %406 = vmatmul.f32.gmra.mxu0 %v405
          %v407 = vpop.f32.mrf.mxu0
          %v408 = vadd.f32 %v346, %v407
          %v409 = vand.u32 %v277, 4294901760
          %410 = vmatmul.f32.gmra.mxu0 %v409
          %v411 = vpop.f32.mrf.mxu0
          %v412 = vadd.f32 %v354, %v411
          %v413 = vand.u32 %v280, 4294901760
          %414 = vmatmul.f32.gmra.mxu0 %v413
          %v415 = vpop.f32.mrf.mxu0
          %v416 = vadd.f32 %v362, %v415
          %417 = vdwg.mxu0
          %418 = vmatpush.msra.mxu0 0.0
          %419 = vmatpush.msra.mxu0 0.0
          %420 = vmatpush.msra.mxu0 0.0
          %421 = vmatpush.msra.mxu0 0.0
          %422 = vmatpush.msra.mxu0 0.0
          %423 = vmatpush.msra.mxu0 0.0
          %424 = vmatpush.msra.mxu0 0.0
          %425 = vmatpush.msra.mxu0 0.0
          %426 = vmatpush.msra.mxu0 0.0
          %427 = vmatpush.msra.mxu0 0.0
          %428 = vmatpush.msra.mxu0 0.0
          %429 = vmatpush.msra.mxu0 0.0
          %430 = vmatpush.msra.mxu0 0.0
          %431 = vmatpush.msra.mxu0 0.0
          %432 = vmatpush.msra.mxu0 0.0
          %v433 = vand.u32 %v255, 4294901760
          %v434 = vsub.f32 %v255, %v433
          %435 = vmatpush.msra.mxu0 %v434
          %v436 = vand.u32 %v259, 4294901760
          %v437 = vsub.f32 %v259, %v436
          %438 = vmatmul.f32.gmra.mxu0 %v437
          %v439 = vpop.f32.mrf.mxu0
          %v440 = vadd.f32 %v388, %v439
          %v441 = vand.u32 %v262, 4294901760
          %v442 = vsub.f32 %v262, %v441
          %443 = vmatmul.f32.gmra.mxu0 %v442
          %v444 = vpop.f32.mrf.mxu0
          %v445 = vadd.f32 %v392, %v444
          %v446 = vand.u32 %v265, 4294901760
          %v447 = vsub.f32 %v265, %v446
          %448 = vmatmul.f32.gmra.mxu0 %v447
          %v449 = vpop.f32.mrf.mxu0
          %v450 = vadd.f32 %v396, %v449
          %v451 = vand.u32 %v268, 4294901760
          %v452 = vsub.f32 %v268, %v451
          %453 = vmatmul.f32.gmra.mxu0 %v452
          %v454 = vpop.f32.mrf.mxu0
          %v455 = vadd.f32 %v400, %v454
          %v456 = vand.u32 %v271, 4294901760
          %v457 = vsub.f32 %v271, %v456
          %458 = vmatmul.f32.gmra.mxu0 %v457
          %v459 = vpop.f32.mrf.mxu0
          %v460 = vadd.f32 %v404, %v459
          %v461 = vand.u32 %v274, 4294901760
          %v462 = vsub.f32 %v274, %v461
          %463 = vmatmul.f32.gmra.mxu0 %v462
          %v464 = vpop.f32.mrf.mxu0
          %v465 = vadd.f32 %v408, %v464
          %v466 = vand.u32 %v277, 4294901760
          %v467 = vsub.f32 %v277, %v466
          %468 = vmatmul.f32.gmra.mxu0 %v467
          %v469 = vpop.f32.mrf.mxu0
          %v470 = vadd.f32 %v412, %v469
          %v471 = vand.u32 %v280, 4294901760
          %v472 = vsub.f32 %v280, %v471
          %473 = vmatmul.f32.gmra.mxu0 %v472
          %v474 = vpop.f32.mrf.mxu0
          %v475 = vadd.f32 %v416, %v474
          %476 = vdwg.mxu0
          %477 = vmatpush.msra.mxu0 0.0
          %478 = vmatpush.msra.mxu0 0.0
          %479 = vmatpush.msra.mxu0 0.0
          %480 = vmatpush.msra.mxu0 0.0
          %481 = vmatpush.msra.mxu0 0.0
          %482 = vmatpush.msra.mxu0 0.0
          %483 = vmatpush.msra.mxu0 0.0
          %484 = vmatpush.msra.mxu0 0.0
          %485 = vmatpush.msra.mxu0 0.0
          %486 = vmatpush.msra.mxu0 0.0
          %487 = vmatpush.msra.mxu0 0.0
          %488 = vmatpush.msra.mxu0 0.0
          %489 = vmatpush.msra.mxu0 0.0
          %490 = vmatpush.msra.mxu0 0.0
          %491 = vmatpush.msra.mxu0 0.0
          %v492 = vand.u32 %v255, 4294901760
          %493 = vmatpush.msra.mxu0 %v492
          %v494 = vand.u32 %v259, 4294901760
          %v495 = vsub.f32 %v259, %v494
          %v496 = vand.u32 %v495, 4294901760
          %497 = vmatmul.f32.gmra.mxu0 %v496
          %v498 = vpop.f32.mrf.mxu0
          %v499 = vadd.f32 %v440, %v498
          %v500 = vand.u32 %v262, 4294901760
          %v501 = vsub.f32 %v262, %v500
          %v502 = vand.u32 %v501, 4294901760
          %503 = vmatmul.f32.gmra.mxu0 %v502
          %v504 = vpop.f32.mrf.mxu0
          %v505 = vadd.f32 %v445, %v504
          %v506 = vand.u32 %v265, 4294901760
          %v507 = vsub.f32 %v265, %v506
          %v508 = vand.u32 %v507, 4294901760
          %509 = vmatmul.f32.gmra.mxu0 %v508
          %v510 = vpop.f32.mrf.mxu0
          %v511 = vadd.f32 %v450, %v510
          %v512 = vand.u32 %v268, 4294901760
          %v513 = vsub.f32 %v268, %v512
          %v514 = vand.u32 %v513, 4294901760
          %515 = vmatmul.f32.gmra.mxu0 %v514
          %v516 = vpop.f32.mrf.mxu0
          %v517 = vadd.f32 %v455, %v516
          %v518 = vand.u32 %v271, 4294901760
          %v519 = vsub.f32 %v271, %v518
          %v520 = vand.u32 %v519, 4294901760
          %521 = vmatmul.f32.gmra.mxu0 %v520
          %v522 = vpop.f32.mrf.mxu0
          %v523 = vadd.f32 %v460, %v522
          %v524 = vand.u32 %v274, 4294901760
          %v525 = vsub.f32 %v274, %v524
          %v526 = vand.u32 %v525, 4294901760
          %527 = vmatmul.f32.gmra.mxu0 %v526
          %v528 = vpop.f32.mrf.mxu0
          %v529 = vadd.f32 %v465, %v528
          %v530 = vand.u32 %v277, 4294901760
          %v531 = vsub.f32 %v277, %v530
          %v532 = vand.u32 %v531, 4294901760
          %533 = vmatmul.f32.gmra.mxu0 %v532
          %v534 = vpop.f32.mrf.mxu0
          %v535 = vadd.f32 %v470, %v534
          %v536 = vand.u32 %v280, 4294901760
          %v537 = vsub.f32 %v280, %v536
          %v538 = vand.u32 %v537, 4294901760
          %539 = vmatmul.f32.gmra.mxu0 %v538
          %v540 = vpop.f32.mrf.mxu0
          %v541 = vadd.f32 %v475, %v540
          %542 = vdwg.mxu0
          %543 = vmatpush.msra.mxu0 0.0
          %544 = vmatpush.msra.mxu0 0.0
          %545 = vmatpush.msra.mxu0 0.0
          %546 = vmatpush.msra.mxu0 0.0
          %547 = vmatpush.msra.mxu0 0.0
          %548 = vmatpush.msra.mxu0 0.0
          %549 = vmatpush.msra.mxu0 0.0
          %550 = vmatpush.msra.mxu0 0.0
          %551 = vmatpush.msra.mxu0 0.0
          %552 = vmatpush.msra.mxu0 0.0
          %553 = vmatpush.msra.mxu0 0.0
          %554 = vmatpush.msra.mxu0 0.0
          %555 = vmatpush.msra.mxu0 0.0
          %556 = vmatpush.msra.mxu0 0.0
          %557 = vmatpush.msra.mxu0 0.0
          %v558 = vand.u32 %v255, 4294901760
          %v559 = vsub.f32 %v255, %v558
          %v560 = vand.u32 %v559, 4294901760
          %561 = vmatpush.msra.mxu0 %v560
          %v562 = vand.u32 %v259, 4294901760
          %563 = vmatmul.f32.gmra.mxu0 %v562
          %v564 = vpop.f32.mrf.mxu0
          %v565 = vadd.f32 %v499, %v564
          %v566 = vand.u32 %v262, 4294901760
          %567 = vmatmul.f32.gmra.mxu0 %v566
          %v568 = vpop.f32.mrf.mxu0
          %v569 = vadd.f32 %v505, %v568
          %v570 = vand.u32 %v265, 4294901760
          %571 = vmatmul.f32.gmra.mxu0 %v570
          %v572 = vpop.f32.mrf.mxu0
          %v573 = vadd.f32 %v511, %v572
          %v574 = vand.u32 %v268, 4294901760
          %575 = vmatmul.f32.gmra.mxu0 %v574
          %v576 = vpop.f32.mrf.mxu0
          %v577 = vadd.f32 %v517, %v576
          %v578 = vand.u32 %v271, 4294901760
          %579 = vmatmul.f32.gmra.mxu0 %v578
          %v580 = vpop.f32.mrf.mxu0
          %v581 = vadd.f32 %v523, %v580
          %v582 = vand.u32 %v274, 4294901760
          %583 = vmatmul.f32.gmra.mxu0 %v582
          %v584 = vpop.f32.mrf.mxu0
          %v585 = vadd.f32 %v529, %v584
          %v586 = vand.u32 %v277, 4294901760
          %587 = vmatmul.f32.gmra.mxu0 %v586
          %v588 = vpop.f32.mrf.mxu0
          %v589 = vadd.f32 %v535, %v588
          %v590 = vand.u32 %v280, 4294901760
          %591 = vmatmul.f32.gmra.mxu0 %v590
          %v592 = vpop.f32.mrf.mxu0
          %v593 = vadd.f32 %v541, %v592
          %594 = vdwg.mxu0
          %595 = vmatpush.msra.mxu0 0.0
          %596 = vmatpush.msra.mxu0 0.0
          %597 = vmatpush.msra.mxu0 0.0
          %598 = vmatpush.msra.mxu0 0.0
          %599 = vmatpush.msra.mxu0 0.0
          %600 = vmatpush.msra.mxu0 0.0
          %601 = vmatpush.msra.mxu0 0.0
          %602 = vmatpush.msra.mxu0 0.0
          %603 = vmatpush.msra.mxu0 0.0
          %604 = vmatpush.msra.mxu0 0.0
          %605 = vmatpush.msra.mxu0 0.0
          %606 = vmatpush.msra.mxu0 0.0
          %607 = vmatpush.msra.mxu0 0.0
          %608 = vmatpush.msra.mxu0 0.0
          %609 = vmatpush.msra.mxu0 0.0
          %v610 = vand.u32 %v255, 4294901760
          %611 = vmatpush.msra.mxu0 %v610
          %v612 = vand.u32 %v259, 4294901760
          %613 = vmatmul.f32.gmra.mxu0 %v612
          %v614 = vpop.f32.mrf.mxu0
          %v615 = vadd.f32 %v565, %v614
          %v616 = vand.u32 %v262, 4294901760
          %617 = vmatmul.f32.gmra.mxu0 %v616
          %v618 = vpop.f32.mrf.mxu0
          %v619 = vadd.f32 %v569, %v618
          %v620 = vand.u32 %v265, 4294901760
          %621 = vmatmul.f32.gmra.mxu0 %v620
          %v622 = vpop.f32.mrf.mxu0
          %v623 = vadd.f32 %v573, %v622
          %v624 = vand.u32 %v268, 4294901760
          %625 = vmatmul.f32.gmra.mxu0 %v624
          %v626 = vpop.f32.mrf.mxu0
          %v627 = vadd.f32 %v577, %v626
          %v628 = vand.u32 %v271, 4294901760
          %629 = vmatmul.f32.gmra.mxu0 %v628
          %v630 = vpop.f32.mrf.mxu0
          %v631 = vadd.f32 %v581, %v630
          %v632 = vand.u32 %v274, 4294901760
          %633 = vmatmul.f32.gmra.mxu0 %v632
          %v634 = vpop.f32.mrf.mxu0
          %v635 = vadd.f32 %v585, %v634
          %v636 = vand.u32 %v277, 4294901760
          %637 = vmatmul.f32.gmra.mxu0 %v636
          %v638 = vpop.f32.mrf.mxu0
          %v639 = vadd.f32 %v589, %v638
          %v640 = vand.u32 %v280, 4294901760
          %641 = vmatmul.f32.gmra.mxu0 %v640
          %v642 = vpop.f32.mrf.mxu0
          %v643 = vadd.f32 %v593, %v642
          %644 = vdwg.mxu0
          %vm645 = vcmask 130048
          %646 = vst.msk [vmem:[#allocation2] sm:$0xff] %vm645, %v615
          %647 = vst.msk [vmem:[#allocation2 + $0x8] sm:$0xff] %vm645, %v619
          %648 = vst.msk [vmem:[#allocation2 + $0x10] sm:$0xff] %vm645, %v623
          %649 = vst.msk [vmem:[#allocation2 + $0x18] sm:$0xff] %vm645, %v627
          %650 = vst.msk [vmem:[#allocation2 + $0x20] sm:$0xff] %vm645, %v631
          %651 = vst.msk [vmem:[#allocation2 + $0x28] sm:$0xff] %vm645, %v635
          %652 = vst.msk [vmem:[#allocation2 + $0x30] sm:$0xff] %vm645, %v639
          %653 = vst.msk [vmem:[#allocation2 + $0x38] sm:$0xff] %vm645, %v643
          %vm654 = vcmask 57344
          %655 = vst.msk [vmem:[%s218] sm:$0x1] %vm654, 0.0
          %656 = vst.msk [vmem:[%s224] sm:$0x1] %vm654, 0.0
        $region32: #{tpu_custom_call.1} parent=27 // pred_fallthru
          _
        %s657 = smul.u32 %s27, 64
        %s658 = scalar_lea.vmem %s229, %s657
        %v659 = vld [vmem:[%s658] sm:$0xff]
        %v660 = vld [vmem:[%s658 + $0x8] sm:$0xff]
        %v661 = vld [vmem:[%s658 + $0x10] sm:$0xff]
        %v662 = vld [vmem:[%s658 + $0x18] sm:$0xff]
        %v663 = vld [vmem:[%s658 + $0x20] sm:$0xff]
        %v664 = vld [vmem:[%s658 + $0x28] sm:$0xff]
        %v665 = vld [vmem:[%s658 + $0x30] sm:$0xff]
        %v666 = vld [vmem:[%s658 + $0x38] sm:$0xff]
        %v667 = vld [vmem:[%s1] sm:$0xff]
        %vm668 = vcmask 64512
        %v670 = vsel %vm668, %v659, 0
        %v673 = vsel %vm668, %v660, 0
        %v676 = vsel %vm668, %v661, 0
        %v679 = vsel %vm668, %v662, 0
        %v682 = vsel %vm668, %v663, 0
        %v685 = vsel %vm668, %v664, 0
        %v688 = vsel %vm668, %v665, 0
        %v691 = vsel %vm668, %v666, 0
        %693 = vmatpush.msra.mxu0 0.0
        %694 = vmatpush.msra.mxu0 0.0
        %695 = vmatpush.msra.mxu0 0.0
        %696 = vmatpush.msra.mxu0 0.0
        %697 = vmatpush.msra.mxu0 0.0
        %698 = vmatpush.msra.mxu0 0.0
        %699 = vmatpush.msra.mxu0 0.0
        %700 = vmatpush.msra.mxu0 0.0
        %701 = vmatpush.msra.mxu0 0.0
        %702 = vmatpush.msra.mxu0 0.0
        %703 = vmatpush.msra.mxu0 0.0
        %704 = vmatpush.msra.mxu0 0.0
        %705 = vmatpush.msra.mxu0 0.0
        %706 = vmatpush.msra.mxu0 0.0
        %707 = vmatpush.msra.mxu0 0.0
        %v708 = vand.u32 %v667, 4294901760
        %709 = vmatpush.msra.mxu0 %v708
        %v710 = vand.u32 %v670, 4294901760
        %v711 = vsub.f32 %v670, %v710
        %v712 = vand.u32 %v711, 4294901760
        %v713 = vsub.f32 %v711, %v712
        %v714 = vand.u32 %v713, 4294901760
        %715 = vmatmul.f32.gmra.mxu0 %v714
        %v716 = vpop.f32.mrf.mxu0
        %v717 = vadd.f32 0.0, %v716
        %v718 = vand.u32 %v673, 4294901760
        %v719 = vsub.f32 %v673, %v718
        %v720 = vand.u32 %v719, 4294901760
        %v721 = vsub.f32 %v719, %v720
        %v722 = vand.u32 %v721, 4294901760
        %723 = vmatmul.f32.gmra.mxu0 %v722
        %v724 = vpop.f32.mrf.mxu0
        %v725 = vadd.f32 0.0, %v724
        %v726 = vand.u32 %v676, 4294901760
        %v727 = vsub.f32 %v676, %v726
        %v728 = vand.u32 %v727, 4294901760
        %v729 = vsub.f32 %v727, %v728
        %v730 = vand.u32 %v729, 4294901760
        %731 = vmatmul.f32.gmra.mxu0 %v730
        %v732 = vpop.f32.mrf.mxu0
        %v733 = vadd.f32 0.0, %v732
        %v734 = vand.u32 %v679, 4294901760
        %v735 = vsub.f32 %v679, %v734
        %v736 = vand.u32 %v735, 4294901760
        %v737 = vsub.f32 %v735, %v736
        %v738 = vand.u32 %v737, 4294901760
        %739 = vmatmul.f32.gmra.mxu0 %v738
        %v740 = vpop.f32.mrf.mxu0
        %v741 = vadd.f32 0.0, %v740
        %v742 = vand.u32 %v682, 4294901760
        %v743 = vsub.f32 %v682, %v742
        %v744 = vand.u32 %v743, 4294901760
        %v745 = vsub.f32 %v743, %v744
        %v746 = vand.u32 %v745, 4294901760
        %747 = vmatmul.f32.gmra.mxu0 %v746
        %v748 = vpop.f32.mrf.mxu0
        %v749 = vadd.f32 0.0, %v748
        %v750 = vand.u32 %v685, 4294901760
        %v751 = vsub.f32 %v685, %v750
        %v752 = vand.u32 %v751, 4294901760
        %v753 = vsub.f32 %v751, %v752
        %v754 = vand.u32 %v753, 4294901760
        %755 = vmatmul.f32.gmra.mxu0 %v754
        %v756 = vpop.f32.mrf.mxu0
        %v757 = vadd.f32 0.0, %v756
        %v758 = vand.u32 %v688, 4294901760
        %v759 = vsub.f32 %v688, %v758
        %v760 = vand.u32 %v759, 4294901760
        %v761 = vsub.f32 %v759, %v760
        %v762 = vand.u32 %v761, 4294901760
        %763 = vmatmul.f32.gmra.mxu0 %v762
        %v764 = vpop.f32.mrf.mxu0
        %v765 = vadd.f32 0.0, %v764
        %v766 = vand.u32 %v691, 4294901760
        %v767 = vsub.f32 %v691, %v766
        %v768 = vand.u32 %v767, 4294901760
        %v769 = vsub.f32 %v767, %v768
        %v770 = vand.u32 %v769, 4294901760
        %771 = vmatmul.f32.gmra.mxu0 %v770
        %v772 = vpop.f32.mrf.mxu0
        %v773 = vadd.f32 0.0, %v772
        %774 = vdwg.mxu0
        %775 = vmatpush.msra.mxu0 0.0
        %776 = vmatpush.msra.mxu0 0.0
        %777 = vmatpush.msra.mxu0 0.0
        %778 = vmatpush.msra.mxu0 0.0
        %779 = vmatpush.msra.mxu0 0.0
        %780 = vmatpush.msra.mxu0 0.0
        %781 = vmatpush.msra.mxu0 0.0
        %782 = vmatpush.msra.mxu0 0.0
        %783 = vmatpush.msra.mxu0 0.0
        %784 = vmatpush.msra.mxu0 0.0
        %785 = vmatpush.msra.mxu0 0.0
        %786 = vmatpush.msra.mxu0 0.0
        %787 = vmatpush.msra.mxu0 0.0
        %788 = vmatpush.msra.mxu0 0.0
        %789 = vmatpush.msra.mxu0 0.0
        %v790 = vand.u32 %v667, 4294901760
        %v791 = vsub.f32 %v667, %v790
        %v792 = vand.u32 %v791, 4294901760
        %v793 = vsub.f32 %v791, %v792
        %v794 = vand.u32 %v793, 4294901760
        %795 = vmatpush.msra.mxu0 %v794
        %v796 = vand.u32 %v670, 4294901760
        %797 = vmatmul.f32.gmra.mxu0 %v796
        %v798 = vpop.f32.mrf.mxu0
        %v799 = vadd.f32 %v717, %v798
        %v800 = vand.u32 %v673, 4294901760
        %801 = vmatmul.f32.gmra.mxu0 %v800
        %v802 = vpop.f32.mrf.mxu0
        %v803 = vadd.f32 %v725, %v802
        %v804 = vand.u32 %v676, 4294901760
        %805 = vmatmul.f32.gmra.mxu0 %v804
        %v806 = vpop.f32.mrf.mxu0
        %v807 = vadd.f32 %v733, %v806
        %v808 = vand.u32 %v679, 4294901760
        %809 = vmatmul.f32.gmra.mxu0 %v808
        %v810 = vpop.f32.mrf.mxu0
        %v811 = vadd.f32 %v741, %v810
        %v812 = vand.u32 %v682, 4294901760
        %813 = vmatmul.f32.gmra.mxu0 %v812
        %v814 = vpop.f32.mrf.mxu0
        %v815 = vadd.f32 %v749, %v814
        %v816 = vand.u32 %v685, 4294901760
        %817 = vmatmul.f32.gmra.mxu0 %v816
        %v818 = vpop.f32.mrf.mxu0
        %v819 = vadd.f32 %v757, %v818
        %v820 = vand.u32 %v688, 4294901760
        %821 = vmatmul.f32.gmra.mxu0 %v820
        %v822 = vpop.f32.mrf.mxu0
        %v823 = vadd.f32 %v765, %v822
        %v824 = vand.u32 %v691, 4294901760
        %825 = vmatmul.f32.gmra.mxu0 %v824
        %v826 = vpop.f32.mrf.mxu0
        %v827 = vadd.f32 %v773, %v826
        %828 = vdwg.mxu0
        %829 = vmatpush.msra.mxu0 0.0
        %830 = vmatpush.msra.mxu0 0.0
        %831 = vmatpush.msra.mxu0 0.0
        %832 = vmatpush.msra.mxu0 0.0
        %833 = vmatpush.msra.mxu0 0.0
        %834 = vmatpush.msra.mxu0 0.0
        %835 = vmatpush.msra.mxu0 0.0
        %836 = vmatpush.msra.mxu0 0.0
        %837 = vmatpush.msra.mxu0 0.0
        %838 = vmatpush.msra.mxu0 0.0
        %839 = vmatpush.msra.mxu0 0.0
        %840 = vmatpush.msra.mxu0 0.0
        %841 = vmatpush.msra.mxu0 0.0
        %842 = vmatpush.msra.mxu0 0.0
        %843 = vmatpush.msra.mxu0 0.0
        %v844 = vand.u32 %v667, 4294901760
        %v845 = vsub.f32 %v667, %v844
        %846 = vmatpush.msra.mxu0 %v845
        %v847 = vand.u32 %v670, 4294901760
        %v848 = vsub.f32 %v670, %v847
        %849 = vmatmul.f32.gmra.mxu0 %v848
        %v850 = vpop.f32.mrf.mxu0
        %v851 = vadd.f32 %v799, %v850
        %v852 = vand.u32 %v673, 4294901760
        %v853 = vsub.f32 %v673, %v852
        %854 = vmatmul.f32.gmra.mxu0 %v853
        %v855 = vpop.f32.mrf.mxu0
        %v856 = vadd.f32 %v803, %v855
        %v857 = vand.u32 %v676, 4294901760
        %v858 = vsub.f32 %v676, %v857
        %859 = vmatmul.f32.gmra.mxu0 %v858
        %v860 = vpop.f32.mrf.mxu0
        %v861 = vadd.f32 %v807, %v860
        %v862 = vand.u32 %v679, 4294901760
        %v863 = vsub.f32 %v679, %v862
        %864 = vmatmul.f32.gmra.mxu0 %v863
        %v865 = vpop.f32.mrf.mxu0
        %v866 = vadd.f32 %v811, %v865
        %v867 = vand.u32 %v682, 4294901760
        %v868 = vsub.f32 %v682, %v867
        %869 = vmatmul.f32.gmra.mxu0 %v868
        %v870 = vpop.f32.mrf.mxu0
        %v871 = vadd.f32 %v815, %v870
        %v872 = vand.u32 %v685, 4294901760
        %v873 = vsub.f32 %v685, %v872
        %874 = vmatmul.f32.gmra.mxu0 %v873
        %v875 = vpop.f32.mrf.mxu0
        %v876 = vadd.f32 %v819, %v875
        %v877 = vand.u32 %v688, 4294901760
        %v878 = vsub.f32 %v688, %v877
        %879 = vmatmul.f32.gmra.mxu0 %v878
        %v880 = vpop.f32.mrf.mxu0
        %v881 = vadd.f32 %v823, %v880
        %v882 = vand.u32 %v691, 4294901760
        %v883 = vsub.f32 %v691, %v882
        %884 = vmatmul.f32.gmra.mxu0 %v883
        %v885 = vpop.f32.mrf.mxu0
        %v886 = vadd.f32 %v827, %v885
        %887 = vdwg.mxu0
        %888 = vmatpush.msra.mxu0 0.0
        %889 = vmatpush.msra.mxu0 0.0
        %890 = vmatpush.msra.mxu0 0.0
        %891 = vmatpush.msra.mxu0 0.0
        %892 = vmatpush.msra.mxu0 0.0
        %893 = vmatpush.msra.mxu0 0.0
        %894 = vmatpush.msra.mxu0 0.0
        %895 = vmatpush.msra.mxu0 0.0
        %896 = vmatpush.msra.mxu0 0.0
        %897 = vmatpush.msra.mxu0 0.0
        %898 = vmatpush.msra.mxu0 0.0
        %899 = vmatpush.msra.mxu0 0.0
        %900 = vmatpush.msra.mxu0 0.0
        %901 = vmatpush.msra.mxu0 0.0
        %902 = vmatpush.msra.mxu0 0.0
        %v903 = vand.u32 %v667, 4294901760
        %904 = vmatpush.msra.mxu0 %v903
        %v905 = vand.u32 %v670, 4294901760
        %v906 = vsub.f32 %v670, %v905
        %v907 = vand.u32 %v906, 4294901760
        %908 = vmatmul.f32.gmra.mxu0 %v907
        %v909 = vpop.f32.mrf.mxu0
        %v910 = vadd.f32 %v851, %v909
        %v911 = vand.u32 %v673, 4294901760
        %v912 = vsub.f32 %v673, %v911
        %v913 = vand.u32 %v912, 4294901760
        %914 = vmatmul.f32.gmra.mxu0 %v913
        %v915 = vpop.f32.mrf.mxu0
        %v916 = vadd.f32 %v856, %v915
        %v917 = vand.u32 %v676, 4294901760
        %v918 = vsub.f32 %v676, %v917
        %v919 = vand.u32 %v918, 4294901760
        %920 = vmatmul.f32.gmra.mxu0 %v919
        %v921 = vpop.f32.mrf.mxu0
        %v922 = vadd.f32 %v861, %v921
        %v923 = vand.u32 %v679, 4294901760
        %v924 = vsub.f32 %v679, %v923
        %v925 = vand.u32 %v924, 4294901760
        %926 = vmatmul.f32.gmra.mxu0 %v925
        %v927 = vpop.f32.mrf.mxu0
        %v928 = vadd.f32 %v866, %v927
        %v929 = vand.u32 %v682, 4294901760
        %v930 = vsub.f32 %v682, %v929
        %v931 = vand.u32 %v930, 4294901760
        %932 = vmatmul.f32.gmra.mxu0 %v931
        %v933 = vpop.f32.mrf.mxu0
        %v934 = vadd.f32 %v871, %v933
        %v935 = vand.u32 %v685, 4294901760
        %v936 = vsub.f32 %v685, %v935
        %v937 = vand.u32 %v936, 4294901760
        %938 = vmatmul.f32.gmra.mxu0 %v937
        %v939 = vpop.f32.mrf.mxu0
        %v940 = vadd.f32 %v876, %v939
        %v941 = vand.u32 %v688, 4294901760
        %v942 = vsub.f32 %v688, %v941
        %v943 = vand.u32 %v942, 4294901760
        %944 = vmatmul.f32.gmra.mxu0 %v943
        %v945 = vpop.f32.mrf.mxu0
        %v946 = vadd.f32 %v881, %v945
        %v947 = vand.u32 %v691, 4294901760
        %v948 = vsub.f32 %v691, %v947
        %v949 = vand.u32 %v948, 4294901760
        %950 = vmatmul.f32.gmra.mxu0 %v949
        %v951 = vpop.f32.mrf.mxu0
        %v952 = vadd.f32 %v886, %v951
        %953 = vdwg.mxu0
        %954 = vmatpush.msra.mxu0 0.0
        %955 = vmatpush.msra.mxu0 0.0
        %956 = vmatpush.msra.mxu0 0.0
        %957 = vmatpush.msra.mxu0 0.0
        %958 = vmatpush.msra.mxu0 0.0
        %959 = vmatpush.msra.mxu0 0.0
        %960 = vmatpush.msra.mxu0 0.0
        %961 = vmatpush.msra.mxu0 0.0
        %962 = vmatpush.msra.mxu0 0.0
        %963 = vmatpush.msra.mxu0 0.0
        %964 = vmatpush.msra.mxu0 0.0
        %965 = vmatpush.msra.mxu0 0.0
        %966 = vmatpush.msra.mxu0 0.0
        %967 = vmatpush.msra.mxu0 0.0
        %968 = vmatpush.msra.mxu0 0.0
        %v969 = vand.u32 %v667, 4294901760
        %v970 = vsub.f32 %v667, %v969
        %v971 = vand.u32 %v970, 4294901760
        %972 = vmatpush.msra.mxu0 %v971
        %v973 = vand.u32 %v670, 4294901760
        %974 = vmatmul.f32.gmra.mxu0 %v973
        %v975 = vpop.f32.mrf.mxu0
        %v976 = vadd.f32 %v910, %v975
        %v977 = vand.u32 %v673, 4294901760
        %978 = vmatmul.f32.gmra.mxu0 %v977
        %v979 = vpop.f32.mrf.mxu0
        %v980 = vadd.f32 %v916, %v979
        %v981 = vand.u32 %v676, 4294901760
        %982 = vmatmul.f32.gmra.mxu0 %v981
        %v983 = vpop.f32.mrf.mxu0
        %v984 = vadd.f32 %v922, %v983
        %v985 = vand.u32 %v679, 4294901760
        %986 = vmatmul.f32.gmra.mxu0 %v985
        %v987 = vpop.f32.mrf.mxu0
        %v988 = vadd.f32 %v928, %v987
        %v989 = vand.u32 %v682, 4294901760
        %990 = vmatmul.f32.gmra.mxu0 %v989
        %v991 = vpop.f32.mrf.mxu0
        %v992 = vadd.f32 %v934, %v991
        %v993 = vand.u32 %v685, 4294901760
        %994 = vmatmul.f32.gmra.mxu0 %v993
        %v995 = vpop.f32.mrf.mxu0
        %v996 = vadd.f32 %v940, %v995
        %v997 = vand.u32 %v688, 4294901760
        %998 = vmatmul.f32.gmra.mxu0 %v997
        %v999 = vpop.f32.mrf.mxu0
        %v1000 = vadd.f32 %v946, %v999
        %v1001 = vand.u32 %v691, 4294901760
        %1002 = vmatmul.f32.gmra.mxu0 %v1001
        %v1003 = vpop.f32.mrf.mxu0
        %v1004 = vadd.f32 %v952, %v1003
        %1005 = vdwg.mxu0
        %1006 = vmatpush.msra.mxu0 0.0
        %1007 = vmatpush.msra.mxu0 0.0
        %1008 = vmatpush.msra.mxu0 0.0
        %1009 = vmatpush.msra.mxu0 0.0
        %1010 = vmatpush.msra.mxu0 0.0
        %1011 = vmatpush.msra.mxu0 0.0
        %1012 = vmatpush.msra.mxu0 0.0
        %1013 = vmatpush.msra.mxu0 0.0
        %1014 = vmatpush.msra.mxu0 0.0
        %1015 = vmatpush.msra.mxu0 0.0
        %1016 = vmatpush.msra.mxu0 0.0
        %1017 = vmatpush.msra.mxu0 0.0
        %1018 = vmatpush.msra.mxu0 0.0
        %1019 = vmatpush.msra.mxu0 0.0
        %1020 = vmatpush.msra.mxu0 0.0
        %v1021 = vand.u32 %v667, 4294901760
        %1022 = vmatpush.msra.mxu0 %v1021
        %v1023 = vand.u32 %v670, 4294901760
        %1024 = vmatmul.f32.gmra.mxu0 %v1023
        %v1025 = vpop.f32.mrf.mxu0
        %v1026 = vadd.f32 %v976, %v1025
        %v1027 = vand.u32 %v673, 4294901760
        %1028 = vmatmul.f32.gmra.mxu0 %v1027
        %v1029 = vpop.f32.mrf.mxu0
        %v1030 = vadd.f32 %v980, %v1029
        %v1031 = vand.u32 %v676, 4294901760
        %1032 = vmatmul.f32.gmra.mxu0 %v1031
        %v1033 = vpop.f32.mrf.mxu0
        %v1034 = vadd.f32 %v984, %v1033
        %v1035 = vand.u32 %v679, 4294901760
        %1036 = vmatmul.f32.gmra.mxu0 %v1035
        %v1037 = vpop.f32.mrf.mxu0
        %v1038 = vadd.f32 %v988, %v1037
        %v1039 = vand.u32 %v682, 4294901760
        %1040 = vmatmul.f32.gmra.mxu0 %v1039
        %v1041 = vpop.f32.mrf.mxu0
        %v1042 = vadd.f32 %v992, %v1041
        %v1043 = vand.u32 %v685, 4294901760
        %1044 = vmatmul.f32.gmra.mxu0 %v1043
        %v1045 = vpop.f32.mrf.mxu0
        %v1046 = vadd.f32 %v996, %v1045
        %v1047 = vand.u32 %v688, 4294901760
        %1048 = vmatmul.f32.gmra.mxu0 %v1047
        %v1049 = vpop.f32.mrf.mxu0
        %v1050 = vadd.f32 %v1000, %v1049
        %v1051 = vand.u32 %v691, 4294901760
        %1052 = vmatmul.f32.gmra.mxu0 %v1051
        %v1053 = vpop.f32.mrf.mxu0
        %v1054 = vadd.f32 %v1004, %v1053
        %1055 = vdwg.mxu0
        %v1056 = vld [vmem:[#allocation2] sm:$0xff]
        %v1057 = vld [vmem:[#allocation2 + $0x8] sm:$0xff]
        %v1058 = vld [vmem:[#allocation2 + $0x10] sm:$0xff]
        %v1059 = vld [vmem:[#allocation2 + $0x18] sm:$0xff]
        %v1060 = vld [vmem:[#allocation2 + $0x20] sm:$0xff]
        %v1061 = vld [vmem:[#allocation2 + $0x28] sm:$0xff]
        %v1062 = vld [vmem:[#allocation2 + $0x30] sm:$0xff]
        %v1063 = vld [vmem:[#allocation2 + $0x38] sm:$0xff]
        %vm1064 = vcmask 31744
        %v1066 = vsel %vm1064, %v1026, 0
        %v1069 = vsel %vm1064, %v1030, 0
        %v1072 = vsel %vm1064, %v1034, 0
        %v1075 = vsel %vm1064, %v1038, 0
        %v1078 = vsel %vm1064, %v1042, 0
        %v1081 = vsel %vm1064, %v1046, 0
        %v1084 = vsel %vm1064, %v1050, 0
        %v1087 = vsel %vm1064, %v1054, 0
        %v1090 = vsel %vm1064, %v1056, 0
        %v1093 = vsel %vm1064, %v1057, 0
        %v1096 = vsel %vm1064, %v1058, 0
        %v1099 = vsel %vm1064, %v1059, 0
        %v1102 = vsel %vm1064, %v1060, 0
        %v1105 = vsel %vm1064, %v1061, 0
        %v1108 = vsel %vm1064, %v1062, 0
        %v1111 = vsel %vm1064, %v1063, 0
        %1113 = vmatpush.xpose.msra.mxu0 0.0
        %1114 = vmatpush.xpose.msra.mxu0 0.0
        %1115 = vmatpush.xpose.msra.mxu0 0.0
        %1116 = vmatpush.xpose.msra.mxu0 0.0
        %1117 = vmatpush.xpose.msra.mxu0 0.0
        %1118 = vmatpush.xpose.msra.mxu0 0.0
        %1119 = vmatpush.xpose.msra.mxu0 0.0
        %1120 = vmatpush.xpose.msra.mxu0 0.0
        %v1121 = vand.u32 %v1111, 4294901760
        %1122 = vmatpush.xpose.msra.mxu0 %v1121
        %v1123 = vand.u32 %v1108, 4294901760
        %1124 = vmatpush.xpose.msra.mxu0 %v1123
        %v1125 = vand.u32 %v1105, 4294901760
        %1126 = vmatpush.xpose.msra.mxu0 %v1125
        %v1127 = vand.u32 %v1102, 4294901760
        %1128 = vmatpush.xpose.msra.mxu0 %v1127
        %v1129 = vand.u32 %v1099, 4294901760
        %1130 = vmatpush.xpose.msra.mxu0 %v1129
        %v1131 = vand.u32 %v1096, 4294901760
        %1132 = vmatpush.xpose.msra.mxu0 %v1131
        %v1133 = vand.u32 %v1093, 4294901760
        %1134 = vmatpush.xpose.msra.mxu0 %v1133
        %v1135 = vand.u32 %v1090, 4294901760
        %1136 = vmatpush.xpose.msra.mxu0 %v1135
        %v1137 = vand.u32 %v1066, 4294901760
        %v1138 = vsub.f32 %v1066, %v1137
        %v1139 = vand.u32 %v1138, 4294901760
        %v1140 = vsub.f32 %v1138, %v1139
        %v1141 = vand.u32 %v1140, 4294901760
        %1142 = vmatmul.f32.gmra.mxu0 %v1141
        %v1143 = vpop.f32.mrf.mxu0
        %v1144 = vadd.f32 0.0, %v1143
        %v1145 = vand.u32 %v1069, 4294901760
        %v1146 = vsub.f32 %v1069, %v1145
        %v1147 = vand.u32 %v1146, 4294901760
        %v1148 = vsub.f32 %v1146, %v1147
        %v1149 = vand.u32 %v1148, 4294901760
        %1150 = vmatmul.f32.gmra.mxu0 %v1149
        %v1151 = vpop.f32.mrf.mxu0
        %v1152 = vadd.f32 0.0, %v1151
        %v1153 = vand.u32 %v1072, 4294901760
        %v1154 = vsub.f32 %v1072, %v1153
        %v1155 = vand.u32 %v1154, 4294901760
        %v1156 = vsub.f32 %v1154, %v1155
        %v1157 = vand.u32 %v1156, 4294901760
        %1158 = vmatmul.f32.gmra.mxu0 %v1157
        %v1159 = vpop.f32.mrf.mxu0
        %v1160 = vadd.f32 0.0, %v1159
        %v1161 = vand.u32 %v1075, 4294901760
        %v1162 = vsub.f32 %v1075, %v1161
        %v1163 = vand.u32 %v1162, 4294901760
        %v1164 = vsub.f32 %v1162, %v1163
        %v1165 = vand.u32 %v1164, 4294901760
        %1166 = vmatmul.f32.gmra.mxu0 %v1165
        %v1167 = vpop.f32.mrf.mxu0
        %v1168 = vadd.f32 0.0, %v1167
        %v1169 = vand.u32 %v1078, 4294901760
        %v1170 = vsub.f32 %v1078, %v1169
        %v1171 = vand.u32 %v1170, 4294901760
        %v1172 = vsub.f32 %v1170, %v1171
        %v1173 = vand.u32 %v1172, 4294901760
        %1174 = vmatmul.f32.gmra.mxu0 %v1173
        %v1175 = vpop.f32.mrf.mxu0
        %v1176 = vadd.f32 0.0, %v1175
        %v1177 = vand.u32 %v1081, 4294901760
        %v1178 = vsub.f32 %v1081, %v1177
        %v1179 = vand.u32 %v1178, 4294901760
        %v1180 = vsub.f32 %v1178, %v1179
        %v1181 = vand.u32 %v1180, 4294901760
        %1182 = vmatmul.f32.gmra.mxu0 %v1181
        %v1183 = vpop.f32.mrf.mxu0
        %v1184 = vadd.f32 0.0, %v1183
        %v1185 = vand.u32 %v1084, 4294901760
        %v1186 = vsub.f32 %v1084, %v1185
        %v1187 = vand.u32 %v1186, 4294901760
        %v1188 = vsub.f32 %v1186, %v1187
        %v1189 = vand.u32 %v1188, 4294901760
        %1190 = vmatmul.f32.gmra.mxu0 %v1189
        %v1191 = vpop.f32.mrf.mxu0
        %v1192 = vadd.f32 0.0, %v1191
        %v1193 = vand.u32 %v1087, 4294901760
        %v1194 = vsub.f32 %v1087, %v1193
        %v1195 = vand.u32 %v1194, 4294901760
        %v1196 = vsub.f32 %v1194, %v1195
        %v1197 = vand.u32 %v1196, 4294901760
        %1198 = vmatmul.f32.gmra.mxu0 %v1197
        %v1199 = vpop.f32.mrf.mxu0
        %v1200 = vadd.f32 0.0, %v1199
        %1201 = vdwg.mxu0
        %1202 = vmatpush.xpose.msra.mxu0 0.0
        %1203 = vmatpush.xpose.msra.mxu0 0.0
        %1204 = vmatpush.xpose.msra.mxu0 0.0
        %1205 = vmatpush.xpose.msra.mxu0 0.0
        %1206 = vmatpush.xpose.msra.mxu0 0.0
        %1207 = vmatpush.xpose.msra.mxu0 0.0
        %1208 = vmatpush.xpose.msra.mxu0 0.0
        %1209 = vmatpush.xpose.msra.mxu0 0.0
        %v1210 = vand.u32 %v1111, 4294901760
        %v1211 = vsub.f32 %v1111, %v1210
        %v1212 = vand.u32 %v1211, 4294901760
        %v1213 = vsub.f32 %v1211, %v1212
        %v1214 = vand.u32 %v1213, 4294901760
        %1215 = vmatpush.xpose.msra.mxu0 %v1214
        %v1216 = vand.u32 %v1108, 4294901760
        %v1217 = vsub.f32 %v1108, %v1216
        %v1218 = vand.u32 %v1217, 4294901760
        %v1219 = vsub.f32 %v1217, %v1218
        %v1220 = vand.u32 %v1219, 4294901760
        %1221 = vmatpush.xpose.msra.mxu0 %v1220
        %v1222 = vand.u32 %v1105, 4294901760
        %v1223 = vsub.f32 %v1105, %v1222
        %v1224 = vand.u32 %v1223, 4294901760
        %v1225 = vsub.f32 %v1223, %v1224
        %v1226 = vand.u32 %v1225, 4294901760
        %1227 = vmatpush.xpose.msra.mxu0 %v1226
        %v1228 = vand.u32 %v1102, 4294901760
        %v1229 = vsub.f32 %v1102, %v1228
        %v1230 = vand.u32 %v1229, 4294901760
        %v1231 = vsub.f32 %v1229, %v1230
        %v1232 = vand.u32 %v1231, 4294901760
        %1233 = vmatpush.xpose.msra.mxu0 %v1232
        %v1234 = vand.u32 %v1099, 4294901760
        %v1235 = vsub.f32 %v1099, %v1234
        %v1236 = vand.u32 %v1235, 4294901760
        %v1237 = vsub.f32 %v1235, %v1236
        %v1238 = vand.u32 %v1237, 4294901760
        %1239 = vmatpush.xpose.msra.mxu0 %v1238
        %v1240 = vand.u32 %v1096, 4294901760
        %v1241 = vsub.f32 %v1096, %v1240
        %v1242 = vand.u32 %v1241, 4294901760
        %v1243 = vsub.f32 %v1241, %v1242
        %v1244 = vand.u32 %v1243, 4294901760
        %1245 = vmatpush.xpose.msra.mxu0 %v1244
        %v1246 = vand.u32 %v1093, 4294901760
        %v1247 = vsub.f32 %v1093, %v1246
        %v1248 = vand.u32 %v1247, 4294901760
        %v1249 = vsub.f32 %v1247, %v1248
        %v1250 = vand.u32 %v1249, 4294901760
        %1251 = vmatpush.xpose.msra.mxu0 %v1250
        %v1252 = vand.u32 %v1090, 4294901760
        %v1253 = vsub.f32 %v1090, %v1252
        %v1254 = vand.u32 %v1253, 4294901760
        %v1255 = vsub.f32 %v1253, %v1254
        %v1256 = vand.u32 %v1255, 4294901760
        %1257 = vmatpush.xpose.msra.mxu0 %v1256
        %v1258 = vand.u32 %v1066, 4294901760
        %1259 = vmatmul.f32.gmra.mxu0 %v1258
        %v1260 = vpop.f32.mrf.mxu0
        %v1261 = vadd.f32 %v1144, %v1260
        %v1262 = vand.u32 %v1069, 4294901760
        %1263 = vmatmul.f32.gmra.mxu0 %v1262
        %v1264 = vpop.f32.mrf.mxu0
        %v1265 = vadd.f32 %v1152, %v1264
        %v1266 = vand.u32 %v1072, 4294901760
        %1267 = vmatmul.f32.gmra.mxu0 %v1266
        %v1268 = vpop.f32.mrf.mxu0
        %v1269 = vadd.f32 %v1160, %v1268
        %v1270 = vand.u32 %v1075, 4294901760
        %1271 = vmatmul.f32.gmra.mxu0 %v1270
        %v1272 = vpop.f32.mrf.mxu0
        %v1273 = vadd.f32 %v1168, %v1272
        %v1274 = vand.u32 %v1078, 4294901760
        %1275 = vmatmul.f32.gmra.mxu0 %v1274
        %v1276 = vpop.f32.mrf.mxu0
        %v1277 = vadd.f32 %v1176, %v1276
        %v1278 = vand.u32 %v1081, 4294901760
        %1279 = vmatmul.f32.gmra.mxu0 %v1278
        %v1280 = vpop.f32.mrf.mxu0
        %v1281 = vadd.f32 %v1184, %v1280
        %v1282 = vand.u32 %v1084, 4294901760
        %1283 = vmatmul.f32.gmra.mxu0 %v1282
        %v1284 = vpop.f32.mrf.mxu0
        %v1285 = vadd.f32 %v1192, %v1284
        %v1286 = vand.u32 %v1087, 4294901760
        %1287 = vmatmul.f32.gmra.mxu0 %v1286
        %v1288 = vpop.f32.mrf.mxu0
        %v1289 = vadd.f32 %v1200, %v1288
        %1290 = vdwg.mxu0
        %1291 = vmatpush.xpose.msra.mxu0 0.0
        %1292 = vmatpush.xpose.msra.mxu0 0.0
        %1293 = vmatpush.xpose.msra.mxu0 0.0
        %1294 = vmatpush.xpose.msra.mxu0 0.0
        %1295 = vmatpush.xpose.msra.mxu0 0.0
        %1296 = vmatpush.xpose.msra.mxu0 0.0
        %1297 = vmatpush.xpose.msra.mxu0 0.0
        %1298 = vmatpush.xpose.msra.mxu0 0.0
        %v1299 = vand.u32 %v1111, 4294901760
        %v1300 = vsub.f32 %v1111, %v1299
        %1301 = vmatpush.xpose.msra.mxu0 %v1300
        %v1302 = vand.u32 %v1108, 4294901760
        %v1303 = vsub.f32 %v1108, %v1302
        %1304 = vmatpush.xpose.msra.mxu0 %v1303
        %v1305 = vand.u32 %v1105, 4294901760
        %v1306 = vsub.f32 %v1105, %v1305
        %1307 = vmatpush.xpose.msra.mxu0 %v1306
        %v1308 = vand.u32 %v1102, 4294901760
        %v1309 = vsub.f32 %v1102, %v1308
        %1310 = vmatpush.xpose.msra.mxu0 %v1309
        %v1311 = vand.u32 %v1099, 4294901760
        %v1312 = vsub.f32 %v1099, %v1311
        %1313 = vmatpush.xpose.msra.mxu0 %v1312
        %v1314 = vand.u32 %v1096, 4294901760
        %v1315 = vsub.f32 %v1096, %v1314
        %1316 = vmatpush.xpose.msra.mxu0 %v1315
        %v1317 = vand.u32 %v1093, 4294901760
        %v1318 = vsub.f32 %v1093, %v1317
        %1319 = vmatpush.xpose.msra.mxu0 %v1318
        %v1320 = vand.u32 %v1090, 4294901760
        %v1321 = vsub.f32 %v1090, %v1320
        %1322 = vmatpush.xpose.msra.mxu0 %v1321
        %v1323 = vand.u32 %v1066, 4294901760
        %v1324 = vsub.f32 %v1066, %v1323
        %1325 = vmatmul.f32.gmra.mxu0 %v1324
        %v1326 = vpop.f32.mrf.mxu0
        %v1327 = vadd.f32 %v1261, %v1326
        %v1328 = vand.u32 %v1069, 4294901760
        %v1329 = vsub.f32 %v1069, %v1328
        %1330 = vmatmul.f32.gmra.mxu0 %v1329
        %v1331 = vpop.f32.mrf.mxu0
        %v1332 = vadd.f32 %v1265, %v1331
        %v1333 = vand.u32 %v1072, 4294901760
        %v1334 = vsub.f32 %v1072, %v1333
        %1335 = vmatmul.f32.gmra.mxu0 %v1334
        %v1336 = vpop.f32.mrf.mxu0
        %v1337 = vadd.f32 %v1269, %v1336
        %v1338 = vand.u32 %v1075, 4294901760
        %v1339 = vsub.f32 %v1075, %v1338
        %1340 = vmatmul.f32.gmra.mxu0 %v1339
        %v1341 = vpop.f32.mrf.mxu0
        %v1342 = vadd.f32 %v1273, %v1341
        %v1343 = vand.u32 %v1078, 4294901760
        %v1344 = vsub.f32 %v1078, %v1343
        %1345 = vmatmul.f32.gmra.mxu0 %v1344
        %v1346 = vpop.f32.mrf.mxu0
        %v1347 = vadd.f32 %v1277, %v1346
        %v1348 = vand.u32 %v1081, 4294901760
        %v1349 = vsub.f32 %v1081, %v1348
        %1350 = vmatmul.f32.gmra.mxu0 %v1349
        %v1351 = vpop.f32.mrf.mxu0
        %v1352 = vadd.f32 %v1281, %v1351
        %v1353 = vand.u32 %v1084, 4294901760
        %v1354 = vsub.f32 %v1084, %v1353
        %1355 = vmatmul.f32.gmra.mxu0 %v1354
        %v1356 = vpop.f32.mrf.mxu0
        %v1357 = vadd.f32 %v1285, %v1356
        %v1358 = vand.u32 %v1087, 4294901760
        %v1359 = vsub.f32 %v1087, %v1358
        %1360 = vmatmul.f32.gmra.mxu0 %v1359
        %v1361 = vpop.f32.mrf.mxu0
        %v1362 = vadd.f32 %v1289, %v1361
        %1363 = vdwg.mxu0
        %1364 = vmatpush.xpose.msra.mxu0 0.0
        %1365 = vmatpush.xpose.msra.mxu0 0.0
        %1366 = vmatpush.xpose.msra.mxu0 0.0
        %1367 = vmatpush.xpose.msra.mxu0 0.0
        %1368 = vmatpush.xpose.msra.mxu0 0.0
        %1369 = vmatpush.xpose.msra.mxu0 0.0
        %1370 = vmatpush.xpose.msra.mxu0 0.0
        %1371 = vmatpush.xpose.msra.mxu0 0.0
        %v1372 = vand.u32 %v1111, 4294901760
        %1373 = vmatpush.xpose.msra.mxu0 %v1372
        %v1374 = vand.u32 %v1108, 4294901760
        %1375 = vmatpush.xpose.msra.mxu0 %v1374
        %v1376 = vand.u32 %v1105, 4294901760
        %1377 = vmatpush.xpose.msra.mxu0 %v1376
        %v1378 = vand.u32 %v1102, 4294901760
        %1379 = vmatpush.xpose.msra.mxu0 %v1378
        %v1380 = vand.u32 %v1099, 4294901760
        %1381 = vmatpush.xpose.msra.mxu0 %v1380
        %v1382 = vand.u32 %v1096, 4294901760
        %1383 = vmatpush.xpose.msra.mxu0 %v1382
        %v1384 = vand.u32 %v1093, 4294901760
        %1385 = vmatpush.xpose.msra.mxu0 %v1384
        %v1386 = vand.u32 %v1090, 4294901760
        %1387 = vmatpush.xpose.msra.mxu0 %v1386
        %v1388 = vand.u32 %v1066, 4294901760
        %v1389 = vsub.f32 %v1066, %v1388
        %v1390 = vand.u32 %v1389, 4294901760
        %1391 = vmatmul.f32.gmra.mxu0 %v1390
        %v1392 = vpop.f32.mrf.mxu0
        %v1393 = vadd.f32 %v1327, %v1392
        %v1394 = vand.u32 %v1069, 4294901760
        %v1395 = vsub.f32 %v1069, %v1394
        %v1396 = vand.u32 %v1395, 4294901760
        %1397 = vmatmul.f32.gmra.mxu0 %v1396
        %v1398 = vpop.f32.mrf.mxu0
        %v1399 = vadd.f32 %v1332, %v1398
        %v1400 = vand.u32 %v1072, 4294901760
        %v1401 = vsub.f32 %v1072, %v1400
        %v1402 = vand.u32 %v1401, 4294901760
        %1403 = vmatmul.f32.gmra.mxu0 %v1402
        %v1404 = vpop.f32.mrf.mxu0
        %v1405 = vadd.f32 %v1337, %v1404
        %v1406 = vand.u32 %v1075, 4294901760
        %v1407 = vsub.f32 %v1075, %v1406
        %v1408 = vand.u32 %v1407, 4294901760
        %1409 = vmatmul.f32.gmra.mxu0 %v1408
        %v1410 = vpop.f32.mrf.mxu0
        %v1411 = vadd.f32 %v1342, %v1410
        %v1412 = vand.u32 %v1078, 4294901760
        %v1413 = vsub.f32 %v1078, %v1412
        %v1414 = vand.u32 %v1413, 4294901760
        %1415 = vmatmul.f32.gmra.mxu0 %v1414
        %v1416 = vpop.f32.mrf.mxu0
        %v1417 = vadd.f32 %v1347, %v1416
        %v1418 = vand.u32 %v1081, 4294901760
        %v1419 = vsub.f32 %v1081, %v1418
        %v1420 = vand.u32 %v1419, 4294901760
        %1421 = vmatmul.f32.gmra.mxu0 %v1420
        %v1422 = vpop.f32.mrf.mxu0
        %v1423 = vadd.f32 %v1352, %v1422
        %v1424 = vand.u32 %v1084, 4294901760
        %v1425 = vsub.f32 %v1084, %v1424
        %v1426 = vand.u32 %v1425, 4294901760
        %1427 = vmatmul.f32.gmra.mxu0 %v1426
        %v1428 = vpop.f32.mrf.mxu0
        %v1429 = vadd.f32 %v1357, %v1428
        %v1430 = vand.u32 %v1087, 4294901760
        %v1431 = vsub.f32 %v1087, %v1430
        %v1432 = vand.u32 %v1431, 4294901760
        %1433 = vmatmul.f32.gmra.mxu0 %v1432
        %v1434 = vpop.f32.mrf.mxu0
        %v1435 = vadd.f32 %v1362, %v1434
        %1436 = vdwg.mxu0
        %1437 = vmatpush.xpose.msra.mxu0 0.0
        %1438 = vmatpush.xpose.msra.mxu0 0.0
        %1439 = vmatpush.xpose.msra.mxu0 0.0
        %1440 = vmatpush.xpose.msra.mxu0 0.0
        %1441 = vmatpush.xpose.msra.mxu0 0.0
        %1442 = vmatpush.xpose.msra.mxu0 0.0
        %1443 = vmatpush.xpose.msra.mxu0 0.0
        %1444 = vmatpush.xpose.msra.mxu0 0.0
        %v1445 = vand.u32 %v1111, 4294901760
        %v1446 = vsub.f32 %v1111, %v1445
        %v1447 = vand.u32 %v1446, 4294901760
        %1448 = vmatpush.xpose.msra.mxu0 %v1447
        %v1449 = vand.u32 %v1108, 4294901760
        %v1450 = vsub.f32 %v1108, %v1449
        %v1451 = vand.u32 %v1450, 4294901760
        %1452 = vmatpush.xpose.msra.mxu0 %v1451
        %v1453 = vand.u32 %v1105, 4294901760
        %v1454 = vsub.f32 %v1105, %v1453
        %v1455 = vand.u32 %v1454, 4294901760
        %1456 = vmatpush.xpose.msra.mxu0 %v1455
        %v1457 = vand.u32 %v1102, 4294901760
        %v1458 = vsub.f32 %v1102, %v1457
        %v1459 = vand.u32 %v1458, 4294901760
        %1460 = vmatpush.xpose.msra.mxu0 %v1459
        %v1461 = vand.u32 %v1099, 4294901760
        %v1462 = vsub.f32 %v1099, %v1461
        %v1463 = vand.u32 %v1462, 4294901760
        %1464 = vmatpush.xpose.msra.mxu0 %v1463
        %v1465 = vand.u32 %v1096, 4294901760
        %v1466 = vsub.f32 %v1096, %v1465
        %v1467 = vand.u32 %v1466, 4294901760
        %1468 = vmatpush.xpose.msra.mxu0 %v1467
        %v1469 = vand.u32 %v1093, 4294901760
        %v1470 = vsub.f32 %v1093, %v1469
        %v1471 = vand.u32 %v1470, 4294901760
        %1472 = vmatpush.xpose.msra.mxu0 %v1471
        %v1473 = vand.u32 %v1090, 4294901760
        %v1474 = vsub.f32 %v1090, %v1473
        %v1475 = vand.u32 %v1474, 4294901760
        %1476 = vmatpush.xpose.msra.mxu0 %v1475
        %v1477 = vand.u32 %v1066, 4294901760
        %1478 = vmatmul.f32.gmra.mxu0 %v1477
        %v1479 = vpop.f32.mrf.mxu0
        %v1480 = vadd.f32 %v1393, %v1479
        %v1481 = vand.u32 %v1069, 4294901760
        %1482 = vmatmul.f32.gmra.mxu0 %v1481
        %v1483 = vpop.f32.mrf.mxu0
        %v1484 = vadd.f32 %v1399, %v1483
        %v1485 = vand.u32 %v1072, 4294901760
        %1486 = vmatmul.f32.gmra.mxu0 %v1485
        %v1487 = vpop.f32.mrf.mxu0
        %v1488 = vadd.f32 %v1405, %v1487
        %v1489 = vand.u32 %v1075, 4294901760
        %1490 = vmatmul.f32.gmra.mxu0 %v1489
        %v1491 = vpop.f32.mrf.mxu0
        %v1492 = vadd.f32 %v1411, %v1491
        %v1493 = vand.u32 %v1078, 4294901760
        %1494 = vmatmul.f32.gmra.mxu0 %v1493
        %v1495 = vpop.f32.mrf.mxu0
        %v1496 = vadd.f32 %v1417, %v1495
        %v1497 = vand.u32 %v1081, 4294901760
        %1498 = vmatmul.f32.gmra.mxu0 %v1497
        %v1499 = vpop.f32.mrf.mxu0
        %v1500 = vadd.f32 %v1423, %v1499
        %v1501 = vand.u32 %v1084, 4294901760
        %1502 = vmatmul.f32.gmra.mxu0 %v1501
        %v1503 = vpop.f32.mrf.mxu0
        %v1504 = vadd.f32 %v1429, %v1503
        %v1505 = vand.u32 %v1087, 4294901760
        %1506 = vmatmul.f32.gmra.mxu0 %v1505
        %v1507 = vpop.f32.mrf.mxu0
        %v1508 = vadd.f32 %v1435, %v1507
        %1509 = vdwg.mxu0
        %1510 = vmatpush.xpose.msra.mxu0 0.0
        %1511 = vmatpush.xpose.msra.mxu0 0.0
        %1512 = vmatpush.xpose.msra.mxu0 0.0
        %1513 = vmatpush.xpose.msra.mxu0 0.0
        %1514 = vmatpush.xpose.msra.mxu0 0.0
        %1515 = vmatpush.xpose.msra.mxu0 0.0
        %1516 = vmatpush.xpose.msra.mxu0 0.0
        %1517 = vmatpush.xpose.msra.mxu0 0.0
        %v1518 = vand.u32 %v1111, 4294901760
        %1519 = vmatpush.xpose.msra.mxu0 %v1518
        %v1520 = vand.u32 %v1108, 4294901760
        %1521 = vmatpush.xpose.msra.mxu0 %v1520
        %v1522 = vand.u32 %v1105, 4294901760
        %1523 = vmatpush.xpose.msra.mxu0 %v1522
        %v1524 = vand.u32 %v1102, 4294901760
        %1525 = vmatpush.xpose.msra.mxu0 %v1524
        %v1526 = vand.u32 %v1099, 4294901760
        %1527 = vmatpush.xpose.msra.mxu0 %v1526
        %v1528 = vand.u32 %v1096, 4294901760
        %1529 = vmatpush.xpose.msra.mxu0 %v1528
        %v1530 = vand.u32 %v1093, 4294901760
        %1531 = vmatpush.xpose.msra.mxu0 %v1530
        %v1532 = vand.u32 %v1090, 4294901760
        %1533 = vmatpush.xpose.msra.mxu0 %v1532
        %v1534 = vand.u32 %v1066, 4294901760
        %1535 = vmatmul.f32.gmra.mxu0 %v1534
        %v1536 = vpop.f32.mrf.mxu0
        %v1537 = vadd.f32 %v1480, %v1536
        %v1538 = vand.u32 %v1069, 4294901760
        %1539 = vmatmul.f32.gmra.mxu0 %v1538
        %v1540 = vpop.f32.mrf.mxu0
        %v1541 = vadd.f32 %v1484, %v1540
        %v1542 = vand.u32 %v1072, 4294901760
        %1543 = vmatmul.f32.gmra.mxu0 %v1542
        %v1544 = vpop.f32.mrf.mxu0
        %v1545 = vadd.f32 %v1488, %v1544
        %v1546 = vand.u32 %v1075, 4294901760
        %1547 = vmatmul.f32.gmra.mxu0 %v1546
        %v1548 = vpop.f32.mrf.mxu0
        %v1549 = vadd.f32 %v1492, %v1548
        %v1550 = vand.u32 %v1078, 4294901760
        %1551 = vmatmul.f32.gmra.mxu0 %v1550
        %v1552 = vpop.f32.mrf.mxu0
        %v1553 = vadd.f32 %v1496, %v1552
        %v1554 = vand.u32 %v1081, 4294901760
        %1555 = vmatmul.f32.gmra.mxu0 %v1554
        %v1556 = vpop.f32.mrf.mxu0
        %v1557 = vadd.f32 %v1500, %v1556
        %v1558 = vand.u32 %v1084, 4294901760
        %1559 = vmatmul.f32.gmra.mxu0 %v1558
        %v1560 = vpop.f32.mrf.mxu0
        %v1561 = vadd.f32 %v1504, %v1560
        %v1562 = vand.u32 %v1087, 4294901760
        %1563 = vmatmul.f32.gmra.mxu0 %v1562
        %v1564 = vpop.f32.mrf.mxu0
        %v1565 = vadd.f32 %v1508, %v1564
        %1566 = vdwg.mxu0
        %vm1567 = vcmask 523264
        %v1568 = vsel %vm1567, %v1537, -inf
        %1569 = vmax.xlane.f32.xlu0 %v1568
        %v1570 = vpop.xlane.xlu0 %1569
        %v1571 = vsel %vm1567, %v1541, -inf
        %1572 = vmax.xlane.f32.xlu0 %v1571
        %v1573 = vpop.xlane.xlu0 %1572
        %v1574 = vsel %vm1567, %v1545, -inf
        %1575 = vmax.xlane.f32.xlu0 %v1574
        %v1576 = vpop.xlane.xlu0 %1575
        %v1577 = vsel %vm1567, %v1549, -inf
        %1578 = vmax.xlane.f32.xlu0 %v1577
        %v1579 = vpop.xlane.xlu0 %1578
        %v1580 = vsel %vm1567, %v1553, -inf
        %1581 = vmax.xlane.f32.xlu0 %v1580
        %v1582 = vpop.xlane.xlu0 %1581
        %v1583 = vsel %vm1567, %v1557, -inf
        %1584 = vmax.xlane.f32.xlu0 %v1583
        %v1585 = vpop.xlane.xlu0 %1584
        %v1586 = vsel %vm1567, %v1561, -inf
        %1587 = vmax.xlane.f32.xlu0 %v1586
        %v1588 = vpop.xlane.xlu0 %1587
        %v1589 = vsel %vm1567, %v1565, -inf
        %1590 = vmax.xlane.f32.xlu0 %v1589
        %v1591 = vpop.xlane.xlu0 %1590
        %v1592 = vsub.f32 %v1537, %v1570
        %v1593 = vsub.f32 %v1541, %v1573
        %v1594 = vsub.f32 %v1545, %v1576
        %v1595 = vsub.f32 %v1549, %v1579
        %v1596 = vsub.f32 %v1553, %v1582
        %v1597 = vsub.f32 %v1557, %v1585
        %v1598 = vsub.f32 %v1561, %v1588
        %v1599 = vsub.f32 %v1565, %v1591
        %v1600 = vmul.f32 %v1592, 1.442695
        %v1601 = vpow.pop %v1600
        %v1602 = vmul.f32 %v1593, 1.442695
        %v1603 = vpow.pop %v1602
        %v1604 = vmul.f32 %v1594, 1.442695
        %v1605 = vpow.pop %v1604
        %v1606 = vmul.f32 %v1595, 1.442695
        %v1607 = vpow.pop %v1606
        %v1608 = vmul.f32 %v1596, 1.442695
        %v1609 = vpow.pop %v1608
        %v1610 = vmul.f32 %v1597, 1.442695
        %v1611 = vpow.pop %v1610
        %v1612 = vmul.f32 %v1598, 1.442695
        %v1613 = vpow.pop %v1612
        %v1614 = vmul.f32 %v1599, 1.442695
        %v1615 = vpow.pop %v1614
        %v1616 = vsel %vm1567, %v1601, 0.0
        %1617 = vadd.xlane.f32.xlu0 %v1616
        %v1618 = vpop.xlane.xlu0 %1617
        %v1619 = vsel %vm1567, %v1603, 0.0
        %1620 = vadd.xlane.f32.xlu0 %v1619
        %v1621 = vpop.xlane.xlu0 %1620
        %v1622 = vsel %vm1567, %v1605, 0.0
        %1623 = vadd.xlane.f32.xlu0 %v1622
        %v1624 = vpop.xlane.xlu0 %1623
        %v1625 = vsel %vm1567, %v1607, 0.0
        %1626 = vadd.xlane.f32.xlu0 %v1625
        %v1627 = vpop.xlane.xlu0 %1626
        %v1628 = vsel %vm1567, %v1609, 0.0
        %1629 = vadd.xlane.f32.xlu0 %v1628
        %v1630 = vpop.xlane.xlu0 %1629
        %v1631 = vsel %vm1567, %v1611, 0.0
        %1632 = vadd.xlane.f32.xlu0 %v1631
        %v1633 = vpop.xlane.xlu0 %1632
        %v1634 = vsel %vm1567, %v1613, 0.0
        %1635 = vadd.xlane.f32.xlu0 %v1634
        %v1636 = vpop.xlane.xlu0 %1635
        %v1637 = vsel %vm1567, %v1615, 0.0
        %1638 = vadd.xlane.f32.xlu0 %v1637
        %v1639 = vpop.xlane.xlu0 %1638
        %1640 = vrot.lane.b32.xlu0 %v1056, 120
        %v1641 = vpop.permute.xlu0 %1640
        %1642 = vrot.lane.b32.xlu0 %v1057, 120
        %v1643 = vpop.permute.xlu0 %1642
        %1644 = vrot.lane.b32.xlu0 %v1058, 120
        %v1645 = vpop.permute.xlu0 %1644
        %1646 = vrot.lane.b32.xlu0 %v1059, 120
        %v1647 = vpop.permute.xlu0 %1646
        %1648 = vrot.lane.b32.xlu0 %v1060, 120
        %v1649 = vpop.permute.xlu0 %1648
        %1650 = vrot.lane.b32.xlu0 %v1061, 120
        %v1651 = vpop.permute.xlu0 %1650
        %1652 = vrot.lane.b32.xlu0 %v1062, 120
        %v1653 = vpop.permute.xlu0 %1652
        %1654 = vrot.lane.b32.xlu0 %v1063, 120
        %v1655 = vpop.permute.xlu0 %1654
        %v1665 = vsel %vm1567, %v1601, 0
        %v1668 = vsel %vm1567, %v1603, 0
        %v1671 = vsel %vm1567, %v1605, 0
        %v1674 = vsel %vm1567, %v1607, 0
        %v1677 = vsel %vm1567, %v1609, 0
        %v1680 = vsel %vm1567, %v1611, 0
        %v1683 = vsel %vm1567, %v1613, 0
        %v1686 = vsel %vm1567, %v1615, 0
        %1688 = vmatpush.msra.mxu0 0.0
        %1689 = vmatpush.msra.mxu0 0.0
        %1690 = vmatpush.msra.mxu0 0.0
        %1691 = vmatpush.msra.mxu0 0.0
        %1692 = vmatpush.msra.mxu0 0.0
        %1693 = vmatpush.msra.mxu0 0.0
        %1694 = vmatpush.msra.mxu0 0.0
        %1695 = vmatpush.msra.mxu0 0.0
        %v1696 = vand.u32 %v1655, 4294901760
        %1697 = vmatpush.msra.mxu0 %v1696
        %v1698 = vand.u32 %v1653, 4294901760
        %1699 = vmatpush.msra.mxu0 %v1698
        %v1700 = vand.u32 %v1651, 4294901760
        %1701 = vmatpush.msra.mxu0 %v1700
        %v1702 = vand.u32 %v1649, 4294901760
        %1703 = vmatpush.msra.mxu0 %v1702
        %v1704 = vand.u32 %v1647, 4294901760
        %1705 = vmatpush.msra.mxu0 %v1704
        %v1706 = vand.u32 %v1645, 4294901760
        %1707 = vmatpush.msra.mxu0 %v1706
        %v1708 = vand.u32 %v1643, 4294901760
        %1709 = vmatpush.msra.mxu0 %v1708
        %v1710 = vand.u32 %v1641, 4294901760
        %1711 = vmatpush.msra.mxu0 %v1710
        %v1712 = vand.u32 %v1665, 4294901760
        %v1713 = vsub.f32 %v1665, %v1712
        %v1714 = vand.u32 %v1713, 4294901760
        %v1715 = vsub.f32 %v1713, %v1714
        %v1716 = vand.u32 %v1715, 4294901760
        %1717 = vmatmul.f32.gmra.mxu0 %v1716
        %v1718 = vpop.f32.mrf.mxu0
        %v1719 = vadd.f32 0.0, %v1718
        %v1720 = vand.u32 %v1668, 4294901760
        %v1721 = vsub.f32 %v1668, %v1720
        %v1722 = vand.u32 %v1721, 4294901760
        %v1723 = vsub.f32 %v1721, %v1722
        %v1724 = vand.u32 %v1723, 4294901760
        %1725 = vmatmul.f32.gmra.mxu0 %v1724
        %v1726 = vpop.f32.mrf.mxu0
        %v1727 = vadd.f32 0.0, %v1726
        %v1728 = vand.u32 %v1671, 4294901760
        %v1729 = vsub.f32 %v1671, %v1728
        %v1730 = vand.u32 %v1729, 4294901760
        %v1731 = vsub.f32 %v1729, %v1730
        %v1732 = vand.u32 %v1731, 4294901760
        %1733 = vmatmul.f32.gmra.mxu0 %v1732
        %v1734 = vpop.f32.mrf.mxu0
        %v1735 = vadd.f32 0.0, %v1734
        %v1736 = vand.u32 %v1674, 4294901760
        %v1737 = vsub.f32 %v1674, %v1736
        %v1738 = vand.u32 %v1737, 4294901760
        %v1739 = vsub.f32 %v1737, %v1738
        %v1740 = vand.u32 %v1739, 4294901760
        %1741 = vmatmul.f32.gmra.mxu0 %v1740
        %v1742 = vpop.f32.mrf.mxu0
        %v1743 = vadd.f32 0.0, %v1742
        %v1744 = vand.u32 %v1677, 4294901760
        %v1745 = vsub.f32 %v1677, %v1744
        %v1746 = vand.u32 %v1745, 4294901760
        %v1747 = vsub.f32 %v1745, %v1746
        %v1748 = vand.u32 %v1747, 4294901760
        %1749 = vmatmul.f32.gmra.mxu0 %v1748
        %v1750 = vpop.f32.mrf.mxu0
        %v1751 = vadd.f32 0.0, %v1750
        %v1752 = vand.u32 %v1680, 4294901760
        %v1753 = vsub.f32 %v1680, %v1752
        %v1754 = vand.u32 %v1753, 4294901760
        %v1755 = vsub.f32 %v1753, %v1754
        %v1756 = vand.u32 %v1755, 4294901760
        %1757 = vmatmul.f32.gmra.mxu0 %v1756
        %v1758 = vpop.f32.mrf.mxu0
        %v1759 = vadd.f32 0.0, %v1758
        %v1760 = vand.u32 %v1683, 4294901760
        %v1761 = vsub.f32 %v1683, %v1760
        %v1762 = vand.u32 %v1761, 4294901760
        %v1763 = vsub.f32 %v1761, %v1762
        %v1764 = vand.u32 %v1763, 4294901760
        %1765 = vmatmul.f32.gmra.mxu0 %v1764
        %v1766 = vpop.f32.mrf.mxu0
        %v1767 = vadd.f32 0.0, %v1766
        %v1768 = vand.u32 %v1686, 4294901760
        %v1769 = vsub.f32 %v1686, %v1768
        %v1770 = vand.u32 %v1769, 4294901760
        %v1771 = vsub.f32 %v1769, %v1770
        %v1772 = vand.u32 %v1771, 4294901760
        %1773 = vmatmul.f32.gmra.mxu0 %v1772
        %v1774 = vpop.f32.mrf.mxu0
        %v1775 = vadd.f32 0.0, %v1774
        %1776 = vdwg.mxu0
        %1777 = vmatpush.msra.mxu0 0.0
        %1778 = vmatpush.msra.mxu0 0.0
        %1779 = vmatpush.msra.mxu0 0.0
        %1780 = vmatpush.msra.mxu0 0.0
        %1781 = vmatpush.msra.mxu0 0.0
        %1782 = vmatpush.msra.mxu0 0.0
        %1783 = vmatpush.msra.mxu0 0.0
        %1784 = vmatpush.msra.mxu0 0.0
        %v1785 = vand.u32 %v1655, 4294901760
        %v1786 = vsub.f32 %v1655, %v1785
        %v1787 = vand.u32 %v1786, 4294901760
        %v1788 = vsub.f32 %v1786, %v1787
        %v1789 = vand.u32 %v1788, 4294901760
        %1790 = vmatpush.msra.mxu0 %v1789
        %v1791 = vand.u32 %v1653, 4294901760
        %v1792 = vsub.f32 %v1653, %v1791
        %v1793 = vand.u32 %v1792, 4294901760
        %v1794 = vsub.f32 %v1792, %v1793
        %v1795 = vand.u32 %v1794, 4294901760
        %1796 = vmatpush.msra.mxu0 %v1795
        %v1797 = vand.u32 %v1651, 4294901760
        %v1798 = vsub.f32 %v1651, %v1797
        %v1799 = vand.u32 %v1798, 4294901760
        %v1800 = vsub.f32 %v1798, %v1799
        %v1801 = vand.u32 %v1800, 4294901760
        %1802 = vmatpush.msra.mxu0 %v1801
        %v1803 = vand.u32 %v1649, 4294901760
        %v1804 = vsub.f32 %v1649, %v1803
        %v1805 = vand.u32 %v1804, 4294901760
        %v1806 = vsub.f32 %v1804, %v1805
        %v1807 = vand.u32 %v1806, 4294901760
        %1808 = vmatpush.msra.mxu0 %v1807
        %v1809 = vand.u32 %v1647, 4294901760
        %v1810 = vsub.f32 %v1647, %v1809
        %v1811 = vand.u32 %v1810, 4294901760
        %v1812 = vsub.f32 %v1810, %v1811
        %v1813 = vand.u32 %v1812, 4294901760
        %1814 = vmatpush.msra.mxu0 %v1813
        %v1815 = vand.u32 %v1645, 4294901760
        %v1816 = vsub.f32 %v1645, %v1815
        %v1817 = vand.u32 %v1816, 4294901760
        %v1818 = vsub.f32 %v1816, %v1817
        %v1819 = vand.u32 %v1818, 4294901760
        %1820 = vmatpush.msra.mxu0 %v1819
        %v1821 = vand.u32 %v1643, 4294901760
        %v1822 = vsub.f32 %v1643, %v1821
        %v1823 = vand.u32 %v1822, 4294901760
        %v1824 = vsub.f32 %v1822, %v1823
        %v1825 = vand.u32 %v1824, 4294901760
        %1826 = vmatpush.msra.mxu0 %v1825
        %v1827 = vand.u32 %v1641, 4294901760
        %v1828 = vsub.f32 %v1641, %v1827
        %v1829 = vand.u32 %v1828, 4294901760
        %v1830 = vsub.f32 %v1828, %v1829
        %v1831 = vand.u32 %v1830, 4294901760
        %1832 = vmatpush.msra.mxu0 %v1831
        %v1833 = vand.u32 %v1665, 4294901760
        %1834 = vmatmul.f32.gmra.mxu0 %v1833
        %v1835 = vpop.f32.mrf.mxu0
        %v1836 = vadd.f32 %v1719, %v1835
        %v1837 = vand.u32 %v1668, 4294901760
        %1838 = vmatmul.f32.gmra.mxu0 %v1837
        %v1839 = vpop.f32.mrf.mxu0
        %v1840 = vadd.f32 %v1727, %v1839
        %v1841 = vand.u32 %v1671, 4294901760
        %1842 = vmatmul.f32.gmra.mxu0 %v1841
        %v1843 = vpop.f32.mrf.mxu0
        %v1844 = vadd.f32 %v1735, %v1843
        %v1845 = vand.u32 %v1674, 4294901760
        %1846 = vmatmul.f32.gmra.mxu0 %v1845
        %v1847 = vpop.f32.mrf.mxu0
        %v1848 = vadd.f32 %v1743, %v1847
        %v1849 = vand.u32 %v1677, 4294901760
        %1850 = vmatmul.f32.gmra.mxu0 %v1849
        %v1851 = vpop.f32.mrf.mxu0
        %v1852 = vadd.f32 %v1751, %v1851
        %v1853 = vand.u32 %v1680, 4294901760
        %1854 = vmatmul.f32.gmra.mxu0 %v1853
        %v1855 = vpop.f32.mrf.mxu0
        %v1856 = vadd.f32 %v1759, %v1855
        %v1857 = vand.u32 %v1683, 4294901760
        %1858 = vmatmul.f32.gmra.mxu0 %v1857
        %v1859 = vpop.f32.mrf.mxu0
        %v1860 = vadd.f32 %v1767, %v1859
        %v1861 = vand.u32 %v1686, 4294901760
        %1862 = vmatmul.f32.gmra.mxu0 %v1861
        %v1863 = vpop.f32.mrf.mxu0
        %v1864 = vadd.f32 %v1775, %v1863
        %1865 = vdwg.mxu0
        %1866 = vmatpush.msra.mxu0 0.0
        %1867 = vmatpush.msra.mxu0 0.0
        %1868 = vmatpush.msra.mxu0 0.0
        %1869 = vmatpush.msra.mxu0 0.0
        %1870 = vmatpush.msra.mxu0 0.0
        %1871 = vmatpush.msra.mxu0 0.0
        %1872 = vmatpush.msra.mxu0 0.0
        %1873 = vmatpush.msra.mxu0 0.0
        %v1874 = vand.u32 %v1655, 4294901760
        %v1875 = vsub.f32 %v1655, %v1874
        %1876 = vmatpush.msra.mxu0 %v1875
        %v1877 = vand.u32 %v1653, 4294901760
        %v1878 = vsub.f32 %v1653, %v1877
        %1879 = vmatpush.msra.mxu0 %v1878
        %v1880 = vand.u32 %v1651, 4294901760
        %v1881 = vsub.f32 %v1651, %v1880
        %1882 = vmatpush.msra.mxu0 %v1881
        %v1883 = vand.u32 %v1649, 4294901760
        %v1884 = vsub.f32 %v1649, %v1883
        %1885 = vmatpush.msra.mxu0 %v1884
        %v1886 = vand.u32 %v1647, 4294901760
        %v1887 = vsub.f32 %v1647, %v1886
        %1888 = vmatpush.msra.mxu0 %v1887
        %v1889 = vand.u32 %v1645, 4294901760
        %v1890 = vsub.f32 %v1645, %v1889
        %1891 = vmatpush.msra.mxu0 %v1890
        %v1892 = vand.u32 %v1643, 4294901760
        %v1893 = vsub.f32 %v1643, %v1892
        %1894 = vmatpush.msra.mxu0 %v1893
        %v1895 = vand.u32 %v1641, 4294901760
        %v1896 = vsub.f32 %v1641, %v1895
        %1897 = vmatpush.msra.mxu0 %v1896
        %v1898 = vand.u32 %v1665, 4294901760
        %v1899 = vsub.f32 %v1665, %v1898
        %1900 = vmatmul.f32.gmra.mxu0 %v1899
        %v1901 = vpop.f32.mrf.mxu0
        %v1902 = vadd.f32 %v1836, %v1901
        %v1903 = vand.u32 %v1668, 4294901760
        %v1904 = vsub.f32 %v1668, %v1903
        %1905 = vmatmul.f32.gmra.mxu0 %v1904
        %v1906 = vpop.f32.mrf.mxu0
        %v1907 = vadd.f32 %v1840, %v1906
        %v1908 = vand.u32 %v1671, 4294901760
        %v1909 = vsub.f32 %v1671, %v1908
        %1910 = vmatmul.f32.gmra.mxu0 %v1909
        %v1911 = vpop.f32.mrf.mxu0
        %v1912 = vadd.f32 %v1844, %v1911
        %v1913 = vand.u32 %v1674, 4294901760
        %v1914 = vsub.f32 %v1674, %v1913
        %1915 = vmatmul.f32.gmra.mxu0 %v1914
        %v1916 = vpop.f32.mrf.mxu0
        %v1917 = vadd.f32 %v1848, %v1916
        %v1918 = vand.u32 %v1677, 4294901760
        %v1919 = vsub.f32 %v1677, %v1918
        %1920 = vmatmul.f32.gmra.mxu0 %v1919
        %v1921 = vpop.f32.mrf.mxu0
        %v1922 = vadd.f32 %v1852, %v1921
        %v1923 = vand.u32 %v1680, 4294901760
        %v1924 = vsub.f32 %v1680, %v1923
        %1925 = vmatmul.f32.gmra.mxu0 %v1924
        %v1926 = vpop.f32.mrf.mxu0
        %v1927 = vadd.f32 %v1856, %v1926
        %v1928 = vand.u32 %v1683, 4294901760
        %v1929 = vsub.f32 %v1683, %v1928
        %1930 = vmatmul.f32.gmra.mxu0 %v1929
        %v1931 = vpop.f32.mrf.mxu0
        %v1932 = vadd.f32 %v1860, %v1931
        %v1933 = vand.u32 %v1686, 4294901760
        %v1934 = vsub.f32 %v1686, %v1933
        %1935 = vmatmul.f32.gmra.mxu0 %v1934
        %v1936 = vpop.f32.mrf.mxu0
        %v1937 = vadd.f32 %v1864, %v1936
        %1938 = vdwg.mxu0
        %1939 = vmatpush.msra.mxu0 0.0
        %1940 = vmatpush.msra.mxu0 0.0
        %1941 = vmatpush.msra.mxu0 0.0
        %1942 = vmatpush.msra.mxu0 0.0
        %1943 = vmatpush.msra.mxu0 0.0
        %1944 = vmatpush.msra.mxu0 0.0
        %1945 = vmatpush.msra.mxu0 0.0
        %1946 = vmatpush.msra.mxu0 0.0
        %v1947 = vand.u32 %v1655, 4294901760
        %1948 = vmatpush.msra.mxu0 %v1947
        %v1949 = vand.u32 %v1653, 4294901760
        %1950 = vmatpush.msra.mxu0 %v1949
        %v1951 = vand.u32 %v1651, 4294901760
        %1952 = vmatpush.msra.mxu0 %v1951
        %v1953 = vand.u32 %v1649, 4294901760
        %1954 = vmatpush.msra.mxu0 %v1953
        %v1955 = vand.u32 %v1647, 4294901760
        %1956 = vmatpush.msra.mxu0 %v1955
        %v1957 = vand.u32 %v1645, 4294901760
        %1958 = vmatpush.msra.mxu0 %v1957
        %v1959 = vand.u32 %v1643, 4294901760
        %1960 = vmatpush.msra.mxu0 %v1959
        %v1961 = vand.u32 %v1641, 4294901760
        %1962 = vmatpush.msra.mxu0 %v1961
        %v1963 = vand.u32 %v1665, 4294901760
        %v1964 = vsub.f32 %v1665, %v1963
        %v1965 = vand.u32 %v1964, 4294901760
        %1966 = vmatmul.f32.gmra.mxu0 %v1965
        %v1967 = vpop.f32.mrf.mxu0
        %v1968 = vadd.f32 %v1902, %v1967
        %v1969 = vand.u32 %v1668, 4294901760
        %v1970 = vsub.f32 %v1668, %v1969
        %v1971 = vand.u32 %v1970, 4294901760
        %1972 = vmatmul.f32.gmra.mxu0 %v1971
        %v1973 = vpop.f32.mrf.mxu0
        %v1974 = vadd.f32 %v1907, %v1973
        %v1975 = vand.u32 %v1671, 4294901760
        %v1976 = vsub.f32 %v1671, %v1975
        %v1977 = vand.u32 %v1976, 4294901760
        %1978 = vmatmul.f32.gmra.mxu0 %v1977
        %v1979 = vpop.f32.mrf.mxu0
        %v1980 = vadd.f32 %v1912, %v1979
        %v1981 = vand.u32 %v1674, 4294901760
        %v1982 = vsub.f32 %v1674, %v1981
        %v1983 = vand.u32 %v1982, 4294901760
        %1984 = vmatmul.f32.gmra.mxu0 %v1983
        %v1985 = vpop.f32.mrf.mxu0
        %v1986 = vadd.f32 %v1917, %v1985
        %v1987 = vand.u32 %v1677, 4294901760
        %v1988 = vsub.f32 %v1677, %v1987
        %v1989 = vand.u32 %v1988, 4294901760
        %1990 = vmatmul.f32.gmra.mxu0 %v1989
        %v1991 = vpop.f32.mrf.mxu0
        %v1992 = vadd.f32 %v1922, %v1991
        %v1993 = vand.u32 %v1680, 4294901760
        %v1994 = vsub.f32 %v1680, %v1993
        %v1995 = vand.u32 %v1994, 4294901760
        %1996 = vmatmul.f32.gmra.mxu0 %v1995
        %v1997 = vpop.f32.mrf.mxu0
        %v1998 = vadd.f32 %v1927, %v1997
        %v1999 = vand.u32 %v1683, 4294901760
        %v2000 = vsub.f32 %v1683, %v1999
        %v2001 = vand.u32 %v2000, 4294901760
        %2002 = vmatmul.f32.gmra.mxu0 %v2001
        %v2003 = vpop.f32.mrf.mxu0
        %v2004 = vadd.f32 %v1932, %v2003
        %v2005 = vand.u32 %v1686, 4294901760
        %v2006 = vsub.f32 %v1686, %v2005
        %v2007 = vand.u32 %v2006, 4294901760
        %2008 = vmatmul.f32.gmra.mxu0 %v2007
        %v2009 = vpop.f32.mrf.mxu0
        %v2010 = vadd.f32 %v1937, %v2009
        %2011 = vdwg.mxu0
        %2012 = vmatpush.msra.mxu0 0.0
        %2013 = vmatpush.msra.mxu0 0.0
        %2014 = vmatpush.msra.mxu0 0.0
        %2015 = vmatpush.msra.mxu0 0.0
        %2016 = vmatpush.msra.mxu0 0.0
        %2017 = vmatpush.msra.mxu0 0.0
        %2018 = vmatpush.msra.mxu0 0.0
        %2019 = vmatpush.msra.mxu0 0.0
        %v2020 = vand.u32 %v1655, 4294901760
        %v2021 = vsub.f32 %v1655, %v2020
        %v2022 = vand.u32 %v2021, 4294901760
        %2023 = vmatpush.msra.mxu0 %v2022
        %v2024 = vand.u32 %v1653, 4294901760
        %v2025 = vsub.f32 %v1653, %v2024
        %v2026 = vand.u32 %v2025, 4294901760
        %2027 = vmatpush.msra.mxu0 %v2026
        %v2028 = vand.u32 %v1651, 4294901760
        %v2029 = vsub.f32 %v1651, %v2028
        %v2030 = vand.u32 %v2029, 4294901760
        %2031 = vmatpush.msra.mxu0 %v2030
        %v2032 = vand.u32 %v1649, 4294901760
        %v2033 = vsub.f32 %v1649, %v2032
        %v2034 = vand.u32 %v2033, 4294901760
        %2035 = vmatpush.msra.mxu0 %v2034
        %v2036 = vand.u32 %v1647, 4294901760
        %v2037 = vsub.f32 %v1647, %v2036
        %v2038 = vand.u32 %v2037, 4294901760
        %2039 = vmatpush.msra.mxu0 %v2038
        %v2040 = vand.u32 %v1645, 4294901760
        %v2041 = vsub.f32 %v1645, %v2040
        %v2042 = vand.u32 %v2041, 4294901760
        %2043 = vmatpush.msra.mxu0 %v2042
        %v2044 = vand.u32 %v1643, 4294901760
        %v2045 = vsub.f32 %v1643, %v2044
        %v2046 = vand.u32 %v2045, 4294901760
        %2047 = vmatpush.msra.mxu0 %v2046
        %v2048 = vand.u32 %v1641, 4294901760
        %v2049 = vsub.f32 %v1641, %v2048
        %v2050 = vand.u32 %v2049, 4294901760
        %2051 = vmatpush.msra.mxu0 %v2050
        %v2052 = vand.u32 %v1665, 4294901760
        %2053 = vmatmul.f32.gmra.mxu0 %v2052
        %v2054 = vpop.f32.mrf.mxu0
        %v2055 = vadd.f32 %v1968, %v2054
        %v2056 = vand.u32 %v1668, 4294901760
        %2057 = vmatmul.f32.gmra.mxu0 %v2056
        %v2058 = vpop.f32.mrf.mxu0
        %v2059 = vadd.f32 %v1974, %v2058
        %v2060 = vand.u32 %v1671, 4294901760
        %2061 = vmatmul.f32.gmra.mxu0 %v2060
        %v2062 = vpop.f32.mrf.mxu0
        %v2063 = vadd.f32 %v1980, %v2062
        %v2064 = vand.u32 %v1674, 4294901760
        %2065 = vmatmul.f32.gmra.mxu0 %v2064
        %v2066 = vpop.f32.mrf.mxu0
        %v2067 = vadd.f32 %v1986, %v2066
        %v2068 = vand.u32 %v1677, 4294901760
        %2069 = vmatmul.f32.gmra.mxu0 %v2068
        %v2070 = vpop.f32.mrf.mxu0
        %v2071 = vadd.f32 %v1992, %v2070
        %v2072 = vand.u32 %v1680, 4294901760
        %2073 = vmatmul.f32.gmra.mxu0 %v2072
        %v2074 = vpop.f32.mrf.mxu0
        %v2075 = vadd.f32 %v1998, %v2074
        %v2076 = vand.u32 %v1683, 4294901760
        %2077 = vmatmul.f32.gmra.mxu0 %v2076
        %v2078 = vpop.f32.mrf.mxu0
        %v2079 = vadd.f32 %v2004, %v2078
        %v2080 = vand.u32 %v1686, 4294901760
        %2081 = vmatmul.f32.gmra.mxu0 %v2080
        %v2082 = vpop.f32.mrf.mxu0
        %v2083 = vadd.f32 %v2010, %v2082
        %2084 = vdwg.mxu0
        %2085 = vmatpush.msra.mxu0 0.0
        %2086 = vmatpush.msra.mxu0 0.0
        %2087 = vmatpush.msra.mxu0 0.0
        %2088 = vmatpush.msra.mxu0 0.0
        %2089 = vmatpush.msra.mxu0 0.0
        %2090 = vmatpush.msra.mxu0 0.0
        %2091 = vmatpush.msra.mxu0 0.0
        %2092 = vmatpush.msra.mxu0 0.0
        %v2093 = vand.u32 %v1655, 4294901760
        %2094 = vmatpush.msra.mxu0 %v2093
        %v2095 = vand.u32 %v1653, 4294901760
        %2096 = vmatpush.msra.mxu0 %v2095
        %v2097 = vand.u32 %v1651, 4294901760
        %2098 = vmatpush.msra.mxu0 %v2097
        %v2099 = vand.u32 %v1649, 4294901760
        %2100 = vmatpush.msra.mxu0 %v2099
        %v2101 = vand.u32 %v1647, 4294901760
        %2102 = vmatpush.msra.mxu0 %v2101
        %v2103 = vand.u32 %v1645, 4294901760
        %2104 = vmatpush.msra.mxu0 %v2103
        %v2105 = vand.u32 %v1643, 4294901760
        %2106 = vmatpush.msra.mxu0 %v2105
        %v2107 = vand.u32 %v1641, 4294901760
        %2108 = vmatpush.msra.mxu0 %v2107
        %v2109 = vand.u32 %v1665, 4294901760
        %2110 = vmatmul.f32.gmra.mxu0 %v2109
        %v2111 = vpop.f32.mrf.mxu0
        %v2112 = vadd.f32 %v2055, %v2111
        %v2113 = vand.u32 %v1668, 4294901760
        %2114 = vmatmul.f32.gmra.mxu0 %v2113
        %v2115 = vpop.f32.mrf.mxu0
        %v2116 = vadd.f32 %v2059, %v2115
        %v2117 = vand.u32 %v1671, 4294901760
        %2118 = vmatmul.f32.gmra.mxu0 %v2117
        %v2119 = vpop.f32.mrf.mxu0
        %v2120 = vadd.f32 %v2063, %v2119
        %v2121 = vand.u32 %v1674, 4294901760
        %2122 = vmatmul.f32.gmra.mxu0 %v2121
        %v2123 = vpop.f32.mrf.mxu0
        %v2124 = vadd.f32 %v2067, %v2123
        %v2125 = vand.u32 %v1677, 4294901760
        %2126 = vmatmul.f32.gmra.mxu0 %v2125
        %v2127 = vpop.f32.mrf.mxu0
        %v2128 = vadd.f32 %v2071, %v2127
        %v2129 = vand.u32 %v1680, 4294901760
        %2130 = vmatmul.f32.gmra.mxu0 %v2129
        %v2131 = vpop.f32.mrf.mxu0
        %v2132 = vadd.f32 %v2075, %v2131
        %v2133 = vand.u32 %v1683, 4294901760
        %2134 = vmatmul.f32.gmra.mxu0 %v2133
        %v2135 = vpop.f32.mrf.mxu0
        %v2136 = vadd.f32 %v2079, %v2135
        %v2137 = vand.u32 %v1686, 4294901760
        %2138 = vmatmul.f32.gmra.mxu0 %v2137
        %v2139 = vpop.f32.mrf.mxu0
        %v2140 = vadd.f32 %v2083, %v2139
        %2141 = vdwg.mxu0
        %v2142 = vrcp.pop %v1618
        %v2143 = vmul.f32 %v1618, %v2142
        %v2144 = vsub.f32 1.0, %v2143
        %v2145 = vmul.f32 %v2142, %v2144
        %v2146 = vadd.f32 %v2142, %v2145
        %vm2147 = vweird.f32 %v1618
        %vm2148 = vweird.f32 %v2142
        %vm2149 = vmor %vm2147, %vm2148
        %v2150 = vsel %vm2149, %v2142, %v2146
        %v2151 = vand.u32 2147483647, %v1618
        %vm2152 = vcmp.eq.f32.partialorder %v2151, 8.507059e+37
        %v2153 = vand.u32 %v1618, 2147483648
        %v2154 = vor.u32 1.1754944e-38, %v2153
        %v2155 = vsel %vm2152, %v2154, %v2150
        %v2156 = vmul.f32 1.0, %v2155
        %v2157 = vrcp.pop %v1621
        %v2158 = vmul.f32 %v1621, %v2157
        %v2159 = vsub.f32 1.0, %v2158
        %v2160 = vmul.f32 %v2157, %v2159
        %v2161 = vadd.f32 %v2157, %v2160
        %vm2162 = vweird.f32 %v1621
        %vm2163 = vweird.f32 %v2157
        %vm2164 = vmor %vm2162, %vm2163
        %v2165 = vsel %vm2164, %v2157, %v2161
        %v2166 = vand.u32 2147483647, %v1621
        %vm2167 = vcmp.eq.f32.partialorder %v2166, 8.507059e+37
        %v2168 = vand.u32 %v1621, 2147483648
        %v2169 = vor.u32 1.1754944e-38, %v2168
        %v2170 = vsel %vm2167, %v2169, %v2165
        %v2171 = vmul.f32 1.0, %v2170
        %v2172 = vrcp.pop %v1624
        %v2173 = vmul.f32 %v1624, %v2172
        %v2174 = vsub.f32 1.0, %v2173
        %v2175 = vmul.f32 %v2172, %v2174
        %v2176 = vadd.f32 %v2172, %v2175
        %vm2177 = vweird.f32 %v1624
        %vm2178 = vweird.f32 %v2172
        %vm2179 = vmor %vm2177, %vm2178
        %v2180 = vsel %vm2179, %v2172, %v2176
        %v2181 = vand.u32 2147483647, %v1624
        %vm2182 = vcmp.eq.f32.partialorder %v2181, 8.507059e+37
        %v2183 = vand.u32 %v1624, 2147483648
        %v2184 = vor.u32 1.1754944e-38, %v2183
        %v2185 = vsel %vm2182, %v2184, %v2180
        %v2186 = vmul.f32 1.0, %v2185
        %v2187 = vrcp.pop %v1627
        %v2188 = vmul.f32 %v1627, %v2187
        %v2189 = vsub.f32 1.0, %v2188
        %v2190 = vmul.f32 %v2187, %v2189
        %v2191 = vadd.f32 %v2187, %v2190
        %vm2192 = vweird.f32 %v1627
        %vm2193 = vweird.f32 %v2187
        %vm2194 = vmor %vm2192, %vm2193
        %v2195 = vsel %vm2194, %v2187, %v2191
        %v2196 = vand.u32 2147483647, %v1627
        %vm2197 = vcmp.eq.f32.partialorder %v2196, 8.507059e+37
        %v2198 = vand.u32 %v1627, 2147483648
        %v2199 = vor.u32 1.1754944e-38, %v2198
        %v2200 = vsel %vm2197, %v2199, %v2195
        %v2201 = vmul.f32 1.0, %v2200
        %v2202 = vrcp.pop %v1630
        %v2203 = vmul.f32 %v1630, %v2202
        %v2204 = vsub.f32 1.0, %v2203
        %v2205 = vmul.f32 %v2202, %v2204
        %v2206 = vadd.f32 %v2202, %v2205
        %vm2207 = vweird.f32 %v1630
        %vm2208 = vweird.f32 %v2202
        %vm2209 = vmor %vm2207, %vm2208
        %v2210 = vsel %vm2209, %v2202, %v2206
        %v2211 = vand.u32 2147483647, %v1630
        %vm2212 = vcmp.eq.f32.partialorder %v2211, 8.507059e+37
        %v2213 = vand.u32 %v1630, 2147483648
        %v2214 = vor.u32 1.1754944e-38, %v2213
        %v2215 = vsel %vm2212, %v2214, %v2210
        %v2216 = vmul.f32 1.0, %v2215
        %v2217 = vrcp.pop %v1633
        %v2218 = vmul.f32 %v1633, %v2217
        %v2219 = vsub.f32 1.0, %v2218
        %v2220 = vmul.f32 %v2217, %v2219
        %v2221 = vadd.f32 %v2217, %v2220
        %vm2222 = vweird.f32 %v1633
        %vm2223 = vweird.f32 %v2217
        %vm2224 = vmor %vm2222, %vm2223
        %v2225 = vsel %vm2224, %v2217, %v2221
        %v2226 = vand.u32 2147483647, %v1633
        %vm2227 = vcmp.eq.f32.partialorder %v2226, 8.507059e+37
        %v2228 = vand.u32 %v1633, 2147483648
        %v2229 = vor.u32 1.1754944e-38, %v2228
        %v2230 = vsel %vm2227, %v2229, %v2225
        %v2231 = vmul.f32 1.0, %v2230
        %v2232 = vrcp.pop %v1636
        %v2233 = vmul.f32 %v1636, %v2232
        %v2234 = vsub.f32 1.0, %v2233
        %v2235 = vmul.f32 %v2232, %v2234
        %v2236 = vadd.f32 %v2232, %v2235
        %vm2237 = vweird.f32 %v1636
        %vm2238 = vweird.f32 %v2232
        %vm2239 = vmor %vm2237, %vm2238
        %v2240 = vsel %vm2239, %v2232, %v2236
        %v2241 = vand.u32 2147483647, %v1636
        %vm2242 = vcmp.eq.f32.partialorder %v2241, 8.507059e+37
        %v2243 = vand.u32 %v1636, 2147483648
        %v2244 = vor.u32 1.1754944e-38, %v2243
        %v2245 = vsel %vm2242, %v2244, %v2240
        %v2246 = vmul.f32 1.0, %v2245
        %v2247 = vrcp.pop %v1639
        %v2248 = vmul.f32 %v1639, %v2247
        %v2249 = vsub.f32 1.0, %v2248
        %v2250 = vmul.f32 %v2247, %v2249
        %v2251 = vadd.f32 %v2247, %v2250
        %vm2252 = vweird.f32 %v1639
        %vm2253 = vweird.f32 %v2247
        %vm2254 = vmor %vm2252, %vm2253
        %v2255 = vsel %vm2254, %v2247, %v2251
        %v2256 = vand.u32 2147483647, %v1639
        %vm2257 = vcmp.eq.f32.partialorder %v2256, 8.507059e+37
        %v2258 = vand.u32 %v1639, 2147483648
        %v2259 = vor.u32 1.1754944e-38, %v2258
        %v2260 = vsel %vm2257, %v2259, %v2255
        %v2261 = vmul.f32 1.0, %v2260
        %v2262 = vmul.f32 %v2112, %v2156
        %v2263 = vmul.f32 %v2116, %v2171
        %v2264 = vmul.f32 %v2120, %v2186
        %v2265 = vmul.f32 %v2124, %v2201
        %v2266 = vmul.f32 %v2128, %v2216
        %v2267 = vmul.f32 %v2132, %v2231
        %v2268 = vmul.f32 %v2136, %v2246
        %v2269 = vmul.f32 %v2140, %v2261
        %2270 = vrot.lane.b32.xlu0 %v1026, 124
        %v2271 = vpop.permute.xlu0 %2270
        %2272 = vrot.lane.b32.xlu0 %v1030, 124
        %v2273 = vpop.permute.xlu0 %2272
        %2274 = vrot.lane.b32.xlu0 %v1034, 124
        %v2275 = vpop.permute.xlu0 %2274
        %2276 = vrot.lane.b32.xlu0 %v1038, 124
        %v2277 = vpop.permute.xlu0 %2276
        %2278 = vrot.lane.b32.xlu0 %v1042, 124
        %v2279 = vpop.permute.xlu0 %2278
        %2280 = vrot.lane.b32.xlu0 %v1046, 124
        %v2281 = vpop.permute.xlu0 %2280
        %2282 = vrot.lane.b32.xlu0 %v1050, 124
        %v2283 = vpop.permute.xlu0 %2282
        %2284 = vrot.lane.b32.xlu0 %v1054, 124
        %v2285 = vpop.permute.xlu0 %2284
        %2286 = vrot.lane.b32.xlu0 %v1056, 124
        %v2287 = vpop.permute.xlu0 %2286
        %2288 = vrot.lane.b32.xlu0 %v1057, 124
        %v2289 = vpop.permute.xlu0 %2288
        %2290 = vrot.lane.b32.xlu0 %v1058, 124
        %v2291 = vpop.permute.xlu0 %2290
        %2292 = vrot.lane.b32.xlu0 %v1059, 124
        %v2293 = vpop.permute.xlu0 %2292
        %2294 = vrot.lane.b32.xlu0 %v1060, 124
        %v2295 = vpop.permute.xlu0 %2294
        %2296 = vrot.lane.b32.xlu0 %v1061, 124
        %v2297 = vpop.permute.xlu0 %2296
        %2298 = vrot.lane.b32.xlu0 %v1062, 124
        %v2299 = vpop.permute.xlu0 %2298
        %2300 = vrot.lane.b32.xlu0 %v1063, 124
        %v2301 = vpop.permute.xlu0 %2300
        %v2302 = vsel %vm1064, %v2271, 0
        %v2304 = vsel %vm1064, %v2273, 0
        %v2306 = vsel %vm1064, %v2275, 0
        %v2308 = vsel %vm1064, %v2277, 0
        %v2310 = vsel %vm1064, %v2279, 0
        %v2312 = vsel %vm1064, %v2281, 0
        %v2314 = vsel %vm1064, %v2283, 0
        %v2316 = vsel %vm1064, %v2285, 0
        %v2318 = vsel %vm1064, %v2287, 0
        %v2320 = vsel %vm1064, %v2289, 0
        %v2322 = vsel %vm1064, %v2291, 0
        %v2324 = vsel %vm1064, %v2293, 0
        %v2326 = vsel %vm1064, %v2295, 0
        %v2328 = vsel %vm1064, %v2297, 0
        %v2330 = vsel %vm1064, %v2299, 0
        %v2332 = vsel %vm1064, %v2301, 0
        %2334 = vmatpush.xpose.msra.mxu0 0.0
        %2335 = vmatpush.xpose.msra.mxu0 0.0
        %2336 = vmatpush.xpose.msra.mxu0 0.0
        %2337 = vmatpush.xpose.msra.mxu0 0.0
        %2338 = vmatpush.xpose.msra.mxu0 0.0
        %2339 = vmatpush.xpose.msra.mxu0 0.0
        %2340 = vmatpush.xpose.msra.mxu0 0.0
        %2341 = vmatpush.xpose.msra.mxu0 0.0
        %v2342 = vand.u32 %v2332, 4294901760
        %2343 = vmatpush.xpose.msra.mxu0 %v2342
        %v2344 = vand.u32 %v2330, 4294901760
        %2345 = vmatpush.xpose.msra.mxu0 %v2344
        %v2346 = vand.u32 %v2328, 4294901760
        %2347 = vmatpush.xpose.msra.mxu0 %v2346
        %v2348 = vand.u32 %v2326, 4294901760
        %2349 = vmatpush.xpose.msra.mxu0 %v2348
        %v2350 = vand.u32 %v2324, 4294901760
        %2351 = vmatpush.xpose.msra.mxu0 %v2350
        %v2352 = vand.u32 %v2322, 4294901760
        %2353 = vmatpush.xpose.msra.mxu0 %v2352
        %v2354 = vand.u32 %v2320, 4294901760
        %2355 = vmatpush.xpose.msra.mxu0 %v2354
        %v2356 = vand.u32 %v2318, 4294901760
        %2357 = vmatpush.xpose.msra.mxu0 %v2356
        %v2358 = vand.u32 %v2302, 4294901760
        %v2359 = vsub.f32 %v2302, %v2358
        %v2360 = vand.u32 %v2359, 4294901760
        %v2361 = vsub.f32 %v2359, %v2360
        %v2362 = vand.u32 %v2361, 4294901760
        %2363 = vmatmul.f32.gmra.mxu0 %v2362
        %v2364 = vpop.f32.mrf.mxu0
        %v2365 = vadd.f32 0.0, %v2364
        %v2366 = vand.u32 %v2304, 4294901760
        %v2367 = vsub.f32 %v2304, %v2366
        %v2368 = vand.u32 %v2367, 4294901760
        %v2369 = vsub.f32 %v2367, %v2368
        %v2370 = vand.u32 %v2369, 4294901760
        %2371 = vmatmul.f32.gmra.mxu0 %v2370
        %v2372 = vpop.f32.mrf.mxu0
        %v2373 = vadd.f32 0.0, %v2372
        %v2374 = vand.u32 %v2306, 4294901760
        %v2375 = vsub.f32 %v2306, %v2374
        %v2376 = vand.u32 %v2375, 4294901760
        %v2377 = vsub.f32 %v2375, %v2376
        %v2378 = vand.u32 %v2377, 4294901760
        %2379 = vmatmul.f32.gmra.mxu0 %v2378
        %v2380 = vpop.f32.mrf.mxu0
        %v2381 = vadd.f32 0.0, %v2380
        %v2382 = vand.u32 %v2308, 4294901760
        %v2383 = vsub.f32 %v2308, %v2382
        %v2384 = vand.u32 %v2383, 4294901760
        %v2385 = vsub.f32 %v2383, %v2384
        %v2386 = vand.u32 %v2385, 4294901760
        %2387 = vmatmul.f32.gmra.mxu0 %v2386
        %v2388 = vpop.f32.mrf.mxu0
        %v2389 = vadd.f32 0.0, %v2388
        %v2390 = vand.u32 %v2310, 4294901760
        %v2391 = vsub.f32 %v2310, %v2390
        %v2392 = vand.u32 %v2391, 4294901760
        %v2393 = vsub.f32 %v2391, %v2392
        %v2394 = vand.u32 %v2393, 4294901760
        %2395 = vmatmul.f32.gmra.mxu0 %v2394
        %v2396 = vpop.f32.mrf.mxu0
        %v2397 = vadd.f32 0.0, %v2396
        %v2398 = vand.u32 %v2312, 4294901760
        %v2399 = vsub.f32 %v2312, %v2398
        %v2400 = vand.u32 %v2399, 4294901760
        %v2401 = vsub.f32 %v2399, %v2400
        %v2402 = vand.u32 %v2401, 4294901760
        %2403 = vmatmul.f32.gmra.mxu0 %v2402
        %v2404 = vpop.f32.mrf.mxu0
        %v2405 = vadd.f32 0.0, %v2404
        %v2406 = vand.u32 %v2314, 4294901760
        %v2407 = vsub.f32 %v2314, %v2406
        %v2408 = vand.u32 %v2407, 4294901760
        %v2409 = vsub.f32 %v2407, %v2408
        %v2410 = vand.u32 %v2409, 4294901760
        %2411 = vmatmul.f32.gmra.mxu0 %v2410
        %v2412 = vpop.f32.mrf.mxu0
        %v2413 = vadd.f32 0.0, %v2412
        %v2414 = vand.u32 %v2316, 4294901760
        %v2415 = vsub.f32 %v2316, %v2414
        %v2416 = vand.u32 %v2415, 4294901760
        %v2417 = vsub.f32 %v2415, %v2416
        %v2418 = vand.u32 %v2417, 4294901760
        %2419 = vmatmul.f32.gmra.mxu0 %v2418
        %v2420 = vpop.f32.mrf.mxu0
        %v2421 = vadd.f32 0.0, %v2420
        %2422 = vdwg.mxu0
        %2423 = vmatpush.xpose.msra.mxu0 0.0
        %2424 = vmatpush.xpose.msra.mxu0 0.0
        %2425 = vmatpush.xpose.msra.mxu0 0.0
        %2426 = vmatpush.xpose.msra.mxu0 0.0
        %2427 = vmatpush.xpose.msra.mxu0 0.0
        %2428 = vmatpush.xpose.msra.mxu0 0.0
        %2429 = vmatpush.xpose.msra.mxu0 0.0
        %2430 = vmatpush.xpose.msra.mxu0 0.0
        %v2431 = vand.u32 %v2332, 4294901760
        %v2432 = vsub.f32 %v2332, %v2431
        %v2433 = vand.u32 %v2432, 4294901760
        %v2434 = vsub.f32 %v2432, %v2433
        %v2435 = vand.u32 %v2434, 4294901760
        %2436 = vmatpush.xpose.msra.mxu0 %v2435
        %v2437 = vand.u32 %v2330, 4294901760
        %v2438 = vsub.f32 %v2330, %v2437
        %v2439 = vand.u32 %v2438, 4294901760
        %v2440 = vsub.f32 %v2438, %v2439
        %v2441 = vand.u32 %v2440, 4294901760
        %2442 = vmatpush.xpose.msra.mxu0 %v2441
        %v2443 = vand.u32 %v2328, 4294901760
        %v2444 = vsub.f32 %v2328, %v2443
        %v2445 = vand.u32 %v2444, 4294901760
        %v2446 = vsub.f32 %v2444, %v2445
        %v2447 = vand.u32 %v2446, 4294901760
        %2448 = vmatpush.xpose.msra.mxu0 %v2447
        %v2449 = vand.u32 %v2326, 4294901760
        %v2450 = vsub.f32 %v2326, %v2449
        %v2451 = vand.u32 %v2450, 4294901760
        %v2452 = vsub.f32 %v2450, %v2451
        %v2453 = vand.u32 %v2452, 4294901760
        %2454 = vmatpush.xpose.msra.mxu0 %v2453
        %v2455 = vand.u32 %v2324, 4294901760
        %v2456 = vsub.f32 %v2324, %v2455
        %v2457 = vand.u32 %v2456, 4294901760
        %v2458 = vsub.f32 %v2456, %v2457
        %v2459 = vand.u32 %v2458, 4294901760
        %2460 = vmatpush.xpose.msra.mxu0 %v2459
        %v2461 = vand.u32 %v2322, 4294901760
        %v2462 = vsub.f32 %v2322, %v2461
        %v2463 = vand.u32 %v2462, 4294901760
        %v2464 = vsub.f32 %v2462, %v2463
        %v2465 = vand.u32 %v2464, 4294901760
        %2466 = vmatpush.xpose.msra.mxu0 %v2465
        %v2467 = vand.u32 %v2320, 4294901760
        %v2468 = vsub.f32 %v2320, %v2467
        %v2469 = vand.u32 %v2468, 4294901760
        %v2470 = vsub.f32 %v2468, %v2469
        %v2471 = vand.u32 %v2470, 4294901760
        %2472 = vmatpush.xpose.msra.mxu0 %v2471
        %v2473 = vand.u32 %v2318, 4294901760
        %v2474 = vsub.f32 %v2318, %v2473
        %v2475 = vand.u32 %v2474, 4294901760
        %v2476 = vsub.f32 %v2474, %v2475
        %v2477 = vand.u32 %v2476, 4294901760
        %2478 = vmatpush.xpose.msra.mxu0 %v2477
        %v2479 = vand.u32 %v2302, 4294901760
        %2480 = vmatmul.f32.gmra.mxu0 %v2479
        %v2481 = vpop.f32.mrf.mxu0
        %v2482 = vadd.f32 %v2365, %v2481
        %v2483 = vand.u32 %v2304, 4294901760
        %2484 = vmatmul.f32.gmra.mxu0 %v2483
        %v2485 = vpop.f32.mrf.mxu0
        %v2486 = vadd.f32 %v2373, %v2485
        %v2487 = vand.u32 %v2306, 4294901760
        %2488 = vmatmul.f32.gmra.mxu0 %v2487
        %v2489 = vpop.f32.mrf.mxu0
        %v2490 = vadd.f32 %v2381, %v2489
        %v2491 = vand.u32 %v2308, 4294901760
        %2492 = vmatmul.f32.gmra.mxu0 %v2491
        %v2493 = vpop.f32.mrf.mxu0
        %v2494 = vadd.f32 %v2389, %v2493
        %v2495 = vand.u32 %v2310, 4294901760
        %2496 = vmatmul.f32.gmra.mxu0 %v2495
        %v2497 = vpop.f32.mrf.mxu0
        %v2498 = vadd.f32 %v2397, %v2497
        %v2499 = vand.u32 %v2312, 4294901760
        %2500 = vmatmul.f32.gmra.mxu0 %v2499
        %v2501 = vpop.f32.mrf.mxu0
        %v2502 = vadd.f32 %v2405, %v2501
        %v2503 = vand.u32 %v2314, 4294901760
        %2504 = vmatmul.f32.gmra.mxu0 %v2503
        %v2505 = vpop.f32.mrf.mxu0
        %v2506 = vadd.f32 %v2413, %v2505
        %v2507 = vand.u32 %v2316, 4294901760
        %2508 = vmatmul.f32.gmra.mxu0 %v2507
        %v2509 = vpop.f32.mrf.mxu0
        %v2510 = vadd.f32 %v2421, %v2509
        %2511 = vdwg.mxu0
        %2512 = vmatpush.xpose.msra.mxu0 0.0
        %2513 = vmatpush.xpose.msra.mxu0 0.0
        %2514 = vmatpush.xpose.msra.mxu0 0.0
        %2515 = vmatpush.xpose.msra.mxu0 0.0
        %2516 = vmatpush.xpose.msra.mxu0 0.0
        %2517 = vmatpush.xpose.msra.mxu0 0.0
        %2518 = vmatpush.xpose.msra.mxu0 0.0
        %2519 = vmatpush.xpose.msra.mxu0 0.0
        %v2520 = vand.u32 %v2332, 4294901760
        %v2521 = vsub.f32 %v2332, %v2520
        %2522 = vmatpush.xpose.msra.mxu0 %v2521
        %v2523 = vand.u32 %v2330, 4294901760
        %v2524 = vsub.f32 %v2330, %v2523
        %2525 = vmatpush.xpose.msra.mxu0 %v2524
        %v2526 = vand.u32 %v2328, 4294901760
        %v2527 = vsub.f32 %v2328, %v2526
        %2528 = vmatpush.xpose.msra.mxu0 %v2527
        %v2529 = vand.u32 %v2326, 4294901760
        %v2530 = vsub.f32 %v2326, %v2529
        %2531 = vmatpush.xpose.msra.mxu0 %v2530
        %v2532 = vand.u32 %v2324, 4294901760
        %v2533 = vsub.f32 %v2324, %v2532
        %2534 = vmatpush.xpose.msra.mxu0 %v2533
        %v2535 = vand.u32 %v2322, 4294901760
        %v2536 = vsub.f32 %v2322, %v2535
        %2537 = vmatpush.xpose.msra.mxu0 %v2536
        %v2538 = vand.u32 %v2320, 4294901760
        %v2539 = vsub.f32 %v2320, %v2538
        %2540 = vmatpush.xpose.msra.mxu0 %v2539
        %v2541 = vand.u32 %v2318, 4294901760
        %v2542 = vsub.f32 %v2318, %v2541
        %2543 = vmatpush.xpose.msra.mxu0 %v2542
        %v2544 = vand.u32 %v2302, 4294901760
        %v2545 = vsub.f32 %v2302, %v2544
        %2546 = vmatmul.f32.gmra.mxu0 %v2545
        %v2547 = vpop.f32.mrf.mxu0
        %v2548 = vadd.f32 %v2482, %v2547
        %v2549 = vand.u32 %v2304, 4294901760
        %v2550 = vsub.f32 %v2304, %v2549
        %2551 = vmatmul.f32.gmra.mxu0 %v2550
        %v2552 = vpop.f32.mrf.mxu0
        %v2553 = vadd.f32 %v2486, %v2552
        %v2554 = vand.u32 %v2306, 4294901760
        %v2555 = vsub.f32 %v2306, %v2554
        %2556 = vmatmul.f32.gmra.mxu0 %v2555
        %v2557 = vpop.f32.mrf.mxu0
        %v2558 = vadd.f32 %v2490, %v2557
        %v2559 = vand.u32 %v2308, 4294901760
        %v2560 = vsub.f32 %v2308, %v2559
        %2561 = vmatmul.f32.gmra.mxu0 %v2560
        %v2562 = vpop.f32.mrf.mxu0
        %v2563 = vadd.f32 %v2494, %v2562
        %v2564 = vand.u32 %v2310, 4294901760
        %v2565 = vsub.f32 %v2310, %v2564
        %2566 = vmatmul.f32.gmra.mxu0 %v2565
        %v2567 = vpop.f32.mrf.mxu0
        %v2568 = vadd.f32 %v2498, %v2567
        %v2569 = vand.u32 %v2312, 4294901760
        %v2570 = vsub.f32 %v2312, %v2569
        %2571 = vmatmul.f32.gmra.mxu0 %v2570
        %v2572 = vpop.f32.mrf.mxu0
        %v2573 = vadd.f32 %v2502, %v2572
        %v2574 = vand.u32 %v2314, 4294901760
        %v2575 = vsub.f32 %v2314, %v2574
        %2576 = vmatmul.f32.gmra.mxu0 %v2575
        %v2577 = vpop.f32.mrf.mxu0
        %v2578 = vadd.f32 %v2506, %v2577
        %v2579 = vand.u32 %v2316, 4294901760
        %v2580 = vsub.f32 %v2316, %v2579
        %2581 = vmatmul.f32.gmra.mxu0 %v2580
        %v2582 = vpop.f32.mrf.mxu0
        %v2583 = vadd.f32 %v2510, %v2582
        %2584 = vdwg.mxu0
        %2585 = vmatpush.xpose.msra.mxu0 0.0
        %2586 = vmatpush.xpose.msra.mxu0 0.0
        %2587 = vmatpush.xpose.msra.mxu0 0.0
        %2588 = vmatpush.xpose.msra.mxu0 0.0
        %2589 = vmatpush.xpose.msra.mxu0 0.0
        %2590 = vmatpush.xpose.msra.mxu0 0.0
        %2591 = vmatpush.xpose.msra.mxu0 0.0
        %2592 = vmatpush.xpose.msra.mxu0 0.0
        %v2593 = vand.u32 %v2332, 4294901760
        %2594 = vmatpush.xpose.msra.mxu0 %v2593
        %v2595 = vand.u32 %v2330, 4294901760
        %2596 = vmatpush.xpose.msra.mxu0 %v2595
        %v2597 = vand.u32 %v2328, 4294901760
        %2598 = vmatpush.xpose.msra.mxu0 %v2597
        %v2599 = vand.u32 %v2326, 4294901760
        %2600 = vmatpush.xpose.msra.mxu0 %v2599
        %v2601 = vand.u32 %v2324, 4294901760
        %2602 = vmatpush.xpose.msra.mxu0 %v2601
        %v2603 = vand.u32 %v2322, 4294901760
        %2604 = vmatpush.xpose.msra.mxu0 %v2603
        %v2605 = vand.u32 %v2320, 4294901760
        %2606 = vmatpush.xpose.msra.mxu0 %v2605
        %v2607 = vand.u32 %v2318, 4294901760
        %2608 = vmatpush.xpose.msra.mxu0 %v2607
        %v2609 = vand.u32 %v2302, 4294901760
        %v2610 = vsub.f32 %v2302, %v2609
        %v2611 = vand.u32 %v2610, 4294901760
        %2612 = vmatmul.f32.gmra.mxu0 %v2611
        %v2613 = vpop.f32.mrf.mxu0
        %v2614 = vadd.f32 %v2548, %v2613
        %v2615 = vand.u32 %v2304, 4294901760
        %v2616 = vsub.f32 %v2304, %v2615
        %v2617 = vand.u32 %v2616, 4294901760
        %2618 = vmatmul.f32.gmra.mxu0 %v2617
        %v2619 = vpop.f32.mrf.mxu0
        %v2620 = vadd.f32 %v2553, %v2619
        %v2621 = vand.u32 %v2306, 4294901760
        %v2622 = vsub.f32 %v2306, %v2621
        %v2623 = vand.u32 %v2622, 4294901760
        %2624 = vmatmul.f32.gmra.mxu0 %v2623
        %v2625 = vpop.f32.mrf.mxu0
        %v2626 = vadd.f32 %v2558, %v2625
        %v2627 = vand.u32 %v2308, 4294901760
        %v2628 = vsub.f32 %v2308, %v2627
        %v2629 = vand.u32 %v2628, 4294901760
        %2630 = vmatmul.f32.gmra.mxu0 %v2629
        %v2631 = vpop.f32.mrf.mxu0
        %v2632 = vadd.f32 %v2563, %v2631
        %v2633 = vand.u32 %v2310, 4294901760
        %v2634 = vsub.f32 %v2310, %v2633
        %v2635 = vand.u32 %v2634, 4294901760
        %2636 = vmatmul.f32.gmra.mxu0 %v2635
        %v2637 = vpop.f32.mrf.mxu0
        %v2638 = vadd.f32 %v2568, %v2637
        %v2639 = vand.u32 %v2312, 4294901760
        %v2640 = vsub.f32 %v2312, %v2639
        %v2641 = vand.u32 %v2640, 4294901760
        %2642 = vmatmul.f32.gmra.mxu0 %v2641
        %v2643 = vpop.f32.mrf.mxu0
        %v2644 = vadd.f32 %v2573, %v2643
        %v2645 = vand.u32 %v2314, 4294901760
        %v2646 = vsub.f32 %v2314, %v2645
        %v2647 = vand.u32 %v2646, 4294901760
        %2648 = vmatmul.f32.gmra.mxu0 %v2647
        %v2649 = vpop.f32.mrf.mxu0
        %v2650 = vadd.f32 %v2578, %v2649
        %v2651 = vand.u32 %v2316, 4294901760
        %v2652 = vsub.f32 %v2316, %v2651
        %v2653 = vand.u32 %v2652, 4294901760
        %2654 = vmatmul.f32.gmra.mxu0 %v2653
        %v2655 = vpop.f32.mrf.mxu0
        %v2656 = vadd.f32 %v2583, %v2655
        %2657 = vdwg.mxu0
        %2658 = vmatpush.xpose.msra.mxu0 0.0
        %2659 = vmatpush.xpose.msra.mxu0 0.0
        %2660 = vmatpush.xpose.msra.mxu0 0.0
        %2661 = vmatpush.xpose.msra.mxu0 0.0
        %2662 = vmatpush.xpose.msra.mxu0 0.0
        %2663 = vmatpush.xpose.msra.mxu0 0.0
        %2664 = vmatpush.xpose.msra.mxu0 0.0
        %2665 = vmatpush.xpose.msra.mxu0 0.0
        %v2666 = vand.u32 %v2332, 4294901760
        %v2667 = vsub.f32 %v2332, %v2666
        %v2668 = vand.u32 %v2667, 4294901760
        %2669 = vmatpush.xpose.msra.mxu0 %v2668
        %v2670 = vand.u32 %v2330, 4294901760
        %v2671 = vsub.f32 %v2330, %v2670
        %v2672 = vand.u32 %v2671, 4294901760
        %2673 = vmatpush.xpose.msra.mxu0 %v2672
        %v2674 = vand.u32 %v2328, 4294901760
        %v2675 = vsub.f32 %v2328, %v2674
        %v2676 = vand.u32 %v2675, 4294901760
        %2677 = vmatpush.xpose.msra.mxu0 %v2676
        %v2678 = vand.u32 %v2326, 4294901760
        %v2679 = vsub.f32 %v2326, %v2678
        %v2680 = vand.u32 %v2679, 4294901760
        %2681 = vmatpush.xpose.msra.mxu0 %v2680
        %v2682 = vand.u32 %v2324, 4294901760
        %v2683 = vsub.f32 %v2324, %v2682
        %v2684 = vand.u32 %v2683, 4294901760
        %2685 = vmatpush.xpose.msra.mxu0 %v2684
        %v2686 = vand.u32 %v2322, 4294901760
        %v2687 = vsub.f32 %v2322, %v2686
        %v2688 = vand.u32 %v2687, 4294901760
        %2689 = vmatpush.xpose.msra.mxu0 %v2688
        %v2690 = vand.u32 %v2320, 4294901760
        %v2691 = vsub.f32 %v2320, %v2690
        %v2692 = vand.u32 %v2691, 4294901760
        %2693 = vmatpush.xpose.msra.mxu0 %v2692
        %v2694 = vand.u32 %v2318, 4294901760
        %v2695 = vsub.f32 %v2318, %v2694
        %v2696 = vand.u32 %v2695, 4294901760
        %2697 = vmatpush.xpose.msra.mxu0 %v2696
        %v2698 = vand.u32 %v2302, 4294901760
        %2699 = vmatmul.f32.gmra.mxu0 %v2698
        %v2700 = vpop.f32.mrf.mxu0
        %v2701 = vadd.f32 %v2614, %v2700
        %v2702 = vand.u32 %v2304, 4294901760
        %2703 = vmatmul.f32.gmra.mxu0 %v2702
        %v2704 = vpop.f32.mrf.mxu0
        %v2705 = vadd.f32 %v2620, %v2704
        %v2706 = vand.u32 %v2306, 4294901760
        %2707 = vmatmul.f32.gmra.mxu0 %v2706
        %v2708 = vpop.f32.mrf.mxu0
        %v2709 = vadd.f32 %v2626, %v2708
        %v2710 = vand.u32 %v2308, 4294901760
        %2711 = vmatmul.f32.gmra.mxu0 %v2710
        %v2712 = vpop.f32.mrf.mxu0
        %v2713 = vadd.f32 %v2632, %v2712
        %v2714 = vand.u32 %v2310, 4294901760
        %2715 = vmatmul.f32.gmra.mxu0 %v2714
        %v2716 = vpop.f32.mrf.mxu0
        %v2717 = vadd.f32 %v2638, %v2716
        %v2718 = vand.u32 %v2312, 4294901760
        %2719 = vmatmul.f32.gmra.mxu0 %v2718
        %v2720 = vpop.f32.mrf.mxu0
        %v2721 = vadd.f32 %v2644, %v2720
        %v2722 = vand.u32 %v2314, 4294901760
        %2723 = vmatmul.f32.gmra.mxu0 %v2722
        %v2724 = vpop.f32.mrf.mxu0
        %v2725 = vadd.f32 %v2650, %v2724
        %v2726 = vand.u32 %v2316, 4294901760
        %2727 = vmatmul.f32.gmra.mxu0 %v2726
        %v2728 = vpop.f32.mrf.mxu0
        %v2729 = vadd.f32 %v2656, %v2728
        %2730 = vdwg.mxu0
        %2731 = vmatpush.xpose.msra.mxu0 0.0
        %2732 = vmatpush.xpose.msra.mxu0 0.0
        %2733 = vmatpush.xpose.msra.mxu0 0.0
        %2734 = vmatpush.xpose.msra.mxu0 0.0
        %2735 = vmatpush.xpose.msra.mxu0 0.0
        %2736 = vmatpush.xpose.msra.mxu0 0.0
        %2737 = vmatpush.xpose.msra.mxu0 0.0
        %2738 = vmatpush.xpose.msra.mxu0 0.0
        %v2739 = vand.u32 %v2332, 4294901760
        %2740 = vmatpush.xpose.msra.mxu0 %v2739
        %v2741 = vand.u32 %v2330, 4294901760
        %2742 = vmatpush.xpose.msra.mxu0 %v2741
        %v2743 = vand.u32 %v2328, 4294901760
        %2744 = vmatpush.xpose.msra.mxu0 %v2743
        %v2745 = vand.u32 %v2326, 4294901760
        %2746 = vmatpush.xpose.msra.mxu0 %v2745
        %v2747 = vand.u32 %v2324, 4294901760
        %2748 = vmatpush.xpose.msra.mxu0 %v2747
        %v2749 = vand.u32 %v2322, 4294901760
        %2750 = vmatpush.xpose.msra.mxu0 %v2749
        %v2751 = vand.u32 %v2320, 4294901760
        %2752 = vmatpush.xpose.msra.mxu0 %v2751
        %v2753 = vand.u32 %v2318, 4294901760
        %2754 = vmatpush.xpose.msra.mxu0 %v2753
        %v2755 = vand.u32 %v2302, 4294901760
        %2756 = vmatmul.f32.gmra.mxu0 %v2755
        %v2757 = vpop.f32.mrf.mxu0
        %v2758 = vadd.f32 %v2701, %v2757
        %v2759 = vand.u32 %v2304, 4294901760
        %2760 = vmatmul.f32.gmra.mxu0 %v2759
        %v2761 = vpop.f32.mrf.mxu0
        %v2762 = vadd.f32 %v2705, %v2761
        %v2763 = vand.u32 %v2306, 4294901760
        %2764 = vmatmul.f32.gmra.mxu0 %v2763
        %v2765 = vpop.f32.mrf.mxu0
        %v2766 = vadd.f32 %v2709, %v2765
        %v2767 = vand.u32 %v2308, 4294901760
        %2768 = vmatmul.f32.gmra.mxu0 %v2767
        %v2769 = vpop.f32.mrf.mxu0
        %v2770 = vadd.f32 %v2713, %v2769
        %v2771 = vand.u32 %v2310, 4294901760
        %2772 = vmatmul.f32.gmra.mxu0 %v2771
        %v2773 = vpop.f32.mrf.mxu0
        %v2774 = vadd.f32 %v2717, %v2773
        %v2775 = vand.u32 %v2312, 4294901760
        %2776 = vmatmul.f32.gmra.mxu0 %v2775
        %v2777 = vpop.f32.mrf.mxu0
        %v2778 = vadd.f32 %v2721, %v2777
        %v2779 = vand.u32 %v2314, 4294901760
        %2780 = vmatmul.f32.gmra.mxu0 %v2779
        %v2781 = vpop.f32.mrf.mxu0
        %v2782 = vadd.f32 %v2725, %v2781
        %v2783 = vand.u32 %v2316, 4294901760
        %2784 = vmatmul.f32.gmra.mxu0 %v2783
        %v2785 = vpop.f32.mrf.mxu0
        %v2786 = vadd.f32 %v2729, %v2785
        %2787 = vdwg.mxu0
        %v2788 = vsel %vm1567, %v2758, -inf
        %2789 = vmax.xlane.f32.xlu0 %v2788
        %v2790 = vpop.xlane.xlu0 %2789
        %v2791 = vsel %vm1567, %v2762, -inf
        %2792 = vmax.xlane.f32.xlu0 %v2791
        %v2793 = vpop.xlane.xlu0 %2792
        %v2794 = vsel %vm1567, %v2766, -inf
        %2795 = vmax.xlane.f32.xlu0 %v2794
        %v2796 = vpop.xlane.xlu0 %2795
        %v2797 = vsel %vm1567, %v2770, -inf
        %2798 = vmax.xlane.f32.xlu0 %v2797
        %v2799 = vpop.xlane.xlu0 %2798
        %v2800 = vsel %vm1567, %v2774, -inf
        %2801 = vmax.xlane.f32.xlu0 %v2800
        %v2802 = vpop.xlane.xlu0 %2801
        %v2803 = vsel %vm1567, %v2778, -inf
        %2804 = vmax.xlane.f32.xlu0 %v2803
        %v2805 = vpop.xlane.xlu0 %2804
        %v2806 = vsel %vm1567, %v2782, -inf
        %2807 = vmax.xlane.f32.xlu0 %v2806
        %v2808 = vpop.xlane.xlu0 %2807
        %v2809 = vsel %vm1567, %v2786, -inf
        %2810 = vmax.xlane.f32.xlu0 %v2809
        %v2811 = vpop.xlane.xlu0 %2810
        %v2812 = vsub.f32 %v2758, %v2790
        %v2813 = vsub.f32 %v2762, %v2793
        %v2814 = vsub.f32 %v2766, %v2796
        %v2815 = vsub.f32 %v2770, %v2799
        %v2816 = vsub.f32 %v2774, %v2802
        %v2817 = vsub.f32 %v2778, %v2805
        %v2818 = vsub.f32 %v2782, %v2808
        %v2819 = vsub.f32 %v2786, %v2811
        %v2820 = vmul.f32 %v2812, 1.442695
        %v2821 = vpow.pop %v2820
        %v2822 = vmul.f32 %v2813, 1.442695
        %v2823 = vpow.pop %v2822
        %v2824 = vmul.f32 %v2814, 1.442695
        %v2825 = vpow.pop %v2824
        %v2826 = vmul.f32 %v2815, 1.442695
        %v2827 = vpow.pop %v2826
        %v2828 = vmul.f32 %v2816, 1.442695
        %v2829 = vpow.pop %v2828
        %v2830 = vmul.f32 %v2817, 1.442695
        %v2831 = vpow.pop %v2830
        %v2832 = vmul.f32 %v2818, 1.442695
        %v2833 = vpow.pop %v2832
        %v2834 = vmul.f32 %v2819, 1.442695
        %v2835 = vpow.pop %v2834
        %v2836 = vsel %vm1567, %v2821, 0.0
        %2837 = vadd.xlane.f32.xlu0 %v2836
        %v2838 = vpop.xlane.xlu0 %2837
        %v2839 = vsel %vm1567, %v2823, 0.0
        %2840 = vadd.xlane.f32.xlu0 %v2839
        %v2841 = vpop.xlane.xlu0 %2840
        %v2842 = vsel %vm1567, %v2825, 0.0
        %2843 = vadd.xlane.f32.xlu0 %v2842
        %v2844 = vpop.xlane.xlu0 %2843
        %v2845 = vsel %vm1567, %v2827, 0.0
        %2846 = vadd.xlane.f32.xlu0 %v2845
        %v2847 = vpop.xlane.xlu0 %2846
        %v2848 = vsel %vm1567, %v2829, 0.0
        %2849 = vadd.xlane.f32.xlu0 %v2848
        %v2850 = vpop.xlane.xlu0 %2849
        %v2851 = vsel %vm1567, %v2831, 0.0
        %2852 = vadd.xlane.f32.xlu0 %v2851
        %v2853 = vpop.xlane.xlu0 %2852
        %v2854 = vsel %vm1567, %v2833, 0.0
        %2855 = vadd.xlane.f32.xlu0 %v2854
        %v2856 = vpop.xlane.xlu0 %2855
        %v2857 = vsel %vm1567, %v2835, 0.0
        %2858 = vadd.xlane.f32.xlu0 %v2857
        %v2859 = vpop.xlane.xlu0 %2858
        %2860 = vrot.lane.b32.xlu0 %v1056, 116
        %v2861 = vpop.permute.xlu0 %2860
        %2862 = vrot.lane.b32.xlu0 %v1057, 116
        %v2863 = vpop.permute.xlu0 %2862
        %2864 = vrot.lane.b32.xlu0 %v1058, 116
        %v2865 = vpop.permute.xlu0 %2864
        %2866 = vrot.lane.b32.xlu0 %v1059, 116
        %v2867 = vpop.permute.xlu0 %2866
        %2868 = vrot.lane.b32.xlu0 %v1060, 116
        %v2869 = vpop.permute.xlu0 %2868
        %2870 = vrot.lane.b32.xlu0 %v1061, 116
        %v2871 = vpop.permute.xlu0 %2870
        %2872 = vrot.lane.b32.xlu0 %v1062, 116
        %v2873 = vpop.permute.xlu0 %2872
        %2874 = vrot.lane.b32.xlu0 %v1063, 116
        %v2875 = vpop.permute.xlu0 %2874
        %v2885 = vsel %vm1567, %v2821, 0
        %v2888 = vsel %vm1567, %v2823, 0
        %v2891 = vsel %vm1567, %v2825, 0
        %v2894 = vsel %vm1567, %v2827, 0
        %v2897 = vsel %vm1567, %v2829, 0
        %v2900 = vsel %vm1567, %v2831, 0
        %v2903 = vsel %vm1567, %v2833, 0
        %v2906 = vsel %vm1567, %v2835, 0
        %2908 = vmatpush.msra.mxu0 0.0
        %2909 = vmatpush.msra.mxu0 0.0
        %2910 = vmatpush.msra.mxu0 0.0
        %2911 = vmatpush.msra.mxu0 0.0
        %2912 = vmatpush.msra.mxu0 0.0
        %2913 = vmatpush.msra.mxu0 0.0
        %2914 = vmatpush.msra.mxu0 0.0
        %2915 = vmatpush.msra.mxu0 0.0
        %v2916 = vand.u32 %v2875, 4294901760
        %2917 = vmatpush.msra.mxu0 %v2916
        %v2918 = vand.u32 %v2873, 4294901760
        %2919 = vmatpush.msra.mxu0 %v2918
        %v2920 = vand.u32 %v2871, 4294901760
        %2921 = vmatpush.msra.mxu0 %v2920
        %v2922 = vand.u32 %v2869, 4294901760
        %2923 = vmatpush.msra.mxu0 %v2922
        %v2924 = vand.u32 %v2867, 4294901760
        %2925 = vmatpush.msra.mxu0 %v2924
        %v2926 = vand.u32 %v2865, 4294901760
        %2927 = vmatpush.msra.mxu0 %v2926
        %v2928 = vand.u32 %v2863, 4294901760
        %2929 = vmatpush.msra.mxu0 %v2928
        %v2930 = vand.u32 %v2861, 4294901760
        %2931 = vmatpush.msra.mxu0 %v2930
        %v2932 = vand.u32 %v2885, 4294901760
        %v2933 = vsub.f32 %v2885, %v2932
        %v2934 = vand.u32 %v2933, 4294901760
        %v2935 = vsub.f32 %v2933, %v2934
        %v2936 = vand.u32 %v2935, 4294901760
        %2937 = vmatmul.f32.gmra.mxu0 %v2936
        %v2938 = vpop.f32.mrf.mxu0
        %v2939 = vadd.f32 0.0, %v2938
        %v2940 = vand.u32 %v2888, 4294901760
        %v2941 = vsub.f32 %v2888, %v2940
        %v2942 = vand.u32 %v2941, 4294901760
        %v2943 = vsub.f32 %v2941, %v2942
        %v2944 = vand.u32 %v2943, 4294901760
        %2945 = vmatmul.f32.gmra.mxu0 %v2944
        %v2946 = vpop.f32.mrf.mxu0
        %v2947 = vadd.f32 0.0, %v2946
        %v2948 = vand.u32 %v2891, 4294901760
        %v2949 = vsub.f32 %v2891, %v2948
        %v2950 = vand.u32 %v2949, 4294901760
        %v2951 = vsub.f32 %v2949, %v2950
        %v2952 = vand.u32 %v2951, 4294901760
        %2953 = vmatmul.f32.gmra.mxu0 %v2952
        %v2954 = vpop.f32.mrf.mxu0
        %v2955 = vadd.f32 0.0, %v2954
        %v2956 = vand.u32 %v2894, 4294901760
        %v2957 = vsub.f32 %v2894, %v2956
        %v2958 = vand.u32 %v2957, 4294901760
        %v2959 = vsub.f32 %v2957, %v2958
        %v2960 = vand.u32 %v2959, 4294901760
        %2961 = vmatmul.f32.gmra.mxu0 %v2960
        %v2962 = vpop.f32.mrf.mxu0
        %v2963 = vadd.f32 0.0, %v2962
        %v2964 = vand.u32 %v2897, 4294901760
        %v2965 = vsub.f32 %v2897, %v2964
        %v2966 = vand.u32 %v2965, 4294901760
        %v2967 = vsub.f32 %v2965, %v2966
        %v2968 = vand.u32 %v2967, 4294901760
        %2969 = vmatmul.f32.gmra.mxu0 %v2968
        %v2970 = vpop.f32.mrf.mxu0
        %v2971 = vadd.f32 0.0, %v2970
        %v2972 = vand.u32 %v2900, 4294901760
        %v2973 = vsub.f32 %v2900, %v2972
        %v2974 = vand.u32 %v2973, 4294901760
        %v2975 = vsub.f32 %v2973, %v2974
        %v2976 = vand.u32 %v2975, 4294901760
        %2977 = vmatmul.f32.gmra.mxu0 %v2976
        %v2978 = vpop.f32.mrf.mxu0
        %v2979 = vadd.f32 0.0, %v2978
        %v2980 = vand.u32 %v2903, 4294901760
        %v2981 = vsub.f32 %v2903, %v2980
        %v2982 = vand.u32 %v2981, 4294901760
        %v2983 = vsub.f32 %v2981, %v2982
        %v2984 = vand.u32 %v2983, 4294901760
        %2985 = vmatmul.f32.gmra.mxu0 %v2984
        %v2986 = vpop.f32.mrf.mxu0
        %v2987 = vadd.f32 0.0, %v2986
        %v2988 = vand.u32 %v2906, 4294901760
        %v2989 = vsub.f32 %v2906, %v2988
        %v2990 = vand.u32 %v2989, 4294901760
        %v2991 = vsub.f32 %v2989, %v2990
        %v2992 = vand.u32 %v2991, 4294901760
        %2993 = vmatmul.f32.gmra.mxu0 %v2992
        %v2994 = vpop.f32.mrf.mxu0
        %v2995 = vadd.f32 0.0, %v2994
        %2996 = vdwg.mxu0
        %2997 = vmatpush.msra.mxu0 0.0
        %2998 = vmatpush.msra.mxu0 0.0
        %2999 = vmatpush.msra.mxu0 0.0
        %3000 = vmatpush.msra.mxu0 0.0
        %3001 = vmatpush.msra.mxu0 0.0
        %3002 = vmatpush.msra.mxu0 0.0
        %3003 = vmatpush.msra.mxu0 0.0
        %3004 = vmatpush.msra.mxu0 0.0
        %v3005 = vand.u32 %v2875, 4294901760
        %v3006 = vsub.f32 %v2875, %v3005
        %v3007 = vand.u32 %v3006, 4294901760
        %v3008 = vsub.f32 %v3006, %v3007
        %v3009 = vand.u32 %v3008, 4294901760
        %3010 = vmatpush.msra.mxu0 %v3009
        %v3011 = vand.u32 %v2873, 4294901760
        %v3012 = vsub.f32 %v2873, %v3011
        %v3013 = vand.u32 %v3012, 4294901760
        %v3014 = vsub.f32 %v3012, %v3013
        %v3015 = vand.u32 %v3014, 4294901760
        %3016 = vmatpush.msra.mxu0 %v3015
        %v3017 = vand.u32 %v2871, 4294901760
        %v3018 = vsub.f32 %v2871, %v3017
        %v3019 = vand.u32 %v3018, 4294901760
        %v3020 = vsub.f32 %v3018, %v3019
        %v3021 = vand.u32 %v3020, 4294901760
        %3022 = vmatpush.msra.mxu0 %v3021
        %v3023 = vand.u32 %v2869, 4294901760
        %v3024 = vsub.f32 %v2869, %v3023
        %v3025 = vand.u32 %v3024, 4294901760
        %v3026 = vsub.f32 %v3024, %v3025
        %v3027 = vand.u32 %v3026, 4294901760
        %3028 = vmatpush.msra.mxu0 %v3027
        %v3029 = vand.u32 %v2867, 4294901760
        %v3030 = vsub.f32 %v2867, %v3029
        %v3031 = vand.u32 %v3030, 4294901760
        %v3032 = vsub.f32 %v3030, %v3031
        %v3033 = vand.u32 %v3032, 4294901760
        %3034 = vmatpush.msra.mxu0 %v3033
        %v3035 = vand.u32 %v2865, 4294901760
        %v3036 = vsub.f32 %v2865, %v3035
        %v3037 = vand.u32 %v3036, 4294901760
        %v3038 = vsub.f32 %v3036, %v3037
        %v3039 = vand.u32 %v3038, 4294901760
        %3040 = vmatpush.msra.mxu0 %v3039
        %v3041 = vand.u32 %v2863, 4294901760
        %v3042 = vsub.f32 %v2863, %v3041
        %v3043 = vand.u32 %v3042, 4294901760
        %v3044 = vsub.f32 %v3042, %v3043
        %v3045 = vand.u32 %v3044, 4294901760
        %3046 = vmatpush.msra.mxu0 %v3045
        %v3047 = vand.u32 %v2861, 4294901760
        %v3048 = vsub.f32 %v2861, %v3047
        %v3049 = vand.u32 %v3048, 4294901760
        %v3050 = vsub.f32 %v3048, %v3049
        %v3051 = vand.u32 %v3050, 4294901760
        %3052 = vmatpush.msra.mxu0 %v3051
        %v3053 = vand.u32 %v2885, 4294901760
        %3054 = vmatmul.f32.gmra.mxu0 %v3053
        %v3055 = vpop.f32.mrf.mxu0
        %v3056 = vadd.f32 %v2939, %v3055
        %v3057 = vand.u32 %v2888, 4294901760
        %3058 = vmatmul.f32.gmra.mxu0 %v3057
        %v3059 = vpop.f32.mrf.mxu0
        %v3060 = vadd.f32 %v2947, %v3059
        %v3061 = vand.u32 %v2891, 4294901760
        %3062 = vmatmul.f32.gmra.mxu0 %v3061
        %v3063 = vpop.f32.mrf.mxu0
        %v3064 = vadd.f32 %v2955, %v3063
        %v3065 = vand.u32 %v2894, 4294901760
        %3066 = vmatmul.f32.gmra.mxu0 %v3065
        %v3067 = vpop.f32.mrf.mxu0
        %v3068 = vadd.f32 %v2963, %v3067
        %v3069 = vand.u32 %v2897, 4294901760
        %3070 = vmatmul.f32.gmra.mxu0 %v3069
        %v3071 = vpop.f32.mrf.mxu0
        %v3072 = vadd.f32 %v2971, %v3071
        %v3073 = vand.u32 %v2900, 4294901760
        %3074 = vmatmul.f32.gmra.mxu0 %v3073
        %v3075 = vpop.f32.mrf.mxu0
        %v3076 = vadd.f32 %v2979, %v3075
        %v3077 = vand.u32 %v2903, 4294901760
        %3078 = vmatmul.f32.gmra.mxu0 %v3077
        %v3079 = vpop.f32.mrf.mxu0
        %v3080 = vadd.f32 %v2987, %v3079
        %v3081 = vand.u32 %v2906, 4294901760
        %3082 = vmatmul.f32.gmra.mxu0 %v3081
        %v3083 = vpop.f32.mrf.mxu0
        %v3084 = vadd.f32 %v2995, %v3083
        %3085 = vdwg.mxu0
        %3086 = vmatpush.msra.mxu0 0.0
        %3087 = vmatpush.msra.mxu0 0.0
        %3088 = vmatpush.msra.mxu0 0.0
        %3089 = vmatpush.msra.mxu0 0.0
        %3090 = vmatpush.msra.mxu0 0.0
        %3091 = vmatpush.msra.mxu0 0.0
        %3092 = vmatpush.msra.mxu0 0.0
        %3093 = vmatpush.msra.mxu0 0.0
        %v3094 = vand.u32 %v2875, 4294901760
        %v3095 = vsub.f32 %v2875, %v3094
        %3096 = vmatpush.msra.mxu0 %v3095
        %v3097 = vand.u32 %v2873, 4294901760
        %v3098 = vsub.f32 %v2873, %v3097
        %3099 = vmatpush.msra.mxu0 %v3098
        %v3100 = vand.u32 %v2871, 4294901760
        %v3101 = vsub.f32 %v2871, %v3100
        %3102 = vmatpush.msra.mxu0 %v3101
        %v3103 = vand.u32 %v2869, 4294901760
        %v3104 = vsub.f32 %v2869, %v3103
        %3105 = vmatpush.msra.mxu0 %v3104
        %v3106 = vand.u32 %v2867, 4294901760
        %v3107 = vsub.f32 %v2867, %v3106
        %3108 = vmatpush.msra.mxu0 %v3107
        %v3109 = vand.u32 %v2865, 4294901760
        %v3110 = vsub.f32 %v2865, %v3109
        %3111 = vmatpush.msra.mxu0 %v3110
        %v3112 = vand.u32 %v2863, 4294901760
        %v3113 = vsub.f32 %v2863, %v3112
        %3114 = vmatpush.msra.mxu0 %v3113
        %v3115 = vand.u32 %v2861, 4294901760
        %v3116 = vsub.f32 %v2861, %v3115
        %3117 = vmatpush.msra.mxu0 %v3116
        %v3118 = vand.u32 %v2885, 4294901760
        %v3119 = vsub.f32 %v2885, %v3118
        %3120 = vmatmul.f32.gmra.mxu0 %v3119
        %v3121 = vpop.f32.mrf.mxu0
        %v3122 = vadd.f32 %v3056, %v3121
        %v3123 = vand.u32 %v2888, 4294901760
        %v3124 = vsub.f32 %v2888, %v3123
        %3125 = vmatmul.f32.gmra.mxu0 %v3124
        %v3126 = vpop.f32.mrf.mxu0
        %v3127 = vadd.f32 %v3060, %v3126
        %v3128 = vand.u32 %v2891, 4294901760
        %v3129 = vsub.f32 %v2891, %v3128
        %3130 = vmatmul.f32.gmra.mxu0 %v3129
        %v3131 = vpop.f32.mrf.mxu0
        %v3132 = vadd.f32 %v3064, %v3131
        %v3133 = vand.u32 %v2894, 4294901760
        %v3134 = vsub.f32 %v2894, %v3133
        %3135 = vmatmul.f32.gmra.mxu0 %v3134
        %v3136 = vpop.f32.mrf.mxu0
        %v3137 = vadd.f32 %v3068, %v3136
        %v3138 = vand.u32 %v2897, 4294901760
        %v3139 = vsub.f32 %v2897, %v3138
        %3140 = vmatmul.f32.gmra.mxu0 %v3139
        %v3141 = vpop.f32.mrf.mxu0
        %v3142 = vadd.f32 %v3072, %v3141
        %v3143 = vand.u32 %v2900, 4294901760
        %v3144 = vsub.f32 %v2900, %v3143
        %3145 = vmatmul.f32.gmra.mxu0 %v3144
        %v3146 = vpop.f32.mrf.mxu0
        %v3147 = vadd.f32 %v3076, %v3146
        %v3148 = vand.u32 %v2903, 4294901760
        %v3149 = vsub.f32 %v2903, %v3148
        %3150 = vmatmul.f32.gmra.mxu0 %v3149
        %v3151 = vpop.f32.mrf.mxu0
        %v3152 = vadd.f32 %v3080, %v3151
        %v3153 = vand.u32 %v2906, 4294901760
        %v3154 = vsub.f32 %v2906, %v3153
        %3155 = vmatmul.f32.gmra.mxu0 %v3154
        %v3156 = vpop.f32.mrf.mxu0
        %v3157 = vadd.f32 %v3084, %v3156
        %3158 = vdwg.mxu0
        %3159 = vmatpush.msra.mxu0 0.0
        %3160 = vmatpush.msra.mxu0 0.0
        %3161 = vmatpush.msra.mxu0 0.0
        %3162 = vmatpush.msra.mxu0 0.0
        %3163 = vmatpush.msra.mxu0 0.0
        %3164 = vmatpush.msra.mxu0 0.0
        %3165 = vmatpush.msra.mxu0 0.0
        %3166 = vmatpush.msra.mxu0 0.0
        %v3167 = vand.u32 %v2875, 4294901760
        %3168 = vmatpush.msra.mxu0 %v3167
        %v3169 = vand.u32 %v2873, 4294901760
        %3170 = vmatpush.msra.mxu0 %v3169
        %v3171 = vand.u32 %v2871, 4294901760
        %3172 = vmatpush.msra.mxu0 %v3171
        %v3173 = vand.u32 %v2869, 4294901760
        %3174 = vmatpush.msra.mxu0 %v3173
        %v3175 = vand.u32 %v2867, 4294901760
        %3176 = vmatpush.msra.mxu0 %v3175
        %v3177 = vand.u32 %v2865, 4294901760
        %3178 = vmatpush.msra.mxu0 %v3177
        %v3179 = vand.u32 %v2863, 4294901760
        %3180 = vmatpush.msra.mxu0 %v3179
        %v3181 = vand.u32 %v2861, 4294901760
        %3182 = vmatpush.msra.mxu0 %v3181
        %v3183 = vand.u32 %v2885, 4294901760
        %v3184 = vsub.f32 %v2885, %v3183
        %v3185 = vand.u32 %v3184, 4294901760
        %3186 = vmatmul.f32.gmra.mxu0 %v3185
        %v3187 = vpop.f32.mrf.mxu0
        %v3188 = vadd.f32 %v3122, %v3187
        %v3189 = vand.u32 %v2888, 4294901760
        %v3190 = vsub.f32 %v2888, %v3189
        %v3191 = vand.u32 %v3190, 4294901760
        %3192 = vmatmul.f32.gmra.mxu0 %v3191
        %v3193 = vpop.f32.mrf.mxu0
        %v3194 = vadd.f32 %v3127, %v3193
        %v3195 = vand.u32 %v2891, 4294901760
        %v3196 = vsub.f32 %v2891, %v3195
        %v3197 = vand.u32 %v3196, 4294901760
        %3198 = vmatmul.f32.gmra.mxu0 %v3197
        %v3199 = vpop.f32.mrf.mxu0
        %v3200 = vadd.f32 %v3132, %v3199
        %v3201 = vand.u32 %v2894, 4294901760
        %v3202 = vsub.f32 %v2894, %v3201
        %v3203 = vand.u32 %v3202, 4294901760
        %3204 = vmatmul.f32.gmra.mxu0 %v3203
        %v3205 = vpop.f32.mrf.mxu0
        %v3206 = vadd.f32 %v3137, %v3205
        %v3207 = vand.u32 %v2897, 4294901760
        %v3208 = vsub.f32 %v2897, %v3207
        %v3209 = vand.u32 %v3208, 4294901760
        %3210 = vmatmul.f32.gmra.mxu0 %v3209
        %v3211 = vpop.f32.mrf.mxu0
        %v3212 = vadd.f32 %v3142, %v3211
        %v3213 = vand.u32 %v2900, 4294901760
        %v3214 = vsub.f32 %v2900, %v3213
        %v3215 = vand.u32 %v3214, 4294901760
        %3216 = vmatmul.f32.gmra.mxu0 %v3215
        %v3217 = vpop.f32.mrf.mxu0
        %v3218 = vadd.f32 %v3147, %v3217
        %v3219 = vand.u32 %v2903, 4294901760
        %v3220 = vsub.f32 %v2903, %v3219
        %v3221 = vand.u32 %v3220, 4294901760
        %3222 = vmatmul.f32.gmra.mxu0 %v3221
        %v3223 = vpop.f32.mrf.mxu0
        %v3224 = vadd.f32 %v3152, %v3223
        %v3225 = vand.u32 %v2906, 4294901760
        %v3226 = vsub.f32 %v2906, %v3225
        %v3227 = vand.u32 %v3226, 4294901760
        %3228 = vmatmul.f32.gmra.mxu0 %v3227
        %v3229 = vpop.f32.mrf.mxu0
        %v3230 = vadd.f32 %v3157, %v3229
        %3231 = vdwg.mxu0
        %3232 = vmatpush.msra.mxu0 0.0
        %3233 = vmatpush.msra.mxu0 0.0
        %3234 = vmatpush.msra.mxu0 0.0
        %3235 = vmatpush.msra.mxu0 0.0
        %3236 = vmatpush.msra.mxu0 0.0
        %3237 = vmatpush.msra.mxu0 0.0
        %3238 = vmatpush.msra.mxu0 0.0
        %3239 = vmatpush.msra.mxu0 0.0
        %v3240 = vand.u32 %v2875, 4294901760
        %v3241 = vsub.f32 %v2875, %v3240
        %v3242 = vand.u32 %v3241, 4294901760
        %3243 = vmatpush.msra.mxu0 %v3242
        %v3244 = vand.u32 %v2873, 4294901760
        %v3245 = vsub.f32 %v2873, %v3244
        %v3246 = vand.u32 %v3245, 4294901760
        %3247 = vmatpush.msra.mxu0 %v3246
        %v3248 = vand.u32 %v2871, 4294901760
        %v3249 = vsub.f32 %v2871, %v3248
        %v3250 = vand.u32 %v3249, 4294901760
        %3251 = vmatpush.msra.mxu0 %v3250
        %v3252 = vand.u32 %v2869, 4294901760
        %v3253 = vsub.f32 %v2869, %v3252
        %v3254 = vand.u32 %v3253, 4294901760
        %3255 = vmatpush.msra.mxu0 %v3254
        %v3256 = vand.u32 %v2867, 4294901760
        %v3257 = vsub.f32 %v2867, %v3256
        %v3258 = vand.u32 %v3257, 4294901760
        %3259 = vmatpush.msra.mxu0 %v3258
        %v3260 = vand.u32 %v2865, 4294901760
        %v3261 = vsub.f32 %v2865, %v3260
        %v3262 = vand.u32 %v3261, 4294901760
        %3263 = vmatpush.msra.mxu0 %v3262
        %v3264 = vand.u32 %v2863, 4294901760
        %v3265 = vsub.f32 %v2863, %v3264
        %v3266 = vand.u32 %v3265, 4294901760
        %3267 = vmatpush.msra.mxu0 %v3266
        %v3268 = vand.u32 %v2861, 4294901760
        %v3269 = vsub.f32 %v2861, %v3268
        %v3270 = vand.u32 %v3269, 4294901760
        %3271 = vmatpush.msra.mxu0 %v3270
        %v3272 = vand.u32 %v2885, 4294901760
        %3273 = vmatmul.f32.gmra.mxu0 %v3272
        %v3274 = vpop.f32.mrf.mxu0
        %v3275 = vadd.f32 %v3188, %v3274
        %v3276 = vand.u32 %v2888, 4294901760
        %3277 = vmatmul.f32.gmra.mxu0 %v3276
        %v3278 = vpop.f32.mrf.mxu0
        %v3279 = vadd.f32 %v3194, %v3278
        %v3280 = vand.u32 %v2891, 4294901760
        %3281 = vmatmul.f32.gmra.mxu0 %v3280
        %v3282 = vpop.f32.mrf.mxu0
        %v3283 = vadd.f32 %v3200, %v3282
        %v3284 = vand.u32 %v2894, 4294901760
        %3285 = vmatmul.f32.gmra.mxu0 %v3284
        %v3286 = vpop.f32.mrf.mxu0
        %v3287 = vadd.f32 %v3206, %v3286
        %v3288 = vand.u32 %v2897, 4294901760
        %3289 = vmatmul.f32.gmra.mxu0 %v3288
        %v3290 = vpop.f32.mrf.mxu0
        %v3291 = vadd.f32 %v3212, %v3290
        %v3292 = vand.u32 %v2900, 4294901760
        %3293 = vmatmul.f32.gmra.mxu0 %v3292
        %v3294 = vpop.f32.mrf.mxu0
        %v3295 = vadd.f32 %v3218, %v3294
        %v3296 = vand.u32 %v2903, 4294901760
        %3297 = vmatmul.f32.gmra.mxu0 %v3296
        %v3298 = vpop.f32.mrf.mxu0
        %v3299 = vadd.f32 %v3224, %v3298
        %v3300 = vand.u32 %v2906, 4294901760
        %3301 = vmatmul.f32.gmra.mxu0 %v3300
        %v3302 = vpop.f32.mrf.mxu0
        %v3303 = vadd.f32 %v3230, %v3302
        %3304 = vdwg.mxu0
        %3305 = vmatpush.msra.mxu0 0.0
        %3306 = vmatpush.msra.mxu0 0.0
        %3307 = vmatpush.msra.mxu0 0.0
        %3308 = vmatpush.msra.mxu0 0.0
        %3309 = vmatpush.msra.mxu0 0.0
        %3310 = vmatpush.msra.mxu0 0.0
        %3311 = vmatpush.msra.mxu0 0.0
        %3312 = vmatpush.msra.mxu0 0.0
        %v3313 = vand.u32 %v2875, 4294901760
        %3314 = vmatpush.msra.mxu0 %v3313
        %v3315 = vand.u32 %v2873, 4294901760
        %3316 = vmatpush.msra.mxu0 %v3315
        %v3317 = vand.u32 %v2871, 4294901760
        %3318 = vmatpush.msra.mxu0 %v3317
        %v3319 = vand.u32 %v2869, 4294901760
        %3320 = vmatpush.msra.mxu0 %v3319
        %v3321 = vand.u32 %v2867, 4294901760
        %3322 = vmatpush.msra.mxu0 %v3321
        %v3323 = vand.u32 %v2865, 4294901760
        %3324 = vmatpush.msra.mxu0 %v3323
        %v3325 = vand.u32 %v2863, 4294901760
        %3326 = vmatpush.msra.mxu0 %v3325
        %v3327 = vand.u32 %v2861, 4294901760
        %3328 = vmatpush.msra.mxu0 %v3327
        %v3329 = vand.u32 %v2885, 4294901760
        %3330 = vmatmul.f32.gmra.mxu0 %v3329
        %v3331 = vpop.f32.mrf.mxu0
        %v3332 = vadd.f32 %v3275, %v3331
        %v3333 = vand.u32 %v2888, 4294901760
        %3334 = vmatmul.f32.gmra.mxu0 %v3333
        %v3335 = vpop.f32.mrf.mxu0
        %v3336 = vadd.f32 %v3279, %v3335
        %v3337 = vand.u32 %v2891, 4294901760
        %3338 = vmatmul.f32.gmra.mxu0 %v3337
        %v3339 = vpop.f32.mrf.mxu0
        %v3340 = vadd.f32 %v3283, %v3339
        %v3341 = vand.u32 %v2894, 4294901760
        %3342 = vmatmul.f32.gmra.mxu0 %v3341
        %v3343 = vpop.f32.mrf.mxu0
        %v3344 = vadd.f32 %v3287, %v3343
        %v3345 = vand.u32 %v2897, 4294901760
        %3346 = vmatmul.f32.gmra.mxu0 %v3345
        %v3347 = vpop.f32.mrf.mxu0
        %v3348 = vadd.f32 %v3291, %v3347
        %v3349 = vand.u32 %v2900, 4294901760
        %3350 = vmatmul.f32.gmra.mxu0 %v3349
        %v3351 = vpop.f32.mrf.mxu0
        %v3352 = vadd.f32 %v3295, %v3351
        %v3353 = vand.u32 %v2903, 4294901760
        %3354 = vmatmul.f32.gmra.mxu0 %v3353
        %v3355 = vpop.f32.mrf.mxu0
        %v3356 = vadd.f32 %v3299, %v3355
        %v3357 = vand.u32 %v2906, 4294901760
        %3358 = vmatmul.f32.gmra.mxu0 %v3357
        %v3359 = vpop.f32.mrf.mxu0
        %v3360 = vadd.f32 %v3303, %v3359
        %3361 = vdwg.mxu0
        %v3362 = vrcp.pop %v2838
        %v3363 = vmul.f32 %v2838, %v3362
        %v3364 = vsub.f32 1.0, %v3363
        %v3365 = vmul.f32 %v3362, %v3364
        %v3366 = vadd.f32 %v3362, %v3365
        %vm3367 = vweird.f32 %v2838
        %vm3368 = vweird.f32 %v3362
        %vm3369 = vmor %vm3367, %vm3368
        %v3370 = vsel %vm3369, %v3362, %v3366
        %v3371 = vand.u32 2147483647, %v2838
        %vm3372 = vcmp.eq.f32.partialorder %v3371, 8.507059e+37
        %v3373 = vand.u32 %v2838, 2147483648
        %v3374 = vor.u32 1.1754944e-38, %v3373
        %v3375 = vsel %vm3372, %v3374, %v3370
        %v3376 = vmul.f32 1.0, %v3375
        %v3377 = vrcp.pop %v2841
        %v3378 = vmul.f32 %v2841, %v3377
        %v3379 = vsub.f32 1.0, %v3378
        %v3380 = vmul.f32 %v3377, %v3379
        %v3381 = vadd.f32 %v3377, %v3380
        %vm3382 = vweird.f32 %v2841
        %vm3383 = vweird.f32 %v3377
        %vm3384 = vmor %vm3382, %vm3383
        %v3385 = vsel %vm3384, %v3377, %v3381
        %v3386 = vand.u32 2147483647, %v2841
        %vm3387 = vcmp.eq.f32.partialorder %v3386, 8.507059e+37
        %v3388 = vand.u32 %v2841, 2147483648
        %v3389 = vor.u32 1.1754944e-38, %v3388
        %v3390 = vsel %vm3387, %v3389, %v3385
        %v3391 = vmul.f32 1.0, %v3390
        %v3392 = vrcp.pop %v2844
        %v3393 = vmul.f32 %v2844, %v3392
        %v3394 = vsub.f32 1.0, %v3393
        %v3395 = vmul.f32 %v3392, %v3394
        %v3396 = vadd.f32 %v3392, %v3395
        %vm3397 = vweird.f32 %v2844
        %vm3398 = vweird.f32 %v3392
        %vm3399 = vmor %vm3397, %vm3398
        %v3400 = vsel %vm3399, %v3392, %v3396
        %v3401 = vand.u32 2147483647, %v2844
        %vm3402 = vcmp.eq.f32.partialorder %v3401, 8.507059e+37
        %v3403 = vand.u32 %v2844, 2147483648
        %v3404 = vor.u32 1.1754944e-38, %v3403
        %v3405 = vsel %vm3402, %v3404, %v3400
        %v3406 = vmul.f32 1.0, %v3405
        %v3407 = vrcp.pop %v2847
        %v3408 = vmul.f32 %v2847, %v3407
        %v3409 = vsub.f32 1.0, %v3408
        %v3410 = vmul.f32 %v3407, %v3409
        %v3411 = vadd.f32 %v3407, %v3410
        %vm3412 = vweird.f32 %v2847
        %vm3413 = vweird.f32 %v3407
        %vm3414 = vmor %vm3412, %vm3413
        %v3415 = vsel %vm3414, %v3407, %v3411
        %v3416 = vand.u32 2147483647, %v2847
        %vm3417 = vcmp.eq.f32.partialorder %v3416, 8.507059e+37
        %v3418 = vand.u32 %v2847, 2147483648
        %v3419 = vor.u32 1.1754944e-38, %v3418
        %v3420 = vsel %vm3417, %v3419, %v3415
        %v3421 = vmul.f32 1.0, %v3420
        %v3422 = vrcp.pop %v2850
        %v3423 = vmul.f32 %v2850, %v3422
        %v3424 = vsub.f32 1.0, %v3423
        %v3425 = vmul.f32 %v3422, %v3424
        %v3426 = vadd.f32 %v3422, %v3425
        %vm3427 = vweird.f32 %v2850
        %vm3428 = vweird.f32 %v3422
        %vm3429 = vmor %vm3427, %vm3428
        %v3430 = vsel %vm3429, %v3422, %v3426
        %v3431 = vand.u32 2147483647, %v2850
        %vm3432 = vcmp.eq.f32.partialorder %v3431, 8.507059e+37
        %v3433 = vand.u32 %v2850, 2147483648
        %v3434 = vor.u32 1.1754944e-38, %v3433
        %v3435 = vsel %vm3432, %v3434, %v3430
        %v3436 = vmul.f32 1.0, %v3435
        %v3437 = vrcp.pop %v2853
        %v3438 = vmul.f32 %v2853, %v3437
        %v3439 = vsub.f32 1.0, %v3438
        %v3440 = vmul.f32 %v3437, %v3439
        %v3441 = vadd.f32 %v3437, %v3440
        %vm3442 = vweird.f32 %v2853
        %vm3443 = vweird.f32 %v3437
        %vm3444 = vmor %vm3442, %vm3443
        %v3445 = vsel %vm3444, %v3437, %v3441
        %v3446 = vand.u32 2147483647, %v2853
        %vm3447 = vcmp.eq.f32.partialorder %v3446, 8.507059e+37
        %v3448 = vand.u32 %v2853, 2147483648
        %v3449 = vor.u32 1.1754944e-38, %v3448
        %v3450 = vsel %vm3447, %v3449, %v3445
        %v3451 = vmul.f32 1.0, %v3450
        %v3452 = vrcp.pop %v2856
        %v3453 = vmul.f32 %v2856, %v3452
        %v3454 = vsub.f32 1.0, %v3453
        %v3455 = vmul.f32 %v3452, %v3454
        %v3456 = vadd.f32 %v3452, %v3455
        %vm3457 = vweird.f32 %v2856
        %vm3458 = vweird.f32 %v3452
        %vm3459 = vmor %vm3457, %vm3458
        %v3460 = vsel %vm3459, %v3452, %v3456
        %v3461 = vand.u32 2147483647, %v2856
        %vm3462 = vcmp.eq.f32.partialorder %v3461, 8.507059e+37
        %v3463 = vand.u32 %v2856, 2147483648
        %v3464 = vor.u32 1.1754944e-38, %v3463
        %v3465 = vsel %vm3462, %v3464, %v3460
        %v3466 = vmul.f32 1.0, %v3465
        %v3467 = vrcp.pop %v2859
        %v3468 = vmul.f32 %v2859, %v3467
        %v3469 = vsub.f32 1.0, %v3468
        %v3470 = vmul.f32 %v3467, %v3469
        %v3471 = vadd.f32 %v3467, %v3470
        %vm3472 = vweird.f32 %v2859
        %vm3473 = vweird.f32 %v3467
        %vm3474 = vmor %vm3472, %vm3473
        %v3475 = vsel %vm3474, %v3467, %v3471
        %v3476 = vand.u32 2147483647, %v2859
        %vm3477 = vcmp.eq.f32.partialorder %v3476, 8.507059e+37
        %v3478 = vand.u32 %v2859, 2147483648
        %v3479 = vor.u32 1.1754944e-38, %v3478
        %v3480 = vsel %vm3477, %v3479, %v3475
        %v3481 = vmul.f32 1.0, %v3480
        %v3482 = vmul.f32 %v3332, %v3376
        %v3483 = vmul.f32 %v3336, %v3391
        %v3484 = vmul.f32 %v3340, %v3406
        %v3485 = vmul.f32 %v3344, %v3421
        %v3486 = vmul.f32 %v3348, %v3436
        %v3487 = vmul.f32 %v3352, %v3451
        %v3488 = vmul.f32 %v3356, %v3466
        %v3489 = vmul.f32 %v3360, %v3481
        %3498 = vrot.lane.b32.xlu0 %v3482, 4
        %v3499 = vpop.permute.xlu0 %3498
        %3500 = vrot.lane.b32.xlu0 %v3483, 4
        %v3501 = vpop.permute.xlu0 %3500
        %3502 = vrot.lane.b32.xlu0 %v3484, 4
        %v3503 = vpop.permute.xlu0 %3502
        %3504 = vrot.lane.b32.xlu0 %v3485, 4
        %v3505 = vpop.permute.xlu0 %3504
        %3506 = vrot.lane.b32.xlu0 %v3486, 4
        %v3507 = vpop.permute.xlu0 %3506
        %3508 = vrot.lane.b32.xlu0 %v3487, 4
        %v3509 = vpop.permute.xlu0 %3508
        %3510 = vrot.lane.b32.xlu0 %v3488, 4
        %v3511 = vpop.permute.xlu0 %3510
        %3512 = vrot.lane.b32.xlu0 %v3489, 4
        %v3513 = vpop.permute.xlu0 %3512
        %v3522 = vsel %vm1064, %v2262, %v3499
        %v3523 = vsel %vm1064, %v2263, %v3501
        %v3524 = vsel %vm1064, %v2264, %v3503
        %v3525 = vsel %vm1064, %v2265, %v3505
        %v3526 = vsel %vm1064, %v2266, %v3507
        %v3527 = vsel %vm1064, %v2267, %v3509
        %v3528 = vsel %vm1064, %v2268, %v3511
        %v3529 = vsel %vm1064, %v2269, %v3513
        %3530 = vst.msk [vmem:[%s238] sm:$0xff] %vm668, %v3522
        %3531 = vst.msk [vmem:[%s238 + $0x8] sm:$0xff] %vm668, %v3523
        %3532 = vst.msk [vmem:[%s238 + $0x10] sm:$0xff] %vm668, %v3524
        %3533 = vst.msk [vmem:[%s238 + $0x18] sm:$0xff] %vm668, %v3525
        %3534 = vst.msk [vmem:[%s238 + $0x20] sm:$0xff] %vm668, %v3526
        %3535 = vst.msk [vmem:[%s238 + $0x28] sm:$0xff] %vm668, %v3527
        %3536 = vst.msk [vmem:[%s238 + $0x30] sm:$0xff] %vm668, %v3528
        %3537 = vst.msk [vmem:[%s238 + $0x38] sm:$0xff] %vm668, %v3529
        %v3538 = vld [vmem:[%s218] sm:$0x1]
        %v3539 = vsel %vm668, %v3522, 0.0
        %v3540 = vsel %vm668, %v3523, 0.0
        %v3541 = vadd.f32 %v3539, %v3540
        %v3542 = vsel %vm668, %v3524, 0.0
        %v3543 = vadd.f32 %v3541, %v3542
        %v3544 = vsel %vm668, %v3525, 0.0
        %v3545 = vadd.f32 %v3543, %v3544
        %v3546 = vsel %vm668, %v3526, 0.0
        %v3547 = vadd.f32 %v3545, %v3546
        %v3548 = vsel %vm668, %v3527, 0.0
        %v3549 = vadd.f32 %v3547, %v3548
        %v3550 = vsel %vm668, %v3528, 0.0
        %v3551 = vadd.f32 %v3549, %v3550
        %v3552 = vsel %vm668, %v3529, 0.0
        %v3553 = vadd.f32 %v3551, %v3552
        %v3554 = vrot.slane %v3553, 4
        %v3555 = vadd.f32 %v3553, %v3554
        %v3556 = vrot.slane %v3555, 2
        %v3557 = vadd.f32 %v3555, %v3556
        %v3558 = vrot.slane %v3557, 1
        %v3559 = vadd.f32 %v3557, %v3558
        %v3560 = vadd.f32 %v3538, %v3559
        %vm3561 = vcmask 57344
        %3562 = vst.msk [vmem:[%s218] sm:$0x1] %vm3561, %v3560
        %v3563 = vld [vmem:[%s224] sm:$0x1]
        %v3564 = vmul.f32 %v3522, %v3522
        %v3565 = vmul.f32 %v3523, %v3523
        %v3566 = vmul.f32 %v3524, %v3524
        %v3567 = vmul.f32 %v3525, %v3525
        %v3568 = vmul.f32 %v3526, %v3526
        %v3569 = vmul.f32 %v3527, %v3527
        %v3570 = vmul.f32 %v3528, %v3528
        %v3571 = vmul.f32 %v3529, %v3529
        %v3572 = vsel %vm668, %v3564, 0.0
        %v3573 = vsel %vm668, %v3565, 0.0
        %v3574 = vadd.f32 %v3572, %v3573
        %v3575 = vsel %vm668, %v3566, 0.0
        %v3576 = vadd.f32 %v3574, %v3575
        %v3577 = vsel %vm668, %v3567, 0.0
        %v3578 = vadd.f32 %v3576, %v3577
        %v3579 = vsel %vm668, %v3568, 0.0
        %v3580 = vadd.f32 %v3578, %v3579
        %v3581 = vsel %vm668, %v3569, 0.0
        %v3582 = vadd.f32 %v3580, %v3581
        %v3583 = vsel %vm668, %v3570, 0.0
        %v3584 = vadd.f32 %v3582, %v3583
        %v3585 = vsel %vm668, %v3571, 0.0
        %v3586 = vadd.f32 %v3584, %v3585
        %v3587 = vrot.slane %v3586, 4
        %v3588 = vadd.f32 %v3586, %v3587
        %v3589 = vrot.slane %v3588, 2
        %v3590 = vadd.f32 %v3588, %v3589
        %v3591 = vrot.slane %v3590, 1
        %v3592 = vadd.f32 %v3590, %v3591
        %v3593 = vadd.f32 %v3563, %v3592
        %3594 = vst.msk [vmem:[%s224] sm:$0x1] %vm3561, %v3593
        %s3595 = smul.u32 8, %s27
        %p3596 = scmp.lt.s32.totalorder %s26, 1
        %s3597 = scalar_select %p3596, %s26, 1
        %p3598 = scmp.lt.s32.totalorder %s3595, 7
        %s3599 = scalar_select %p3598, %s3595, 7
        %s3600 = smul.addr %s3597, 8
        %s3601 = sadd.s32 %s3599, %s3600
        %s3602 = smul.addr %s3601, 8
        %s3603 = scalar_lea.vmem %s2, %s3602
        %s3604 = sand.u32 %s117, 1
        %s3605 = scalar_lea.sflag [#allocation4], %s3604
        %s3606 = sand.u32 %s117, 1
        %s3607 = scalar_lea.vmem [#allocation3], %s3606
        %s3608 = sand.u32 %s143, 1
        %s3609 = scalar_lea.sflag [#allocation6], %s3608
        %s3610 = sand.u32 %s143, 1
        %s3611 = scalar_lea.vmem [#allocation5], %s3610
        // Predicated region
        $region33: #{tpu_custom_call.1} parent=27 // pred_check
          %p3612 = pneg %p101
        $region34: #{tpu_custom_call.1} parent=27 // pred_check_branch
          %3614 = sbr.rel (%p3612) target = $region36
        $region35: #{tpu_custom_call.1} parent=27 // pred_region
          %s3615 = smul.u32 8, %s27
        $region36: #{tpu_custom_call.1} parent=27 // pred_fallthru
          _
        // Predicated region
        $region37: #{tpu_custom_call.1} parent=27 // pred_check
          %p3616 = pneg %p127
        $region38: #{tpu_custom_call.1} parent=27 // pred_check_branch
          %3618 = sbr.rel (%p3616) target = $region40
        $region39: #{tpu_custom_call.1} parent=27 // pred_region
          %3620 = vsyncadd %s3605, 0
          %s3621 = scalar_lea.hbm %s3, %s26
          %s3623 = sshll.u32 %s3607, 4
          %s3624 = int_to_ptr.vmem [resolvable:$true] %s3623
          %s3625 = sshll.u32 %s3621, 4
          %s3626 = int_to_ptr.hbm [resolvable:$true] %s3625
          %3628 = dma.vmem_to_hbm [thread:$0]  %s3624, 16, %s3626, %s3605
        $region40: #{tpu_custom_call.1} parent=27 // pred_fallthru
          _
        // Predicated region
        $region41: #{tpu_custom_call.1} parent=27 // pred_check
          %p3629 = pneg %p153
        $region42: #{tpu_custom_call.1} parent=27 // pred_check_branch
          %3631 = sbr.rel (%p3629) target = $region44
        $region43: #{tpu_custom_call.1} parent=27 // pred_region
          %3633 = vsyncadd %s3609, 0
          %s3634 = scalar_lea.hbm %s4, %s26
          %s3636 = sshll.u32 %s3611, 4
          %s3637 = int_to_ptr.vmem [resolvable:$true] %s3636
          %s3638 = sshll.u32 %s3634, 4
          %s3639 = int_to_ptr.hbm [resolvable:$true] %s3638
          %3641 = dma.vmem_to_hbm [thread:$0]  %s3637, 16, %s3639, %s3609
        $region44: #{tpu_custom_call.1} parent=27 // pred_fallthru
          _
      $region28: #{tpu_custom_call.1} parent=5 // pred_fallthru
        _
      %p3642 = scmp.le.s32.totalorder 2, %s17
      // Predicated region
      $region45: #{tpu_custom_call.1} parent=5 // pred_check
        %p3643 = pneg %p3642
      $region46: #{tpu_custom_call.1} parent=5 // pred_check_branch
        %3645 = sbr.rel (%p3643) target = $region48
      $region47: #{tpu_custom_call.1} parent=5 // pred_region
        %s3646 = ssub.s32 %s17, 2
        // Predicated region
        $region49: #{tpu_custom_call.1} parent=47 // pred_check
          %p3647 = pneg %p107
        $region50: #{tpu_custom_call.1} parent=47 // pred_check_branch
          %3649 = sbr.rel (%p3647) target = $region52
        $region51: #{tpu_custom_call.1} parent=47 // pred_region
          %s3650 = smul.u32 8, %s29
          %p3651 = scmp.lt.s32.totalorder %s28, 1
          %s3652 = scalar_select %p3651, %s28, 1
          %p3653 = scmp.lt.s32.totalorder %s3650, 7
          %s3654 = scalar_select %p3653, %s3650, 7
          %s3655 = smul.addr %s3652, 8
          %s3656 = sadd.s32 %s3654, %s3655
          %s3657 = smul.addr %s3656, 8
          %s3658 = scalar_lea.vmem %s2, %s3657
        $region52: #{tpu_custom_call.1} parent=47 // pred_fallthru
          _
        // Predicated region
        $region53: #{tpu_custom_call.1} parent=47 // pred_check
          %p3659 = pneg %p133
        $region54: #{tpu_custom_call.1} parent=47 // pred_check_branch
          %3661 = sbr.rel (%p3659) target = $region56
        $region55: #{tpu_custom_call.1} parent=47 // pred_region
          %s3662 = sand.u32 %s118, 1
          %s3663 = scalar_lea.sflag [#allocation4], %s3662
          %s3664 = sand.u32 %s118, 1
          %s3665 = scalar_lea.vmem [#allocation3], %s3664
          %3667 = dma.done %s3663, 16
        $region56: #{tpu_custom_call.1} parent=47 // pred_fallthru
          _
        // Predicated region
        $region57: #{tpu_custom_call.1} parent=47 // pred_check
          %p3668 = pneg %p159
        $region58: #{tpu_custom_call.1} parent=47 // pred_check_branch
          %3670 = sbr.rel (%p3668) target = $region60
        $region59: #{tpu_custom_call.1} parent=47 // pred_region
          %s3671 = sand.u32 %s144, 1
          %s3672 = scalar_lea.sflag [#allocation6], %s3671
          %s3673 = sand.u32 %s144, 1
          %s3674 = scalar_lea.vmem [#allocation5], %s3673
          %3676 = dma.done %s3672, 16
        $region60: #{tpu_custom_call.1} parent=47 // pred_fallthru
          _
      $region48: #{tpu_custom_call.1} parent=5 // pred_fallthru
        _
    $region6: #{tpu_custom_call.1} parent=1 // loop_footer
      %s21 = sadd.s32 1, %s17
    $region7: #{tpu_custom_call.1} parent=1 // loop_footer_branch
      %16 = sbr.rel target = $region3
    $region8: #{tpu_custom_call.1} parent=1 // loop_exit
      _
    %3677 = vsyncpa [#allocation4], 1
    %s3678 = scalar_lea.sflag [#allocation4], 1
    %3679 = vsyncpa %s3678, 1
    %3680 = vsyncpa [#allocation6], 1
    %s3681 = scalar_lea.sflag [#allocation6], 1
    %3682 = vsyncpa %s3681, 1

</llo_original>
